<compile_context>
chip_gen: v5e
topology: v5e:2x2
jax: 0.10.0
libtpu: 0.0.40
codegen_flags: <defaults>
</compile_context>

<pallas_src>
import functools

import jax
import jax.numpy as jnp
from jax import lax
from jax.experimental import pallas as pl
from jax.experimental.pallas import tpu as pltpu


_VMEM_LIMIT = 48 * 1024 * 1024  # fits v5e/v6e (128 MiB) and v7x (64 MiB) VMEM


# ----------------------------------------------------------------------------
# Fused stage kernel: 1x1 input conv + num_layers dilated residual layers
# ----------------------------------------------------------------------------

def _stage_kernel(x_ref, m_ref, inw_ref, inb_ref, wd_ref, bd_ref, wp_ref,
                  bp_ref, o_ref, *, dilations, mask_input):
    x = x_ref[0]                                    # (Cin, T) f32
    m = m_ref[0]                                    # (1, T)  f32
    if mask_input:
        x = x * m                                   # folded `out * mask` input

    # input 1x1 conv (bf16 MXU, f32 accumulate)
    out = jnp.dot(inw_ref[...], x.astype(jnp.bfloat16),
                  preferred_element_type=jnp.float32) + inb_ref[...]
    C, T = out.shape
    t_row = lax.broadcasted_iota(jnp.int32, (1, T), 1)   # (1, T) lane index

    # Static unroll over layers; dilation is static per layer so the lane
    # rotations are static-shift XLU ops (free slot relative to MXU/VPU).
    for i, d in enumerate(dilations):
        xb = out.astype(jnp.bfloat16)
        # zero-padded "same" conv taps:
        #   x_m[:, t] = x[:, t-d] (t >= d else 0),  x_p[:, t] = x[:, t+d] (t < T-d else 0)
        x_m = jnp.where(t_row >= d,
                        pltpu.roll(out, d, axis=1), 0.0).astype(jnp.bfloat16)
        x_p = jnp.where(t_row < T - d,
                        pltpu.roll(out, T - d, axis=1), 0.0).astype(jnp.bfloat16)
        taps = jnp.concatenate([x_m, xb, x_p], axis=0)          # (3C, T) bf16
        # merged-tap dilated conv: single (C,3C)@(3C,T) matmul
        pre = jnp.dot(wd_ref[i], taps,
                      preferred_element_type=jnp.float32) + bd_ref[i]
        h = jnp.maximum(pre, 0.0).astype(jnp.bfloat16)          # ReLU
        res = jnp.dot(wp_ref[i], h,
                      preferred_element_type=jnp.float32) + bp_ref[i]
        # Dropout(p=0) is identity.
        out = (out + res) * m                                   # f32 epilogue

    o_ref[0] = out


def run_stage(sp, x, mask1, *, mask_input):
    """SingleStageEncoder / SingleStageDecoder trunk as ONE fused pallas_call."""
    B, Cin, T = x.shape
    C = sp["in_w"].shape[0]
    L = sp["wd"].shape[0]
    dilations = tuple(2 ** i for i in range(L))     # matches the PyTorch module
    assert max(dilations) < T
    kern = functools.partial(_stage_kernel, dilations=dilations,
                             mask_input=mask_input)
    # TODO(synk): for very long sequences a T-tiled grid with receptive-field
    # halos would be needed; at typical T the whole (C, T) slab fits VMEM.
    return pl.pallas_call(
        kern,
        out_shape=jax.ShapeDtypeStruct((B, C, T), jnp.float32),
        grid=(B,),
        in_specs=[
            pl.BlockSpec((1, Cin, T), lambda b: (b, 0, 0)),
            pl.BlockSpec((1, 1, T), lambda b: (b, 0, 0)),
            pl.BlockSpec((C, Cin), lambda b: (0, 0)),          # input 1x1 W (bf16)
            pl.BlockSpec((C, 1), lambda b: (0, 0)),            # input 1x1 b
            pl.BlockSpec((L, C, 3 * C), lambda b: (0, 0, 0)),  # merged dilated W
            pl.BlockSpec((L, C, 1), lambda b: (0, 0, 0)),      # dilated bias
            pl.BlockSpec((L, C, C), lambda b: (0, 0, 0)),      # 1x1 W (bf16)
            pl.BlockSpec((L, C, 1), lambda b: (0, 0, 0)),      # 1x1 bias
        ],
        out_specs=pl.BlockSpec((1, C, T), lambda b: (b, 0, 0)),
        compiler_params=pltpu.CompilerParams(
            dimension_semantics=("parallel",),
            vmem_limit_bytes=_VMEM_LIMIT),
    )(x, mask1, sp["in_w"], sp["in_b"], sp["wd"], sp["bd"], sp["wp"], sp["bp"])


# ----------------------------------------------------------------------------
# Vector quantizer (cosine-similarity lookup)
# ----------------------------------------------------------------------------

def _vq_kernel(enc_ref, emb_ref, q_ref, dist_ref):
    # Lookup only; EMA decay / kmeans init / dead-code refresh are stateful
    # training-time codebook updates with no forward-pass math.
    enc = enc_ref[0]                                   # (C, T) f32
    emb = emb_ref[...]                                 # (K, C) f32
    eps = 1e-8
    enc_n = enc * lax.rsqrt(jnp.sum(enc * enc, axis=0, keepdims=True) + eps)
    emb_n = emb * lax.rsqrt(jnp.sum(emb * emb, axis=1, keepdims=True) + eps)

    # keep the tiny (K,C)@(C,T) similarity matmul in f32 (argmax robustness)
    sim = jnp.dot(emb_n, enc_n, preferred_element_type=jnp.float32)   # (K, T)
    K, T = sim.shape

    # argmax over the codebook axis with first-match tie-breaking
    k_iota = lax.broadcasted_iota(jnp.int32, (K, T), 0)
    max_val = jnp.max(sim, axis=0, keepdims=True)                     # (1, T)
    masked_idx = jnp.where(sim == max_val, k_iota, K)
    idx = jnp.min(masked_idx, axis=0, keepdims=True)                  # (1, T)
    onehot = (k_iota == idx).astype(jnp.float32)                      # (K, T)

    # quantized = selected (normalized) codebook vector
    # TODO(synk): VectorQuantizer source not provided; cos_sim lookup with a
    # normalized codebook is assumed for the quantized output.
    q_ref[0] = jnp.dot(emb_n.T, onehot, preferred_element_type=jnp.float32)

    # softmax over the codebook axis, stored lane-dense as (K, T)
    e = jnp.exp(sim - max_val)
    dist_ref[0] = e * pl.reciprocal(jnp.sum(e, axis=0, keepdims=True), approx=True)


def vector_quantize(enc, emb):
    B, C, T = enc.shape
    K = emb.shape[0]
    return pl.pallas_call(
        _vq_kernel,
        out_shape=(jax.ShapeDtypeStruct((B, C, T), jnp.float32),
                   jax.ShapeDtypeStruct((B, K, T), jnp.float32)),
        grid=(B,),
        in_specs=[
            pl.BlockSpec((1, C, T), lambda b: (b, 0, 0)),
            pl.BlockSpec((K, C), lambda b: (0, 0)),
        ],
        out_specs=(pl.BlockSpec((1, C, T), lambda b: (b, 0, 0)),
                   pl.BlockSpec((1, K, T), lambda b: (b, 0, 0))),
        compiler_params=pltpu.CompilerParams(
            dimension_semantics=("parallel",),
            vmem_limit_bytes=_VMEM_LIMIT),
    )(enc, emb)


# ----------------------------------------------------------------------------
# Output 1x1 conv with the final mask multiply folded in
# ----------------------------------------------------------------------------

def _out_conv_kernel(x_ref, m_ref, w_ref, b_ref, o_ref):
    x = x_ref[0]                                       # (C, T) f32
    y = jnp.dot(w_ref[...], x.astype(jnp.bfloat16),
                preferred_element_type=jnp.float32) + b_ref[...]
    o_ref[0] = y * m_ref[0]                            # mask folded in


def out_conv(x, mask1, w, b):
    B, C, T = x.shape
    Cout = w.shape[0]
    return pl.pallas_call(
        _out_conv_kernel,
        out_shape=jax.ShapeDtypeStruct((B, Cout, T), jnp.float32),
        grid=(B,),
        in_specs=[
            pl.BlockSpec((1, C, T), lambda b_: (b_, 0, 0)),
            pl.BlockSpec((1, 1, T), lambda b_: (b_, 0, 0)),
            pl.BlockSpec((Cout, C), lambda b_: (0, 0)),
            pl.BlockSpec((Cout, 1), lambda b_: (0, 0)),
        ],
        out_specs=pl.BlockSpec((1, Cout, T), lambda b_: (b_, 0, 0)),
        compiler_params=pltpu.CompilerParams(
            dimension_semantics=("parallel",),
            vmem_limit_bytes=_VMEM_LIMIT),
    )(x, mask1, w, b)


# ----------------------------------------------------------------------------
# Model wrapper (plain JAX glue); jit-compiled as one XLA program
# ----------------------------------------------------------------------------

def single_vq_forward(params, x, mask):
    mask1 = mask[:, 0:1, :]

    # ---- encode ----
    out = run_stage(params["stage1"], x, mask1, mask_input=False)
    output_all = [out]
    for sp in params["stages_enc"]:
        # class_pred (class_p=True) output is discarded by SingleVQModel.encode,
        # so it is not computed here. The `out * mask` is folded into the kernel.
        out = run_stage(sp, out, mask1, mask_input=True)
        output_all.append(out)
    output_all = jnp.stack(output_all, axis=0)         # (num_stages, B, F, T)
    enc = out

    # ---- vector quantizer ----
    # TODO(synk): EMA decay / kmeans init / dead-code refresh of the codebook are
    # stateful training-time updates with no forward-pass equivalent; only the
    # cosine-similarity lookup + commitment loss are implemented.
    quantized, dist_kt = vector_quantize(enc, params["vq_emb"])
    loss_commit = jnp.mean((quantized - enc) ** 2)      # commitment_cost = 1.0
    dist_soft = jnp.transpose(dist_kt, (0, 2, 1))       # (B, T, K) for the caller

    # ---- decode ----
    out = quantized
    for sp in params["stages_dec"]:
        out = run_stage(sp, out, mask1, mask_input=False)
    out = out_conv(out, mask1, params["conv_out_w"], params["conv_out_b"])

    return out, output_all, loss_commit, dist_soft, enc


single_vq_forward_jit = jax.jit(single_vq_forward)


# ----------------------------------------------------------------------------
# Deterministic parameter initialization (shapes per the PyTorch __init__);
# dilated-conv taps are merged/stacked at init time and matmul weights stored
# in bf16, biases / codebook in f32.
# ----------------------------------------------------------------------------

def init_params(key, num_stages, num_layers, num_f_maps, dim, num_classes,
                latent_dim):
    assert latent_dim == num_f_maps, "VQ embedding_dim must match encoder channels"
    keys = list(jax.random.split(key, 1024))
    kiter = iter(keys)

    def u(shape, fan_in):
        s = 1.0 / jnp.sqrt(jnp.float32(fan_in))
        return jax.random.uniform(next(kiter), shape, jnp.float32, -s, s)

    def make_stage(in_dim):
        wd_l, bd_l, wp_l, bp_l = [], [], [], []
        for _ in range(num_layers):
            wd3 = u((num_f_maps, num_f_maps, 3), num_f_maps * 3)   # (C, C, 3)
            # merge taps -> (C, 3C): columns [tap -d | tap 0 | tap +d]
            wd_l.append(jnp.concatenate(
                [wd3[:, :, 0], wd3[:, :, 1], wd3[:, :, 2]], axis=1))
            bd_l.append(u((num_f_maps, 1), num_f_maps * 3))
            wp_l.append(u((num_f_maps, num_f_maps), num_f_maps))
            bp_l.append(u((num_f_maps, 1), num_f_maps))
        return {
            "in_w": u((num_f_maps, in_dim), in_dim).astype(jnp.bfloat16),
            "in_b": u((num_f_maps, 1), in_dim),
            "wd": jnp.stack(wd_l).astype(jnp.bfloat16),            # (L, C, 3C)
            "bd": jnp.stack(bd_l),                                 # (L, C, 1)
            "wp": jnp.stack(wp_l).astype(jnp.bfloat16),            # (L, C, C)
            "bp": jnp.stack(bp_l),                                 # (L, C, 1)
        }

    params = {
        "stage1": make_stage(dim),
        "stages_enc": [make_stage(num_f_maps) for _ in range(num_stages - 1)],
        "stages_dec": [make_stage(num_f_maps) for _ in range(num_stages)],
        "vq_emb": jax.random.normal(next(kiter), (num_classes, latent_dim),
                                    jnp.float32),
        "conv_out_w": u((dim, num_f_maps), num_f_maps).astype(jnp.bfloat16),
        "conv_out_b": u((dim, 1), num_f_maps),
    }
    return params


# ----------------------------------------------------------------------------

if __name__ == "__main__":
    # lane-dense small example: T is a multiple of 128
    B, dim, T = 2, 16, 256
    num_stages, num_layers, num_f_maps, num_classes = 2, 3, 32, 8
    latent_dim = num_f_maps

    root = jax.random.PRNGKey(0)
    kp, kx = jax.random.split(root)
    params = init_params(kp, num_stages, num_layers, num_f_maps, dim,
                         num_classes, latent_dim)

    x = jax.random.normal(kx, (B, dim, T), jnp.float32)
    # mask as used by the model: mask[:, 0:1, :] selects the first channel
    mask = jnp.ones((B, num_classes, T), jnp.float32)
    mask = mask.at[1, :, T - 32:].set(0.0)  # simulate a padded sequence

    out, output_all, loss_commit, dist_soft, enc = single_vq_forward_jit(
        params, x, mask)
    jax.block_until_ready((out, output_all, loss_commit, dist_soft, enc))

    assert out.shape == (B, dim, T)
    assert output_all.shape == (num_stages, B, num_f_maps, T)
    assert dist_soft.shape == (B, T, num_classes)
    assert enc.shape == (B, num_f_maps, T)
    assert bool(jnp.isfinite(loss_commit))
    print("KERNEL_OK")
</pallas_src>

<mosaic_0001>
module attributes {stable_mosaic.version = 11 : i64} {
  func.func @_vq_kernel(%arg0: i32, %arg1: memref<1x32x256xf32, #tpu.memory_space<vmem>>, %arg2: memref<8x32xf32, #tpu.memory_space<vmem>>, %arg3: memref<1x32x256xf32, #tpu.memory_space<vmem>>, %arg4: memref<1x8x256xf32, #tpu.memory_space<vmem>>) attributes {dimension_semantics = [#tpu.dimension_semantics<parallel>], iteration_bounds = array<i64: 2>, scalar_prefetch = 0 : i64, scratch_operands = 0 : i64, tpu.core_type = #tpu.core_type<tc>, window_params = [{transform_indices = @transform_0, window_bounds = array<i64: 1, 32, 256>}, {pipeline_mode = #tpu.pipeline_mode<synchronous>, transform_indices = @transform_1, window_bounds = array<i64: 8, 32>}, {transform_indices = @transform_2, window_bounds = array<i64: 1, 32, 256>}, {transform_indices = @transform_3, window_bounds = array<i64: 1, 8, 256>}]} {
    %c0 = arith.constant 0 : index
    %c0_0 = arith.constant 0 : index
    %c0_1 = arith.constant 0 : index
    %0 = vector.load %arg1[%c0, %c0_0, %c0_1] : memref<1x32x256xf32, #tpu.memory_space<vmem>>, vector<1x32x256xf32>
    %1 = vector.shape_cast %0 : vector<1x32x256xf32> to vector<32x256xf32>
    %c0_2 = arith.constant 0 : index
    %c0_3 = arith.constant 0 : index
    %2 = vector.load %arg2[%c0_2, %c0_3] : memref<8x32xf32, #tpu.memory_space<vmem>>, vector<8x32xf32>
    %3 = arith.mulf %1, %1 : vector<32x256xf32>
    %cst = arith.constant dense<0.000000e+00> : vector<256xf32>
    %4 = vector.multi_reduction <add>, %3, %cst [0] : vector<32x256xf32> to vector<256xf32>
    %5 = vector.shape_cast %4 : vector<256xf32> to vector<1x256xf32>
    %cst_4 = arith.constant 9.99999993E-9 : f32
    %6 = vector.broadcast %cst_4 : f32 to vector<1x256xf32>
    %7 = arith.addf %5, %6 : vector<1x256xf32>
    %8 = math.rsqrt %7 : vector<1x256xf32>
    %9 = vector.broadcast %8 : vector<1x256xf32> to vector<32x256xf32>
    %10 = arith.mulf %1, %9 : vector<32x256xf32>
    %11 = arith.mulf %2, %2 : vector<8x32xf32>
    %cst_5 = arith.constant dense<0.000000e+00> : vector<8xf32>
    %12 = vector.multi_reduction <add>, %11, %cst_5 [1] : vector<8x32xf32> to vector<8xf32>
    %13 = vector.shape_cast %12 : vector<8xf32> to vector<8x1xf32>
    %cst_6 = arith.constant 9.99999993E-9 : f32
    %14 = vector.broadcast %cst_6 : f32 to vector<8x1xf32>
    %15 = arith.addf %13, %14 : vector<8x1xf32>
    %16 = math.rsqrt %15 : vector<8x1xf32>
    %17 = vector.broadcast %16 : vector<8x1xf32> to vector<8x32xf32>
    %18 = arith.mulf %2, %17 : vector<8x32xf32>
    %cst_7 = arith.constant dense<0.000000e+00> : vector<8x256xf32>
    %19 = tpu.matmul %18, %10, %cst_7 {dimension_numbers = #tpu.dot_dimension_numbers<[1], [0], [0], [1], [0, 0, 1, 1], [], []>} : vector<8x32xf32>, vector<32x256xf32>, vector<8x256xf32> -> vector<8x256xf32>
    %20 = tpu.iota {dimensions = array<i32: 0>} : vector<8x256xi32>
    %cst_8 = arith.constant dense<0xFF800000> : vector<256xf32>
    %21 = vector.multi_reduction <maximumf>, %19, %cst_8 [0] : vector<8x256xf32> to vector<256xf32>
    %22 = vector.shape_cast %21 : vector<256xf32> to vector<1x256xf32>
    %23 = vector.broadcast %22 : vector<1x256xf32> to vector<8x256xf32>
    %24 = arith.cmpf oeq, %19, %23 : vector<8x256xf32>
    %c8_i32 = arith.constant 8 : i32
    %25 = vector.broadcast %c8_i32 : i32 to vector<8x256xi32>
    %26 = arith.select %24, %20, %25 : vector<8x256xi1>, vector<8x256xi32>
    %cst_9 = arith.constant dense<2147483647> : vector<256xi32>
    %27 = vector.multi_reduction <minsi>, %26, %cst_9 [0] : vector<8x256xi32> to vector<256xi32>
    %28 = vector.shape_cast %27 : vector<256xi32> to vector<1x256xi32>
    %29 = vector.broadcast %28 : vector<1x256xi32> to vector<8x256xi32>
    %30 = arith.cmpi eq, %20, %29 : vector<8x256xi32>
    %31 = arith.extui %30 : vector<8x256xi1> to vector<8x256xi32>
    %32 = arith.sitofp %31 : vector<8x256xi32> to vector<8x256xf32>
    %33 = tpu.transpose %18, [1, 0] : vector<8x32xf32> -> vector<32x8xf32>
    %cst_10 = arith.constant dense<0.000000e+00> : vector<32x256xf32>
    %34 = tpu.matmul %33, %32, %cst_10 {dimension_numbers = #tpu.dot_dimension_numbers<[1], [0], [0], [1], [0, 0, 1, 1], [], []>} : vector<32x8xf32>, vector<8x256xf32>, vector<32x256xf32> -> vector<32x256xf32>
    %c0_11 = arith.constant 0 : index
    %c0_12 = arith.constant 0 : index
    %c0_13 = arith.constant 0 : index
    %35 = vector.load %arg3[%c0_11, %c0_12, %c0_13] : memref<1x32x256xf32, #tpu.memory_space<vmem>>, vector<1x32x256xf32>
    %36 = vector.shape_cast %35 : vector<1x32x256xf32> to vector<32x256xf32>
    %37 = vector.shape_cast %34 : vector<32x256xf32> to vector<1x32x256xf32>
    tpu.vector_store %arg3[%c0_11, %c0_12, %c0_13], %37 {strides = array<i32>} : memref<1x32x256xf32, #tpu.memory_space<vmem>>, vector<1x32x256xf32>,
    %38 = vector.broadcast %22 : vector<1x256xf32> to vector<8x256xf32>
    %39 = arith.subf %19, %38 : vector<8x256xf32>
    %40 = math.exp %39 : vector<8x256xf32>
    %cst_14 = arith.constant dense<0.000000e+00> : vector<256xf32>
    %41 = vector.multi_reduction <add>, %40, %cst_14 [0] : vector<8x256xf32> to vector<256xf32>
    %42 = vector.shape_cast %41 : vector<256xf32> to vector<1x256xf32>
    %43 = tpu.reciprocal %42 {approx = true} : vector<1x256xf32> -> vector<1x256xf32>
    %44 = vector.broadcast %43 : vector<1x256xf32> to vector<8x256xf32>
    %45 = arith.mulf %40, %44 : vector<8x256xf32>
    %c0_15 = arith.constant 0 : index
    %c0_16 = arith.constant 0 : index
    %c0_17 = arith.constant 0 : index
    %46 = vector.load %arg4[%c0_15, %c0_16, %c0_17] : memref<1x8x256xf32, #tpu.memory_space<vmem>>, vector<1x8x256xf32>
    %47 = vector.shape_cast %46 : vector<1x8x256xf32> to vector<8x256xf32>
    %48 = vector.shape_cast %45 : vector<8x256xf32> to vector<1x8x256xf32>
    tpu.vector_store %arg4[%c0_15, %c0_16, %c0_17], %48 {strides = array<i32>} : memref<1x8x256xf32, #tpu.memory_space<vmem>>, vector<1x8x256xf32>,
    return
  }
  func.func @transform_0(%arg0: i32) -> (i32, i32, i32) {
    %c0_i32 = arith.constant 0 : i32
    %c0_i32_0 = arith.constant 0 : i32
    %c0_i32_1 = arith.constant 0 : i32
    return %arg0, %c0_i32, %c0_i32_0 : i32, i32, i32
  }
  func.func @transform_1(%arg0: i32) -> (i32, i32) {
    %c0_i32 = arith.constant 0 : i32
    %c0_i32_0 = arith.constant 0 : i32
    %c0_i32_1 = arith.constant 0 : i32
    return %c0_i32, %c0_i32_0 : i32, i32
  }
  func.func @transform_2(%arg0: i32) -> (i32, i32, i32) {
    %c0_i32 = arith.constant 0 : i32
    %c0_i32_0 = arith.constant 0 : i32
    %c0_i32_1 = arith.constant 0 : i32
    return %arg0, %c0_i32, %c0_i32_0 : i32, i32, i32
  }
  func.func @transform_3(%arg0: i32) -> (i32, i32, i32) {
    %c0_i32 = arith.constant 0 : i32
    %c0_i32_0 = arith.constant 0 : i32
    %c0_i32_1 = arith.constant 0 : i32
    return %arg0, %c0_i32, %c0_i32_0 : i32, i32, i32
  }
}

module attributes {stable_mosaic.version = 11 : i64} {
  func.func @_stage_kernel(%arg0: i32, %arg1: memref<1x32x256xf32, #tpu.memory_space<vmem>>, %arg2: memref<1x1x256xf32, #tpu.memory_space<vmem>>, %arg3: memref<32x32xbf16, #tpu.memory_space<vmem>>, %arg4: memref<32x1xf32, #tpu.memory_space<vmem>>, %arg5: memref<3x32x96xbf16, #tpu.memory_space<vmem>>, %arg6: memref<3x32x1xf32, #tpu.memory_space<vmem>>, %arg7: memref<3x32x32xbf16, #tpu.memory_space<vmem>>, %arg8: memref<3x32x1xf32, #tpu.memory_space<vmem>>, %arg9: memref<1x32x256xf32, #tpu.memory_space<vmem>>) attributes {dimension_semantics = [#tpu.dimension_semantics<parallel>], iteration_bounds = array<i64: 2>, scalar_prefetch = 0 : i64, scratch_operands = 0 : i64, tpu.core_type = #tpu.core_type<tc>, window_params = [{transform_indices = @transform_0, window_bounds = array<i64: 1, 32, 256>}, {transform_indices = @transform_1, window_bounds = array<i64: 1, 1, 256>}, {pipeline_mode = #tpu.pipeline_mode<synchronous>, transform_indices = @transform_2, window_bounds = array<i64: 32, 32>}, {pipeline_mode = #tpu.pipeline_mode<synchronous>, transform_indices = @transform_3, window_bounds = array<i64: 32, 1>}, {pipeline_mode = #tpu.pipeline_mode<synchronous>, transform_indices = @transform_4, window_bounds = array<i64: 3, 32, 96>}, {pipeline_mode = #tpu.pipeline_mode<synchronous>, transform_indices = @transform_5, window_bounds = array<i64: 3, 32, 1>}, {pipeline_mode = #tpu.pipeline_mode<synchronous>, transform_indices = @transform_6, window_bounds = array<i64: 3, 32, 32>}, {pipeline_mode = #tpu.pipeline_mode<synchronous>, transform_indices = @transform_7, window_bounds = array<i64: 3, 32, 1>}, {transform_indices = @transform_8, window_bounds = array<i64: 1, 32, 256>}]} {
    %c0 = arith.constant 0 : index
    %c0_0 = arith.constant 0 : index
    %c0_1 = arith.constant 0 : index
    %0 = vector.load %arg1[%c0, %c0_0, %c0_1] : memref<1x32x256xf32, #tpu.memory_space<vmem>>, vector<1x32x256xf32>
    %1 = vector.shape_cast %0 : vector<1x32x256xf32> to vector<32x256xf32>
    %c0_2 = arith.constant 0 : index
    %c0_3 = arith.constant 0 : index
    %c0_4 = arith.constant 0 : index
    %2 = vector.load %arg2[%c0_2, %c0_3, %c0_4] : memref<1x1x256xf32, #tpu.memory_space<vmem>>, vector<1x1x256xf32>
    %3 = vector.shape_cast %2 : vector<1x1x256xf32> to vector<1x256xf32>
    %c0_5 = arith.constant 0 : index
    %c0_6 = arith.constant 0 : index
    %4 = vector.load %arg3[%c0_5, %c0_6] : memref<32x32xbf16, #tpu.memory_space<vmem>>, vector<32x32xbf16>
    %5 = arith.truncf %1 : vector<32x256xf32> to vector<32x256xbf16>
    %cst = arith.constant dense<0.000000e+00> : vector<32x256xf32>
    %6 = tpu.matmul %4, %5, %cst {dimension_numbers = #tpu.dot_dimension_numbers<[1], [0], [0], [1], [0, 0, 1, 1], [], []>} : vector<32x32xbf16>, vector<32x256xbf16>, vector<32x256xf32> -> vector<32x256xf32>
    %c0_7 = arith.constant 0 : index
    %c0_8 = arith.constant 0 : index
    %7 = vector.load %arg4[%c0_7, %c0_8] : memref<32x1xf32, #tpu.memory_space<vmem>>, vector<32x1xf32>
    %8 = vector.broadcast %7 : vector<32x1xf32> to vector<32x256xf32>
    %9 = arith.addf %6, %8 : vector<32x256xf32>
    %10 = tpu.iota {dimensions = array<i32: 1>} : vector<1x256xi32>
    %11 = arith.truncf %9 : vector<32x256xf32> to vector<32x256xbf16>
    %c1_i32 = arith.constant 1 : i32
    %12 = vector.broadcast %c1_i32 : i32 to vector<1x256xi32>
    %13 = arith.cmpi sge, %10, %12 : vector<1x256xi32>
    %c1_i32_9 = arith.constant 1 : i32
    %14 = tpu.dynamic_rotate %9 by %c1_i32_9 dim 1 : vector<32x256xf32>, i32 -> vector<32x256xf32>
    %cst_10 = arith.constant 0.000000e+00 : f32
    %15 = vector.shape_cast %13 : vector<1x256xi1> to vector<1x256xi1>
    %16 = vector.broadcast %15 : vector<1x256xi1> to vector<32x256xi1>
    %17 = vector.broadcast %cst_10 : f32 to vector<32x256xf32>
    %18 = arith.select %16, %14, %17 : vector<32x256xi1>, vector<32x256xf32>
    %19 = arith.truncf %18 : vector<32x256xf32> to vector<32x256xbf16>
    %c255_i32 = arith.constant 255 : i32
    %20 = vector.broadcast %c255_i32 : i32 to vector<1x256xi32>
    %21 = arith.cmpi slt, %10, %20 : vector<1x256xi32>
    %c255_i32_11 = arith.constant 255 : i32
    %22 = tpu.dynamic_rotate %9 by %c255_i32_11 dim 1 : vector<32x256xf32>, i32 -> vector<32x256xf32>
    %cst_12 = arith.constant 0.000000e+00 : f32
    %23 = vector.shape_cast %21 : vector<1x256xi1> to vector<1x256xi1>
    %24 = vector.broadcast %23 : vector<1x256xi1> to vector<32x256xi1>
    %25 = vector.broadcast %cst_12 : f32 to vector<32x256xf32>
    %26 = arith.select %24, %22, %25 : vector<32x256xi1>, vector<32x256xf32>
    %27 = arith.truncf %26 : vector<32x256xf32> to vector<32x256xbf16>
    %28 = tpu.concatenate %19, %11, %27 in 0 : vector<32x256xbf16>, vector<32x256xbf16>, vector<32x256xbf16> -> vector<96x256xbf16>
    %c0_13 = arith.constant 0 : index
    %c0_14 = arith.constant 0 : index
    %c0_15 = arith.constant 0 : index
    %29 = vector.load %arg5[%c0_13, %c0_14, %c0_15] : memref<3x32x96xbf16, #tpu.memory_space<vmem>>, vector<1x32x96xbf16>
    %30 = vector.shape_cast %29 : vector<1x32x96xbf16> to vector<32x96xbf16>
    %cst_16 = arith.constant dense<0.000000e+00> : vector<32x256xf32>
    %31 = tpu.matmul %30, %28, %cst_16 {dimension_numbers = #tpu.dot_dimension_numbers<[1], [0], [0], [1], [0, 0, 1, 1], [], []>} : vector<32x96xbf16>, vector<96x256xbf16>, vector<32x256xf32> -> vector<32x256xf32>
    %c0_17 = arith.constant 0 : index
    %c0_18 = arith.constant 0 : index
    %c0_19 = arith.constant 0 : index
    %32 = vector.load %arg6[%c0_17, %c0_18, %c0_19] : memref<3x32x1xf32, #tpu.memory_space<vmem>>, vector<1x32x1xf32>
    %33 = vector.shape_cast %32 : vector<1x32x1xf32> to vector<32x1xf32>
    %34 = vector.broadcast %33 : vector<32x1xf32> to vector<32x256xf32>
    %35 = arith.addf %31, %34 : vector<32x256xf32>
    %cst_20 = arith.constant 0.000000e+00 : f32
    %36 = vector.broadcast %cst_20 : f32 to vector<32x256xf32>
    %37 = arith.maximumf %35, %36 : vector<32x256xf32>
    %38 = arith.truncf %37 : vector<32x256xf32> to vector<32x256xbf16>
    %c0_21 = arith.constant 0 : index
    %c0_22 = arith.constant 0 : index
    %c0_23 = arith.constant 0 : index
    %39 = vector.load %arg7[%c0_21, %c0_22, %c0_23] : memref<3x32x32xbf16, #tpu.memory_space<vmem>>, vector<1x32x32xbf16>
    %40 = vector.shape_cast %39 : vector<1x32x32xbf16> to vector<32x32xbf16>
    %cst_24 = arith.constant dense<0.000000e+00> : vector<32x256xf32>
    %41 = tpu.matmul %40, %38, %cst_24 {dimension_numbers = #tpu.dot_dimension_numbers<[1], [0], [0], [1], [0, 0, 1, 1], [], []>} : vector<32x32xbf16>, vector<32x256xbf16>, vector<32x256xf32> -> vector<32x256xf32>
    %c0_25 = arith.constant 0 : index
    %c0_26 = arith.constant 0 : index
    %c0_27 = arith.constant 0 : index
    %42 = vector.load %arg8[%c0_25, %c0_26, %c0_27] : memref<3x32x1xf32, #tpu.memory_space<vmem>>, vector<1x32x1xf32>
    %43 = vector.shape_cast %42 : vector<1x32x1xf32> to vector<32x1xf32>
    %44 = vector.broadcast %43 : vector<32x1xf32> to vector<32x256xf32>
    %45 = arith.addf %41, %44 : vector<32x256xf32>
    %46 = arith.addf %9, %45 : vector<32x256xf32>
    %47 = vector.broadcast %3 : vector<1x256xf32> to vector<32x256xf32>
    %48 = arith.mulf %46, %47 : vector<32x256xf32>
    %49 = arith.truncf %48 : vector<32x256xf32> to vector<32x256xbf16>
    %c2_i32 = arith.constant 2 : i32
    %50 = vector.broadcast %c2_i32 : i32 to vector<1x256xi32>
    %51 = arith.cmpi sge, %10, %50 : vector<1x256xi32>
    %c2_i32_28 = arith.constant 2 : i32
    %52 = tpu.dynamic_rotate %48 by %c2_i32_28 dim 1 : vector<32x256xf32>, i32 -> vector<32x256xf32>
    %cst_29 = arith.constant 0.000000e+00 : f32
    %53 = vector.shape_cast %51 : vector<1x256xi1> to vector<1x256xi1>
    %54 = vector.broadcast %53 : vector<1x256xi1> to vector<32x256xi1>
    %55 = vector.broadcast %cst_29 : f32 to vector<32x256xf32>
    %56 = arith.select %54, %52, %55 : vector<32x256xi1>, vector<32x256xf32>
    %57 = arith.truncf %56 : vector<32x256xf32> to vector<32x256xbf16>
    %c254_i32 = arith.constant 254 : i32
    %58 = vector.broadcast %c254_i32 : i32 to vector<1x256xi32>
    %59 = arith.cmpi slt, %10, %58 : vector<1x256xi32>
    %c254_i32_30 = arith.constant 254 : i32
    %60 = tpu.dynamic_rotate %48 by %c254_i32_30 dim 1 : vector<32x256xf32>, i32 -> vector<32x256xf32>
    %cst_31 = arith.constant 0.000000e+00 : f32
    %61 = vector.shape_cast %59 : vector<1x256xi1> to vector<1x256xi1>
    %62 = vector.broadcast %61 : vector<1x256xi1> to vector<32x256xi1>
    %63 = vector.broadcast %cst_31 : f32 to vector<32x256xf32>
    %64 = arith.select %62, %60, %63 : vector<32x256xi1>, vector<32x256xf32>
    %65 = arith.truncf %64 : vector<32x256xf32> to vector<32x256xbf16>
    %66 = tpu.concatenate %57, %49, %65 in 0 : vector<32x256xbf16>, vector<32x256xbf16>, vector<32x256xbf16> -> vector<96x256xbf16>
    %c1 = arith.constant 1 : index
    %c0_32 = arith.constant 0 : index
    %c0_33 = arith.constant 0 : index
    %67 = vector.load %arg5[%c1, %c0_32, %c0_33] : memref<3x32x96xbf16, #tpu.memory_space<vmem>>, vector<1x32x96xbf16>
    %68 = vector.shape_cast %67 : vector<1x32x96xbf16> to vector<32x96xbf16>
    %cst_34 = arith.constant dense<0.000000e+00> : vector<32x256xf32>
    %69 = tpu.matmul %68, %66, %cst_34 {dimension_numbers = #tpu.dot_dimension_numbers<[1], [0], [0], [1], [0, 0, 1, 1], [], []>} : vector<32x96xbf16>, vector<96x256xbf16>, vector<32x256xf32> -> vector<32x256xf32>
    %c1_35 = arith.constant 1 : index
    %c0_36 = arith.constant 0 : index
    %c0_37 = arith.constant 0 : index
    %70 = vector.load %arg6[%c1_35, %c0_36, %c0_37] : memref<3x32x1xf32, #tpu.memory_space<vmem>>, vector<1x32x1xf32>
    %71 = vector.shape_cast %70 : vector<1x32x1xf32> to vector<32x1xf32>
    %72 = vector.broadcast %71 : vector<32x1xf32> to vector<32x256xf32>
    %73 = arith.addf %69, %72 : vector<32x256xf32>
    %cst_38 = arith.constant 0.000000e+00 : f32
    %74 = vector.broadcast %cst_38 : f32 to vector<32x256xf32>
    %75 = arith.maximumf %73, %74 : vector<32x256xf32>
    %76 = arith.truncf %75 : vector<32x256xf32> to vector<32x256xbf16>
    %c1_39 = arith.constant 1 : index
    %c0_40 = arith.constant 0 : index
    %c0_41 = arith.constant 0 : index
    %77 = vector.load %arg7[%c1_39, %c0_40, %c0_41] : memref<3x32x32xbf16, #tpu.memory_space<vmem>>, vector<1x32x32xbf16>
    %78 = vector.shape_cast %77 : vector<1x32x32xbf16> to vector<32x32xbf16>
    %cst_42 = arith.constant dense<0.000000e+00> : vector<32x256xf32>
    %79 = tpu.matmul %78, %76, %cst_42 {dimension_numbers = #tpu.dot_dimension_numbers<[1], [0], [0], [1], [0, 0, 1, 1], [], []>} : vector<32x32xbf16>, vector<32x256xbf16>, vector<32x256xf32> -> vector<32x256xf32>
    %c1_43 = arith.constant 1 : index
    %c0_44 = arith.constant 0 : index
    %c0_45 = arith.constant 0 : index
    %80 = vector.load %arg8[%c1_43, %c0_44, %c0_45] : memref<3x32x1xf32, #tpu.memory_space<vmem>>, vector<1x32x1xf32>
    %81 = vector.shape_cast %80 : vector<1x32x1xf32> to vector<32x1xf32>
    %82 = vector.broadcast %81 : vector<32x1xf32> to vector<32x256xf32>
    %83 = arith.addf %79, %82 : vector<32x256xf32>
    %84 = arith.addf %48, %83 : vector<32x256xf32>
    %85 = vector.broadcast %3 : vector<1x256xf32> to vector<32x256xf32>
    %86 = arith.mulf %84, %85 : vector<32x256xf32>
    %87 = arith.truncf %86 : vector<32x256xf32> to vector<32x256xbf16>
    %c4_i32 = arith.constant 4 : i32
    %88 = vector.broadcast %c4_i32 : i32 to vector<1x256xi32>
    %89 = arith.cmpi sge, %10, %88 : vector<1x256xi32>
    %c4_i32_46 = arith.constant 4 : i32
    %90 = tpu.dynamic_rotate %86 by %c4_i32_46 dim 1 : vector<32x256xf32>, i32 -> vector<32x256xf32>
    %cst_47 = arith.constant 0.000000e+00 : f32
    %91 = vector.shape_cast %89 : vector<1x256xi1> to vector<1x256xi1>
    %92 = vector.broadcast %91 : vector<1x256xi1> to vector<32x256xi1>
    %93 = vector.broadcast %cst_47 : f32 to vector<32x256xf32>
    %94 = arith.select %92, %90, %93 : vector<32x256xi1>, vector<32x256xf32>
    %95 = arith.truncf %94 : vector<32x256xf32> to vector<32x256xbf16>
    %c252_i32 = arith.constant 252 : i32
    %96 = vector.broadcast %c252_i32 : i32 to vector<1x256xi32>
    %97 = arith.cmpi slt, %10, %96 : vector<1x256xi32>
    %c252_i32_48 = arith.constant 252 : i32
    %98 = tpu.dynamic_rotate %86 by %c252_i32_48 dim 1 : vector<32x256xf32>, i32 -> vector<32x256xf32>
    %cst_49 = arith.constant 0.000000e+00 : f32
    %99 = vector.shape_cast %97 : vector<1x256xi1> to vector<1x256xi1>
    %100 = vector.broadcast %99 : vector<1x256xi1> to vector<32x256xi1>
    %101 = vector.broadcast %cst_49 : f32 to vector<32x256xf32>
    %102 = arith.select %100, %98, %101 : vector<32x256xi1>, vector<32x256xf32>
    %103 = arith.truncf %102 : vector<32x256xf32> to vector<32x256xbf16>
    %104 = tpu.concatenate %95, %87, %103 in 0 : vector<32x256xbf16>, vector<32x256xbf16>, vector<32x256xbf16> -> vector<96x256xbf16>
    %c2 = arith.constant 2 : index
    %c0_50 = arith.constant 0 : index
    %c0_51 = arith.constant 0 : index
    %105 = vector.load %arg5[%c2, %c0_50, %c0_51] : memref<3x32x96xbf16, #tpu.memory_space<vmem>>, vector<1x32x96xbf16>
    %106 = vector.shape_cast %105 : vector<1x32x96xbf16> to vector<32x96xbf16>
    %cst_52 = arith.constant dense<0.000000e+00> : vector<32x256xf32>
    %107 = tpu.matmul %106, %104, %cst_52 {dimension_numbers = #tpu.dot_dimension_numbers<[1], [0], [0], [1], [0, 0, 1, 1], [], []>} : vector<32x96xbf16>, vector<96x256xbf16>, vector<32x256xf32> -> vector<32x256xf32>
    %c2_53 = arith.constant 2 : index
    %c0_54 = arith.constant 0 : index
    %c0_55 = arith.constant 0 : index
    %108 = vector.load %arg6[%c2_53, %c0_54, %c0_55] : memref<3x32x1xf32, #tpu.memory_space<vmem>>, vector<1x32x1xf32>
    %109 = vector.shape_cast %108 : vector<1x32x1xf32> to vector<32x1xf32>
    %110 = vector.broadcast %109 : vector<32x1xf32> to vector<32x256xf32>
    %111 = arith.addf %107, %110 : vector<32x256xf32>
    %cst_56 = arith.constant 0.000000e+00 : f32
    %112 = vector.broadcast %cst_56 : f32 to vector<32x256xf32>
    %113 = arith.maximumf %111, %112 : vector<32x256xf32>
    %114 = arith.truncf %113 : vector<32x256xf32> to vector<32x256xbf16>
    %c2_57 = arith.constant 2 : index
    %c0_58 = arith.constant 0 : index
    %c0_59 = arith.constant 0 : index
    %115 = vector.load %arg7[%c2_57, %c0_58, %c0_59] : memref<3x32x32xbf16, #tpu.memory_space<vmem>>, vector<1x32x32xbf16>
    %116 = vector.shape_cast %115 : vector<1x32x32xbf16> to vector<32x32xbf16>
    %cst_60 = arith.constant dense<0.000000e+00> : vector<32x256xf32>
    %117 = tpu.matmul %116, %114, %cst_60 {dimension_numbers = #tpu.dot_dimension_numbers<[1], [0], [0], [1], [0, 0, 1, 1], [], []>} : vector<32x32xbf16>, vector<32x256xbf16>, vector<32x256xf32> -> vector<32x256xf32>
    %c2_61 = arith.constant 2 : index
    %c0_62 = arith.constant 0 : index
    %c0_63 = arith.constant 0 : index
    %118 = vector.load %arg8[%c2_61, %c0_62, %c0_63] : memref<3x32x1xf32, #tpu.memory_space<vmem>>, vector<1x32x1xf32>
    %119 = vector.shape_cast %118 : vector<1x32x1xf32> to vector<32x1xf32>
    %120 = vector.broadcast %119 : vector<32x1xf32> to vector<32x256xf32>
    %121 = arith.addf %117, %120 : vector<32x256xf32>
    %122 = arith.addf %86, %121 : vector<32x256xf32>
    %123 = vector.broadcast %3 : vector<1x256xf32> to vector<32x256xf32>
    %124 = arith.mulf %122, %123 : vector<32x256xf32>
    %c0_64 = arith.constant 0 : index
    %c0_65 = arith.constant 0 : index
    %c0_66 = arith.constant 0 : index
    %125 = vector.load %arg9[%c0_64, %c0_65, %c0_66] : memref<1x32x256xf32, #tpu.memory_space<vmem>>, vector<1x32x256xf32>
    %126 = vector.shape_cast %125 : vector<1x32x256xf32> to vector<32x256xf32>
    %127 = vector.shape_cast %124 : vector<32x256xf32> to vector<1x32x256xf32>
    tpu.vector_store %arg9[%c0_64, %c0_65, %c0_66], %127 {strides = array<i32>} : memref<1x32x256xf32, #tpu.memory_space<vmem>>, vector<1x32x256xf32>,
    return
  }
  func.func @transform_0(%arg0: i32) -> (i32, i32, i32) {
    %c0_i32 = arith.constant 0 : i32
    %c0_i32_0 = arith.constant 0 : i32
    %c0_i32_1 = arith.constant 0 : i32
    return %arg0, %c0_i32, %c0_i32_0 : i32, i32, i32
  }
  func.func @transform_1(%arg0: i32) -> (i32, i32, i32) {
    %c0_i32 = arith.constant 0 : i32
    %c0_i32_0 = arith.constant 0 : i32
    %c0_i32_1 = arith.constant 0 : i32
    return %arg0, %c0_i32, %c0_i32_0 : i32, i32, i32
  }
  func.func @transform_2(%arg0: i32) -> (i32, i32) {
    %c0_i32 = arith.constant 0 : i32
    %c0_i32_0 = arith.constant 0 : i32
    %c0_i32_1 = arith.constant 0 : i32
    return %c0_i32, %c0_i32_0 : i32, i32
  }
  func.func @transform_3(%arg0: i32) -> (i32, i32) {
    %c0_i32 = arith.constant 0 : i32
    %c0_i32_0 = arith.constant 0 : i32
    %c0_i32_1 = arith.constant 0 : i32
    return %c0_i32, %c0_i32_0 : i32, i32
  }
  func.func @transform_4(%arg0: i32) -> (i32, i32, i32) {
    %c0_i32 = arith.constant 0 : i32
    %c0_i32_0 = arith.constant 0 : i32
    %c0_i32_1 = arith.constant 0 : i32
    %c0_i32_2 = arith.constant 0 : i32
    return %c0_i32, %c0_i32_0, %c0_i32_1 : i32, i32, i32
  }
  func.func @transform_5(%arg0: i32) -> (i32, i32, i32) {
    %c0_i32 = arith.constant 0 : i32
    %c0_i32_0 = arith.constant 0 : i32
    %c0_i32_1 = arith.constant 0 : i32
    %c0_i32_2 = arith.constant 0 : i32
    return %c0_i32, %c0_i32_0, %c0_i32_1 : i32, i32, i32
  }
  func.func @transform_6(%arg0: i32) -> (i32, i32, i32) {
    %c0_i32 = arith.constant 0 : i32
    %c0_i32_0 = arith.constant 0 : i32
    %c0_i32_1 = arith.constant 0 : i32
    %c0_i32_2 = arith.constant 0 : i32
    return %c0_i32, %c0_i32_0, %c0_i32_1 : i32, i32, i32
  }
  func.func @transform_7(%arg0: i32) -> (i32, i32, i32) {
    %c0_i32 = arith.constant 0 : i32
    %c0_i32_0 = arith.constant 0 : i32
    %c0_i32_1 = arith.constant 0 : i32
    %c0_i32_2 = arith.constant 0 : i32
    return %c0_i32, %c0_i32_0, %c0_i32_1 : i32, i32, i32
  }
  func.func @transform_8(%arg0: i32) -> (i32, i32, i32) {
    %c0_i32 = arith.constant 0 : i32
    %c0_i32_0 = arith.constant 0 : i32
    %c0_i32_1 = arith.constant 0 : i32
    return %arg0, %c0_i32, %c0_i32_0 : i32, i32, i32
  }
}

module attributes {stable_mosaic.version = 11 : i64} {
  func.func @_stage_kernel(%arg0: i32, %arg1: memref<1x16x256xf32, #tpu.memory_space<vmem>>, %arg2: memref<1x1x256xf32, #tpu.memory_space<vmem>>, %arg3: memref<32x16xbf16, #tpu.memory_space<vmem>>, %arg4: memref<32x1xf32, #tpu.memory_space<vmem>>, %arg5: memref<3x32x96xbf16, #tpu.memory_space<vmem>>, %arg6: memref<3x32x1xf32, #tpu.memory_space<vmem>>, %arg7: memref<3x32x32xbf16, #tpu.memory_space<vmem>>, %arg8: memref<3x32x1xf32, #tpu.memory_space<vmem>>, %arg9: memref<1x32x256xf32, #tpu.memory_space<vmem>>) attributes {dimension_semantics = [#tpu.dimension_semantics<parallel>], iteration_bounds = array<i64: 2>, scalar_prefetch = 0 : i64, scratch_operands = 0 : i64, tpu.core_type = #tpu.core_type<tc>, window_params = [{transform_indices = @transform_0, window_bounds = array<i64: 1, 16, 256>}, {transform_indices = @transform_1, window_bounds = array<i64: 1, 1, 256>}, {pipeline_mode = #tpu.pipeline_mode<synchronous>, transform_indices = @transform_2, window_bounds = array<i64: 32, 16>}, {pipeline_mode = #tpu.pipeline_mode<synchronous>, transform_indices = @transform_3, window_bounds = array<i64: 32, 1>}, {pipeline_mode = #tpu.pipeline_mode<synchronous>, transform_indices = @transform_4, window_bounds = array<i64: 3, 32, 96>}, {pipeline_mode = #tpu.pipeline_mode<synchronous>, transform_indices = @transform_5, window_bounds = array<i64: 3, 32, 1>}, {pipeline_mode = #tpu.pipeline_mode<synchronous>, transform_indices = @transform_6, window_bounds = array<i64: 3, 32, 32>}, {pipeline_mode = #tpu.pipeline_mode<synchronous>, transform_indices = @transform_7, window_bounds = array<i64: 3, 32, 1>}, {transform_indices = @transform_8, window_bounds = array<i64: 1, 32, 256>}]} {
    %c0 = arith.constant 0 : index
    %c0_0 = arith.constant 0 : index
    %c0_1 = arith.constant 0 : index
    %0 = vector.load %arg1[%c0, %c0_0, %c0_1] : memref<1x16x256xf32, #tpu.memory_space<vmem>>, vector<1x16x256xf32>
    %1 = vector.shape_cast %0 : vector<1x16x256xf32> to vector<16x256xf32>
    %c0_2 = arith.constant 0 : index
    %c0_3 = arith.constant 0 : index
    %c0_4 = arith.constant 0 : index
    %2 = vector.load %arg2[%c0_2, %c0_3, %c0_4] : memref<1x1x256xf32, #tpu.memory_space<vmem>>, vector<1x1x256xf32>
    %3 = vector.shape_cast %2 : vector<1x1x256xf32> to vector<1x256xf32>
    %c0_5 = arith.constant 0 : index
    %c0_6 = arith.constant 0 : index
    %4 = vector.load %arg3[%c0_5, %c0_6] : memref<32x16xbf16, #tpu.memory_space<vmem>>, vector<32x16xbf16>
    %5 = arith.truncf %1 : vector<16x256xf32> to vector<16x256xbf16>
    %cst = arith.constant dense<0.000000e+00> : vector<32x256xf32>
    %6 = tpu.matmul %4, %5, %cst {dimension_numbers = #tpu.dot_dimension_numbers<[1], [0], [0], [1], [0, 0, 1, 1], [], []>} : vector<32x16xbf16>, vector<16x256xbf16>, vector<32x256xf32> -> vector<32x256xf32>
    %c0_7 = arith.constant 0 : index
    %c0_8 = arith.constant 0 : index
    %7 = vector.load %arg4[%c0_7, %c0_8] : memref<32x1xf32, #tpu.memory_space<vmem>>, vector<32x1xf32>
    %8 = vector.broadcast %7 : vector<32x1xf32> to vector<32x256xf32>
    %9 = arith.addf %6, %8 : vector<32x256xf32>
    %10 = tpu.iota {dimensions = array<i32: 1>} : vector<1x256xi32>
    %11 = arith.truncf %9 : vector<32x256xf32> to vector<32x256xbf16>
    %c1_i32 = arith.constant 1 : i32
    %12 = vector.broadcast %c1_i32 : i32 to vector<1x256xi32>
    %13 = arith.cmpi sge, %10, %12 : vector<1x256xi32>
    %c1_i32_9 = arith.constant 1 : i32
    %14 = tpu.dynamic_rotate %9 by %c1_i32_9 dim 1 : vector<32x256xf32>, i32 -> vector<32x256xf32>
    %cst_10 = arith.constant 0.000000e+00 : f32
    %15 = vector.shape_cast %13 : vector<1x256xi1> to vector<1x256xi1>
    %16 = vector.broadcast %15 : vector<1x256xi1> to vector<32x256xi1>
    %17 = vector.broadcast %cst_10 : f32 to vector<32x256xf32>
    %18 = arith.select %16, %14, %17 : vector<32x256xi1>, vector<32x256xf32>
    %19 = arith.truncf %18 : vector<32x256xf32> to vector<32x256xbf16>
    %c255_i32 = arith.constant 255 : i32
    %20 = vector.broadcast %c255_i32 : i32 to vector<1x256xi32>
    %21 = arith.cmpi slt, %10, %20 : vector<1x256xi32>
    %c255_i32_11 = arith.constant 255 : i32
    %22 = tpu.dynamic_rotate %9 by %c255_i32_11 dim 1 : vector<32x256xf32>, i32 -> vector<32x256xf32>
    %cst_12 = arith.constant 0.000000e+00 : f32
    %23 = vector.shape_cast %21 : vector<1x256xi1> to vector<1x256xi1>
    %24 = vector.broadcast %23 : vector<1x256xi1> to vector<32x256xi1>
    %25 = vector.broadcast %cst_12 : f32 to vector<32x256xf32>
    %26 = arith.select %24, %22, %25 : vector<32x256xi1>, vector<32x256xf32>
    %27 = arith.truncf %26 : vector<32x256xf32> to vector<32x256xbf16>
    %28 = tpu.concatenate %19, %11, %27 in 0 : vector<32x256xbf16>, vector<32x256xbf16>, vector<32x256xbf16> -> vector<96x256xbf16>
    %c0_13 = arith.constant 0 : index
    %c0_14 = arith.constant 0 : index
    %c0_15 = arith.constant 0 : index
    %29 = vector.load %arg5[%c0_13, %c0_14, %c0_15] : memref<3x32x96xbf16, #tpu.memory_space<vmem>>, vector<1x32x96xbf16>
    %30 = vector.shape_cast %29 : vector<1x32x96xbf16> to vector<32x96xbf16>
    %cst_16 = arith.constant dense<0.000000e+00> : vector<32x256xf32>
    %31 = tpu.matmul %30, %28, %cst_16 {dimension_numbers = #tpu.dot_dimension_numbers<[1], [0], [0], [1], [0, 0, 1, 1], [], []>} : vector<32x96xbf16>, vector<96x256xbf16>, vector<32x256xf32> -> vector<32x256xf32>
    %c0_17 = arith.constant 0 : index
    %c0_18 = arith.constant 0 : index
    %c0_19 = arith.constant 0 : index
    %32 = vector.load %arg6[%c0_17, %c0_18, %c0_19] : memref<3x32x1xf32, #tpu.memory_space<vmem>>, vector<1x32x1xf32>
    %33 = vector.shape_cast %32 : vector<1x32x1xf32> to vector<32x1xf32>
    %34 = vector.broadcast %33 : vector<32x1xf32> to vector<32x256xf32>
    %35 = arith.addf %31, %34 : vector<32x256xf32>
    %cst_20 = arith.constant 0.000000e+00 : f32
    %36 = vector.broadcast %cst_20 : f32 to vector<32x256xf32>
    %37 = arith.maximumf %35, %36 : vector<32x256xf32>
    %38 = arith.truncf %37 : vector<32x256xf32> to vector<32x256xbf16>
    %c0_21 = arith.constant 0 : index
    %c0_22 = arith.constant 0 : index
    %c0_23 = arith.constant 0 : index
    %39 = vector.load %arg7[%c0_21, %c0_22, %c0_23] : memref<3x32x32xbf16, #tpu.memory_space<vmem>>, vector<1x32x32xbf16>
    %40 = vector.shape_cast %39 : vector<1x32x32xbf16> to vector<32x32xbf16>
    %cst_24 = arith.constant dense<0.000000e+00> : vector<32x256xf32>
    %41 = tpu.matmul %40, %38, %cst_24 {dimension_numbers = #tpu.dot_dimension_numbers<[1], [0], [0], [1], [0, 0, 1, 1], [], []>} : vector<32x32xbf16>, vector<32x256xbf16>, vector<32x256xf32> -> vector<32x256xf32>
    %c0_25 = arith.constant 0 : index
    %c0_26 = arith.constant 0 : index
    %c0_27 = arith.constant 0 : index
    %42 = vector.load %arg8[%c0_25, %c0_26, %c0_27] : memref<3x32x1xf32, #tpu.memory_space<vmem>>, vector<1x32x1xf32>
    %43 = vector.shape_cast %42 : vector<1x32x1xf32> to vector<32x1xf32>
    %44 = vector.broadcast %43 : vector<32x1xf32> to vector<32x256xf32>
    %45 = arith.addf %41, %44 : vector<32x256xf32>
    %46 = arith.addf %9, %45 : vector<32x256xf32>
    %47 = vector.broadcast %3 : vector<1x256xf32> to vector<32x256xf32>
    %48 = arith.mulf %46, %47 : vector<32x256xf32>
    %49 = arith.truncf %48 : vector<32x256xf32> to vector<32x256xbf16>
    %c2_i32 = arith.constant 2 : i32
    %50 = vector.broadcast %c2_i32 : i32 to vector<1x256xi32>
    %51 = arith.cmpi sge, %10, %50 : vector<1x256xi32>
    %c2_i32_28 = arith.constant 2 : i32
    %52 = tpu.dynamic_rotate %48 by %c2_i32_28 dim 1 : vector<32x256xf32>, i32 -> vector<32x256xf32>
    %cst_29 = arith.constant 0.000000e+00 : f32
    %53 = vector.shape_cast %51 : vector<1x256xi1> to vector<1x256xi1>
    %54 = vector.broadcast %53 : vector<1x256xi1> to vector<32x256xi1>
    %55 = vector.broadcast %cst_29 : f32 to vector<32x256xf32>
    %56 = arith.select %54, %52, %55 : vector<32x256xi1>, vector<32x256xf32>
    %57 = arith.truncf %56 : vector<32x256xf32> to vector<32x256xbf16>
    %c254_i32 = arith.constant 254 : i32
    %58 = vector.broadcast %c254_i32 : i32 to vector<1x256xi32>
    %59 = arith.cmpi slt, %10, %58 : vector<1x256xi32>
    %c254_i32_30 = arith.constant 254 : i32
    %60 = tpu.dynamic_rotate %48 by %c254_i32_30 dim 1 : vector<32x256xf32>, i32 -> vector<32x256xf32>
    %cst_31 = arith.constant 0.000000e+00 : f32
    %61 = vector.shape_cast %59 : vector<1x256xi1> to vector<1x256xi1>
    %62 = vector.broadcast %61 : vector<1x256xi1> to vector<32x256xi1>
    %63 = vector.broadcast %cst_31 : f32 to vector<32x256xf32>
    %64 = arith.select %62, %60, %63 : vector<32x256xi1>, vector<32x256xf32>
    %65 = arith.truncf %64 : vector<32x256xf32> to vector<32x256xbf16>
    %66 = tpu.concatenate %57, %49, %65 in 0 : vector<32x256xbf16>, vector<32x256xbf16>, vector<32x256xbf16> -> vector<96x256xbf16>
    %c1 = arith.constant 1 : index
    %c0_32 = arith.constant 0 : index
    %c0_33 = arith.constant 0 : index
    %67 = vector.load %arg5[%c1, %c0_32, %c0_33] : memref<3x32x96xbf16, #tpu.memory_space<vmem>>, vector<1x32x96xbf16>
    %68 = vector.shape_cast %67 : vector<1x32x96xbf16> to vector<32x96xbf16>
    %cst_34 = arith.constant dense<0.000000e+00> : vector<32x256xf32>
    %69 = tpu.matmul %68, %66, %cst_34 {dimension_numbers = #tpu.dot_dimension_numbers<[1], [0], [0], [1], [0, 0, 1, 1], [], []>} : vector<32x96xbf16>, vector<96x256xbf16>, vector<32x256xf32> -> vector<32x256xf32>
    %c1_35 = arith.constant 1 : index
    %c0_36 = arith.constant 0 : index
    %c0_37 = arith.constant 0 : index
    %70 = vector.load %arg6[%c1_35, %c0_36, %c0_37] : memref<3x32x1xf32, #tpu.memory_space<vmem>>, vector<1x32x1xf32>
    %71 = vector.shape_cast %70 : vector<1x32x1xf32> to vector<32x1xf32>
    %72 = vector.broadcast %71 : vector<32x1xf32> to vector<32x256xf32>
    %73 = arith.addf %69, %72 : vector<32x256xf32>
    %cst_38 = arith.constant 0.000000e+00 : f32
    %74 = vector.broadcast %cst_38 : f32 to vector<32x256xf32>
    %75 = arith.maximumf %73, %74 : vector<32x256xf32>
    %76 = arith.truncf %75 : vector<32x256xf32> to vector<32x256xbf16>
    %c1_39 = arith.constant 1 : index
    %c0_40 = arith.constant 0 : index
    %c0_41 = arith.constant 0 : index
    %77 = vector.load %arg7[%c1_39, %c0_40, %c0_41] : memref<3x32x32xbf16, #tpu.memory_space<vmem>>, vector<1x32x32xbf16>
    %78 = vector.shape_cast %77 : vector<1x32x32xbf16> to vector<32x32xbf16>
    %cst_42 = arith.constant dense<0.000000e+00> : vector<32x256xf32>
    %79 = tpu.matmul %78, %76, %cst_42 {dimension_numbers = #tpu.dot_dimension_numbers<[1], [0], [0], [1], [0, 0, 1, 1], [], []>} : vector<32x32xbf16>, vector<32x256xbf16>, vector<32x256xf32> -> vector<32x256xf32>
    %c1_43 = arith.constant 1 : index
    %c0_44 = arith.constant 0 : index
    %c0_45 = arith.constant 0 : index
    %80 = vector.load %arg8[%c1_43, %c0_44, %c0_45] : memref<3x32x1xf32, #tpu.memory_space<vmem>>, vector<1x32x1xf32>
    %81 = vector.shape_cast %80 : vector<1x32x1xf32> to vector<32x1xf32>
    %82 = vector.broadcast %81 : vector<32x1xf32> to vector<32x256xf32>
    %83 = arith.addf %79, %82 : vector<32x256xf32>
    %84 = arith.addf %48, %83 : vector<32x256xf32>
    %85 = vector.broadcast %3 : vector<1x256xf32> to vector<32x256xf32>
    %86 = arith.mulf %84, %85 : vector<32x256xf32>
    %87 = arith.truncf %86 : vector<32x256xf32> to vector<32x256xbf16>
    %c4_i32 = arith.constant 4 : i32
    %88 = vector.broadcast %c4_i32 : i32 to vector<1x256xi32>
    %89 = arith.cmpi sge, %10, %88 : vector<1x256xi32>
    %c4_i32_46 = arith.constant 4 : i32
    %90 = tpu.dynamic_rotate %86 by %c4_i32_46 dim 1 : vector<32x256xf32>, i32 -> vector<32x256xf32>
    %cst_47 = arith.constant 0.000000e+00 : f32
    %91 = vector.shape_cast %89 : vector<1x256xi1> to vector<1x256xi1>
    %92 = vector.broadcast %91 : vector<1x256xi1> to vector<32x256xi1>
    %93 = vector.broadcast %cst_47 : f32 to vector<32x256xf32>
    %94 = arith.select %92, %90, %93 : vector<32x256xi1>, vector<32x256xf32>
    %95 = arith.truncf %94 : vector<32x256xf32> to vector<32x256xbf16>
    %c252_i32 = arith.constant 252 : i32
    %96 = vector.broadcast %c252_i32 : i32 to vector<1x256xi32>
    %97 = arith.cmpi slt, %10, %96 : vector<1x256xi32>
    %c252_i32_48 = arith.constant 252 : i32
    %98 = tpu.dynamic_rotate %86 by %c252_i32_48 dim 1 : vector<32x256xf32>, i32 -> vector<32x256xf32>
    %cst_49 = arith.constant 0.000000e+00 : f32
    %99 = vector.shape_cast %97 : vector<1x256xi1> to vector<1x256xi1>
    %100 = vector.broadcast %99 : vector<1x256xi1> to vector<32x256xi1>
    %101 = vector.broadcast %cst_49 : f32 to vector<32x256xf32>
    %102 = arith.select %100, %98, %101 : vector<32x256xi1>, vector<32x256xf32>
    %103 = arith.truncf %102 : vector<32x256xf32> to vector<32x256xbf16>
    %104 = tpu.concatenate %95, %87, %103 in 0 : vector<32x256xbf16>, vector<32x256xbf16>, vector<32x256xbf16> -> vector<96x256xbf16>
    %c2 = arith.constant 2 : index
    %c0_50 = arith.constant 0 : index
    %c0_51 = arith.constant 0 : index
    %105 = vector.load %arg5[%c2, %c0_50, %c0_51] : memref<3x32x96xbf16, #tpu.memory_space<vmem>>, vector<1x32x96xbf16>
    %106 = vector.shape_cast %105 : vector<1x32x96xbf16> to vector<32x96xbf16>
    %cst_52 = arith.constant dense<0.000000e+00> : vector<32x256xf32>
    %107 = tpu.matmul %106, %104, %cst_52 {dimension_numbers = #tpu.dot_dimension_numbers<[1], [0], [0], [1], [0, 0, 1, 1], [], []>} : vector<32x96xbf16>, vector<96x256xbf16>, vector<32x256xf32> -> vector<32x256xf32>
    %c2_53 = arith.constant 2 : index
    %c0_54 = arith.constant 0 : index
    %c0_55 = arith.constant 0 : index
    %108 = vector.load %arg6[%c2_53, %c0_54, %c0_55] : memref<3x32x1xf32, #tpu.memory_space<vmem>>, vector<1x32x1xf32>
    %109 = vector.shape_cast %108 : vector<1x32x1xf32> to vector<32x1xf32>
    %110 = vector.broadcast %109 : vector<32x1xf32> to vector<32x256xf32>
    %111 = arith.addf %107, %110 : vector<32x256xf32>
    %cst_56 = arith.constant 0.000000e+00 : f32
    %112 = vector.broadcast %cst_56 : f32 to vector<32x256xf32>
    %113 = arith.maximumf %111, %112 : vector<32x256xf32>
    %114 = arith.truncf %113 : vector<32x256xf32> to vector<32x256xbf16>
    %c2_57 = arith.constant 2 : index
    %c0_58 = arith.constant 0 : index
    %c0_59 = arith.constant 0 : index
    %115 = vector.load %arg7[%c2_57, %c0_58, %c0_59] : memref<3x32x32xbf16, #tpu.memory_space<vmem>>, vector<1x32x32xbf16>
    %116 = vector.shape_cast %115 : vector<1x32x32xbf16> to vector<32x32xbf16>
    %cst_60 = arith.constant dense<0.000000e+00> : vector<32x256xf32>
    %117 = tpu.matmul %116, %114, %cst_60 {dimension_numbers = #tpu.dot_dimension_numbers<[1], [0], [0], [1], [0, 0, 1, 1], [], []>} : vector<32x32xbf16>, vector<32x256xbf16>, vector<32x256xf32> -> vector<32x256xf32>
    %c2_61 = arith.constant 2 : index
    %c0_62 = arith.constant 0 : index
    %c0_63 = arith.constant 0 : index
    %118 = vector.load %arg8[%c2_61, %c0_62, %c0_63] : memref<3x32x1xf32, #tpu.memory_space<vmem>>, vector<1x32x1xf32>
    %119 = vector.shape_cast %118 : vector<1x32x1xf32> to vector<32x1xf32>
    %120 = vector.broadcast %119 : vector<32x1xf32> to vector<32x256xf32>
    %121 = arith.addf %117, %120 : vector<32x256xf32>
    %122 = arith.addf %86, %121 : vector<32x256xf32>
    %123 = vector.broadcast %3 : vector<1x256xf32> to vector<32x256xf32>
    %124 = arith.mulf %122, %123 : vector<32x256xf32>
    %c0_64 = arith.constant 0 : index
    %c0_65 = arith.constant 0 : index
    %c0_66 = arith.constant 0 : index
    %125 = vector.load %arg9[%c0_64, %c0_65, %c0_66] : memref<1x32x256xf32, #tpu.memory_space<vmem>>, vector<1x32x256xf32>
    %126 = vector.shape_cast %125 : vector<1x32x256xf32> to vector<32x256xf32>
    %127 = vector.shape_cast %124 : vector<32x256xf32> to vector<1x32x256xf32>
    tpu.vector_store %arg9[%c0_64, %c0_65, %c0_66], %127 {strides = array<i32>} : memref<1x32x256xf32, #tpu.memory_space<vmem>>, vector<1x32x256xf32>,
    return
  }
  func.func @transform_0(%arg0: i32) -> (i32, i32, i32) {
    %c0_i32 = arith.constant 0 : i32
    %c0_i32_0 = arith.constant 0 : i32
    %c0_i32_1 = arith.constant 0 : i32
    return %arg0, %c0_i32, %c0_i32_0 : i32, i32, i32
  }
  func.func @transform_1(%arg0: i32) -> (i32, i32, i32) {
    %c0_i32 = arith.constant 0 : i32
    %c0_i32_0 = arith.constant 0 : i32
    %c0_i32_1 = arith.constant 0 : i32
    return %arg0, %c0_i32, %c0_i32_0 : i32, i32, i32
  }
  func.func @transform_2(%arg0: i32) -> (i32, i32) {
    %c0_i32 = arith.constant 0 : i32
    %c0_i32_0 = arith.constant 0 : i32
    %c0_i32_1 = arith.constant 0 : i32
    return %c0_i32, %c0_i32_0 : i32, i32
  }
  func.func @transform_3(%arg0: i32) -> (i32, i32) {
    %c0_i32 = arith.constant 0 : i32
    %c0_i32_0 = arith.constant 0 : i32
    %c0_i32_1 = arith.constant 0 : i32
    return %c0_i32, %c0_i32_0 : i32, i32
  }
  func.func @transform_4(%arg0: i32) -> (i32, i32, i32) {
    %c0_i32 = arith.constant 0 : i32
    %c0_i32_0 = arith.constant 0 : i32
    %c0_i32_1 = arith.constant 0 : i32
    %c0_i32_2 = arith.constant 0 : i32
    return %c0_i32, %c0_i32_0, %c0_i32_1 : i32, i32, i32
  }
  func.func @transform_5(%arg0: i32) -> (i32, i32, i32) {
    %c0_i32 = arith.constant 0 : i32
    %c0_i32_0 = arith.constant 0 : i32
    %c0_i32_1 = arith.constant 0 : i32
    %c0_i32_2 = arith.constant 0 : i32
    return %c0_i32, %c0_i32_0, %c0_i32_1 : i32, i32, i32
  }
  func.func @transform_6(%arg0: i32) -> (i32, i32, i32) {
    %c0_i32 = arith.constant 0 : i32
    %c0_i32_0 = arith.constant 0 : i32
    %c0_i32_1 = arith.constant 0 : i32
    %c0_i32_2 = arith.constant 0 : i32
    return %c0_i32, %c0_i32_0, %c0_i32_1 : i32, i32, i32
  }
  func.func @transform_7(%arg0: i32) -> (i32, i32, i32) {
    %c0_i32 = arith.constant 0 : i32
    %c0_i32_0 = arith.constant 0 : i32
    %c0_i32_1 = arith.constant 0 : i32
    %c0_i32_2 = arith.constant 0 : i32
    return %c0_i32, %c0_i32_0, %c0_i32_1 : i32, i32, i32
  }
  func.func @transform_8(%arg0: i32) -> (i32, i32, i32) {
    %c0_i32 = arith.constant 0 : i32
    %c0_i32_0 = arith.constant 0 : i32
    %c0_i32_1 = arith.constant 0 : i32
    return %arg0, %c0_i32, %c0_i32_0 : i32, i32, i32
  }
}

module attributes {stable_mosaic.version = 11 : i64} {
  func.func @_stage_kernel(%arg0: i32, %arg1: memref<1x32x256xf32, #tpu.memory_space<vmem>>, %arg2: memref<1x1x256xf32, #tpu.memory_space<vmem>>, %arg3: memref<32x32xbf16, #tpu.memory_space<vmem>>, %arg4: memref<32x1xf32, #tpu.memory_space<vmem>>, %arg5: memref<3x32x96xbf16, #tpu.memory_space<vmem>>, %arg6: memref<3x32x1xf32, #tpu.memory_space<vmem>>, %arg7: memref<3x32x32xbf16, #tpu.memory_space<vmem>>, %arg8: memref<3x32x1xf32, #tpu.memory_space<vmem>>, %arg9: memref<1x32x256xf32, #tpu.memory_space<vmem>>) attributes {dimension_semantics = [#tpu.dimension_semantics<parallel>], iteration_bounds = array<i64: 2>, scalar_prefetch = 0 : i64, scratch_operands = 0 : i64, tpu.core_type = #tpu.core_type<tc>, window_params = [{transform_indices = @transform_0, window_bounds = array<i64: 1, 32, 256>}, {transform_indices = @transform_1, window_bounds = array<i64: 1, 1, 256>}, {pipeline_mode = #tpu.pipeline_mode<synchronous>, transform_indices = @transform_2, window_bounds = array<i64: 32, 32>}, {pipeline_mode = #tpu.pipeline_mode<synchronous>, transform_indices = @transform_3, window_bounds = array<i64: 32, 1>}, {pipeline_mode = #tpu.pipeline_mode<synchronous>, transform_indices = @transform_4, window_bounds = array<i64: 3, 32, 96>}, {pipeline_mode = #tpu.pipeline_mode<synchronous>, transform_indices = @transform_5, window_bounds = array<i64: 3, 32, 1>}, {pipeline_mode = #tpu.pipeline_mode<synchronous>, transform_indices = @transform_6, window_bounds = array<i64: 3, 32, 32>}, {pipeline_mode = #tpu.pipeline_mode<synchronous>, transform_indices = @transform_7, window_bounds = array<i64: 3, 32, 1>}, {transform_indices = @transform_8, window_bounds = array<i64: 1, 32, 256>}]} {
    %c0 = arith.constant 0 : index
    %c0_0 = arith.constant 0 : index
    %c0_1 = arith.constant 0 : index
    %0 = vector.load %arg1[%c0, %c0_0, %c0_1] : memref<1x32x256xf32, #tpu.memory_space<vmem>>, vector<1x32x256xf32>
    %1 = vector.shape_cast %0 : vector<1x32x256xf32> to vector<32x256xf32>
    %c0_2 = arith.constant 0 : index
    %c0_3 = arith.constant 0 : index
    %c0_4 = arith.constant 0 : index
    %2 = vector.load %arg2[%c0_2, %c0_3, %c0_4] : memref<1x1x256xf32, #tpu.memory_space<vmem>>, vector<1x1x256xf32>
    %3 = vector.shape_cast %2 : vector<1x1x256xf32> to vector<1x256xf32>
    %4 = vector.broadcast %3 : vector<1x256xf32> to vector<32x256xf32>
    %5 = arith.mulf %1, %4 : vector<32x256xf32>
    %c0_5 = arith.constant 0 : index
    %c0_6 = arith.constant 0 : index
    %6 = vector.load %arg3[%c0_5, %c0_6] : memref<32x32xbf16, #tpu.memory_space<vmem>>, vector<32x32xbf16>
    %7 = arith.truncf %5 : vector<32x256xf32> to vector<32x256xbf16>
    %cst = arith.constant dense<0.000000e+00> : vector<32x256xf32>
    %8 = tpu.matmul %6, %7, %cst {dimension_numbers = #tpu.dot_dimension_numbers<[1], [0], [0], [1], [0, 0, 1, 1], [], []>} : vector<32x32xbf16>, vector<32x256xbf16>, vector<32x256xf32> -> vector<32x256xf32>
    %c0_7 = arith.constant 0 : index
    %c0_8 = arith.constant 0 : index
    %9 = vector.load %arg4[%c0_7, %c0_8] : memref<32x1xf32, #tpu.memory_space<vmem>>, vector<32x1xf32>
    %10 = vector.broadcast %9 : vector<32x1xf32> to vector<32x256xf32>
    %11 = arith.addf %8, %10 : vector<32x256xf32>
    %12 = tpu.iota {dimensions = array<i32: 1>} : vector<1x256xi32>
    %13 = arith.truncf %11 : vector<32x256xf32> to vector<32x256xbf16>
    %c1_i32 = arith.constant 1 : i32
    %14 = vector.broadcast %c1_i32 : i32 to vector<1x256xi32>
    %15 = arith.cmpi sge, %12, %14 : vector<1x256xi32>
    %c1_i32_9 = arith.constant 1 : i32
    %16 = tpu.dynamic_rotate %11 by %c1_i32_9 dim 1 : vector<32x256xf32>, i32 -> vector<32x256xf32>
    %cst_10 = arith.constant 0.000000e+00 : f32
    %17 = vector.shape_cast %15 : vector<1x256xi1> to vector<1x256xi1>
    %18 = vector.broadcast %17 : vector<1x256xi1> to vector<32x256xi1>
    %19 = vector.broadcast %cst_10 : f32 to vector<32x256xf32>
    %20 = arith.select %18, %16, %19 : vector<32x256xi1>, vector<32x256xf32>
    %21 = arith.truncf %20 : vector<32x256xf32> to vector<32x256xbf16>
    %c255_i32 = arith.constant 255 : i32
    %22 = vector.broadcast %c255_i32 : i32 to vector<1x256xi32>
    %23 = arith.cmpi slt, %12, %22 : vector<1x256xi32>
    %c255_i32_11 = arith.constant 255 : i32
    %24 = tpu.dynamic_rotate %11 by %c255_i32_11 dim 1 : vector<32x256xf32>, i32 -> vector<32x256xf32>
    %cst_12 = arith.constant 0.000000e+00 : f32
    %25 = vector.shape_cast %23 : vector<1x256xi1> to vector<1x256xi1>
    %26 = vector.broadcast %25 : vector<1x256xi1> to vector<32x256xi1>
    %27 = vector.broadcast %cst_12 : f32 to vector<32x256xf32>
    %28 = arith.select %26, %24, %27 : vector<32x256xi1>, vector<32x256xf32>
    %29 = arith.truncf %28 : vector<32x256xf32> to vector<32x256xbf16>
    %30 = tpu.concatenate %21, %13, %29 in 0 : vector<32x256xbf16>, vector<32x256xbf16>, vector<32x256xbf16> -> vector<96x256xbf16>
    %c0_13 = arith.constant 0 : index
    %c0_14 = arith.constant 0 : index
    %c0_15 = arith.constant 0 : index
    %31 = vector.load %arg5[%c0_13, %c0_14, %c0_15] : memref<3x32x96xbf16, #tpu.memory_space<vmem>>, vector<1x32x96xbf16>
    %32 = vector.shape_cast %31 : vector<1x32x96xbf16> to vector<32x96xbf16>
    %cst_16 = arith.constant dense<0.000000e+00> : vector<32x256xf32>
    %33 = tpu.matmul %32, %30, %cst_16 {dimension_numbers = #tpu.dot_dimension_numbers<[1], [0], [0], [1], [0, 0, 1, 1], [], []>} : vector<32x96xbf16>, vector<96x256xbf16>, vector<32x256xf32> -> vector<32x256xf32>
    %c0_17 = arith.constant 0 : index
    %c0_18 = arith.constant 0 : index
    %c0_19 = arith.constant 0 : index
    %34 = vector.load %arg6[%c0_17, %c0_18, %c0_19] : memref<3x32x1xf32, #tpu.memory_space<vmem>>, vector<1x32x1xf32>
    %35 = vector.shape_cast %34 : vector<1x32x1xf32> to vector<32x1xf32>
    %36 = vector.broadcast %35 : vector<32x1xf32> to vector<32x256xf32>
    %37 = arith.addf %33, %36 : vector<32x256xf32>
    %cst_20 = arith.constant 0.000000e+00 : f32
    %38 = vector.broadcast %cst_20 : f32 to vector<32x256xf32>
    %39 = arith.maximumf %37, %38 : vector<32x256xf32>
    %40 = arith.truncf %39 : vector<32x256xf32> to vector<32x256xbf16>
    %c0_21 = arith.constant 0 : index
    %c0_22 = arith.constant 0 : index
    %c0_23 = arith.constant 0 : index
    %41 = vector.load %arg7[%c0_21, %c0_22, %c0_23] : memref<3x32x32xbf16, #tpu.memory_space<vmem>>, vector<1x32x32xbf16>
    %42 = vector.shape_cast %41 : vector<1x32x32xbf16> to vector<32x32xbf16>
    %cst_24 = arith.constant dense<0.000000e+00> : vector<32x256xf32>
    %43 = tpu.matmul %42, %40, %cst_24 {dimension_numbers = #tpu.dot_dimension_numbers<[1], [0], [0], [1], [0, 0, 1, 1], [], []>} : vector<32x32xbf16>, vector<32x256xbf16>, vector<32x256xf32> -> vector<32x256xf32>
    %c0_25 = arith.constant 0 : index
    %c0_26 = arith.constant 0 : index
    %c0_27 = arith.constant 0 : index
    %44 = vector.load %arg8[%c0_25, %c0_26, %c0_27] : memref<3x32x1xf32, #tpu.memory_space<vmem>>, vector<1x32x1xf32>
    %45 = vector.shape_cast %44 : vector<1x32x1xf32> to vector<32x1xf32>
    %46 = vector.broadcast %45 : vector<32x1xf32> to vector<32x256xf32>
    %47 = arith.addf %43, %46 : vector<32x256xf32>
    %48 = arith.addf %11, %47 : vector<32x256xf32>
    %49 = vector.broadcast %3 : vector<1x256xf32> to vector<32x256xf32>
    %50 = arith.mulf %48, %49 : vector<32x256xf32>
    %51 = arith.truncf %50 : vector<32x256xf32> to vector<32x256xbf16>
    %c2_i32 = arith.constant 2 : i32
    %52 = vector.broadcast %c2_i32 : i32 to vector<1x256xi32>
    %53 = arith.cmpi sge, %12, %52 : vector<1x256xi32>
    %c2_i32_28 = arith.constant 2 : i32
    %54 = tpu.dynamic_rotate %50 by %c2_i32_28 dim 1 : vector<32x256xf32>, i32 -> vector<32x256xf32>
    %cst_29 = arith.constant 0.000000e+00 : f32
    %55 = vector.shape_cast %53 : vector<1x256xi1> to vector<1x256xi1>
    %56 = vector.broadcast %55 : vector<1x256xi1> to vector<32x256xi1>
    %57 = vector.broadcast %cst_29 : f32 to vector<32x256xf32>
    %58 = arith.select %56, %54, %57 : vector<32x256xi1>, vector<32x256xf32>
    %59 = arith.truncf %58 : vector<32x256xf32> to vector<32x256xbf16>
    %c254_i32 = arith.constant 254 : i32
    %60 = vector.broadcast %c254_i32 : i32 to vector<1x256xi32>
    %61 = arith.cmpi slt, %12, %60 : vector<1x256xi32>
    %c254_i32_30 = arith.constant 254 : i32
    %62 = tpu.dynamic_rotate %50 by %c254_i32_30 dim 1 : vector<32x256xf32>, i32 -> vector<32x256xf32>
    %cst_31 = arith.constant 0.000000e+00 : f32
    %63 = vector.shape_cast %61 : vector<1x256xi1> to vector<1x256xi1>
    %64 = vector.broadcast %63 : vector<1x256xi1> to vector<32x256xi1>
    %65 = vector.broadcast %cst_31 : f32 to vector<32x256xf32>
    %66 = arith.select %64, %62, %65 : vector<32x256xi1>, vector<32x256xf32>
    %67 = arith.truncf %66 : vector<32x256xf32> to vector<32x256xbf16>
    %68 = tpu.concatenate %59, %51, %67 in 0 : vector<32x256xbf16>, vector<32x256xbf16>, vector<32x256xbf16> -> vector<96x256xbf16>
    %c1 = arith.constant 1 : index
    %c0_32 = arith.constant 0 : index
    %c0_33 = arith.constant 0 : index
    %69 = vector.load %arg5[%c1, %c0_32, %c0_33] : memref<3x32x96xbf16, #tpu.memory_space<vmem>>, vector<1x32x96xbf16>
    %70 = vector.shape_cast %69 : vector<1x32x96xbf16> to vector<32x96xbf16>
    %cst_34 = arith.constant dense<0.000000e+00> : vector<32x256xf32>
    %71 = tpu.matmul %70, %68, %cst_34 {dimension_numbers = #tpu.dot_dimension_numbers<[1], [0], [0], [1], [0, 0, 1, 1], [], []>} : vector<32x96xbf16>, vector<96x256xbf16>, vector<32x256xf32> -> vector<32x256xf32>
    %c1_35 = arith.constant 1 : index
    %c0_36 = arith.constant 0 : index
    %c0_37 = arith.constant 0 : index
    %72 = vector.load %arg6[%c1_35, %c0_36, %c0_37] : memref<3x32x1xf32, #tpu.memory_space<vmem>>, vector<1x32x1xf32>
    %73 = vector.shape_cast %72 : vector<1x32x1xf32> to vector<32x1xf32>
    %74 = vector.broadcast %73 : vector<32x1xf32> to vector<32x256xf32>
    %75 = arith.addf %71, %74 : vector<32x256xf32>
    %cst_38 = arith.constant 0.000000e+00 : f32
    %76 = vector.broadcast %cst_38 : f32 to vector<32x256xf32>
    %77 = arith.maximumf %75, %76 : vector<32x256xf32>
    %78 = arith.truncf %77 : vector<32x256xf32> to vector<32x256xbf16>
    %c1_39 = arith.constant 1 : index
    %c0_40 = arith.constant 0 : index
    %c0_41 = arith.constant 0 : index
    %79 = vector.load %arg7[%c1_39, %c0_40, %c0_41] : memref<3x32x32xbf16, #tpu.memory_space<vmem>>, vector<1x32x32xbf16>
    %80 = vector.shape_cast %79 : vector<1x32x32xbf16> to vector<32x32xbf16>
    %cst_42 = arith.constant dense<0.000000e+00> : vector<32x256xf32>
    %81 = tpu.matmul %80, %78, %cst_42 {dimension_numbers = #tpu.dot_dimension_numbers<[1], [0], [0], [1], [0, 0, 1, 1], [], []>} : vector<32x32xbf16>, vector<32x256xbf16>, vector<32x256xf32> -> vector<32x256xf32>
    %c1_43 = arith.constant 1 : index
    %c0_44 = arith.constant 0 : index
    %c0_45 = arith.constant 0 : index
    %82 = vector.load %arg8[%c1_43, %c0_44, %c0_45] : memref<3x32x1xf32, #tpu.memory_space<vmem>>, vector<1x32x1xf32>
    %83 = vector.shape_cast %82 : vector<1x32x1xf32> to vector<32x1xf32>
    %84 = vector.broadcast %83 : vector<32x1xf32> to vector<32x256xf32>
    %85 = arith.addf %81, %84 : vector<32x256xf32>
    %86 = arith.addf %50, %85 : vector<32x256xf32>
    %87 = vector.broadcast %3 : vector<1x256xf32> to vector<32x256xf32>
    %88 = arith.mulf %86, %87 : vector<32x256xf32>
    %89 = arith.truncf %88 : vector<32x256xf32> to vector<32x256xbf16>
    %c4_i32 = arith.constant 4 : i32
    %90 = vector.broadcast %c4_i32 : i32 to vector<1x256xi32>
    %91 = arith.cmpi sge, %12, %90 : vector<1x256xi32>
    %c4_i32_46 = arith.constant 4 : i32
    %92 = tpu.dynamic_rotate %88 by %c4_i32_46 dim 1 : vector<32x256xf32>, i32 -> vector<32x256xf32>
    %cst_47 = arith.constant 0.000000e+00 : f32
    %93 = vector.shape_cast %91 : vector<1x256xi1> to vector<1x256xi1>
    %94 = vector.broadcast %93 : vector<1x256xi1> to vector<32x256xi1>
    %95 = vector.broadcast %cst_47 : f32 to vector<32x256xf32>
    %96 = arith.select %94, %92, %95 : vector<32x256xi1>, vector<32x256xf32>
    %97 = arith.truncf %96 : vector<32x256xf32> to vector<32x256xbf16>
    %c252_i32 = arith.constant 252 : i32
    %98 = vector.broadcast %c252_i32 : i32 to vector<1x256xi32>
    %99 = arith.cmpi slt, %12, %98 : vector<1x256xi32>
    %c252_i32_48 = arith.constant 252 : i32
    %100 = tpu.dynamic_rotate %88 by %c252_i32_48 dim 1 : vector<32x256xf32>, i32 -> vector<32x256xf32>
    %cst_49 = arith.constant 0.000000e+00 : f32
    %101 = vector.shape_cast %99 : vector<1x256xi1> to vector<1x256xi1>
    %102 = vector.broadcast %101 : vector<1x256xi1> to vector<32x256xi1>
    %103 = vector.broadcast %cst_49 : f32 to vector<32x256xf32>
    %104 = arith.select %102, %100, %103 : vector<32x256xi1>, vector<32x256xf32>
    %105 = arith.truncf %104 : vector<32x256xf32> to vector<32x256xbf16>
    %106 = tpu.concatenate %97, %89, %105 in 0 : vector<32x256xbf16>, vector<32x256xbf16>, vector<32x256xbf16> -> vector<96x256xbf16>
    %c2 = arith.constant 2 : index
    %c0_50 = arith.constant 0 : index
    %c0_51 = arith.constant 0 : index
    %107 = vector.load %arg5[%c2, %c0_50, %c0_51] : memref<3x32x96xbf16, #tpu.memory_space<vmem>>, vector<1x32x96xbf16>
    %108 = vector.shape_cast %107 : vector<1x32x96xbf16> to vector<32x96xbf16>
    %cst_52 = arith.constant dense<0.000000e+00> : vector<32x256xf32>
    %109 = tpu.matmul %108, %106, %cst_52 {dimension_numbers = #tpu.dot_dimension_numbers<[1], [0], [0], [1], [0, 0, 1, 1], [], []>} : vector<32x96xbf16>, vector<96x256xbf16>, vector<32x256xf32> -> vector<32x256xf32>
    %c2_53 = arith.constant 2 : index
    %c0_54 = arith.constant 0 : index
    %c0_55 = arith.constant 0 : index
    %110 = vector.load %arg6[%c2_53, %c0_54, %c0_55] : memref<3x32x1xf32, #tpu.memory_space<vmem>>, vector<1x32x1xf32>
    %111 = vector.shape_cast %110 : vector<1x32x1xf32> to vector<32x1xf32>
    %112 = vector.broadcast %111 : vector<32x1xf32> to vector<32x256xf32>
    %113 = arith.addf %109, %112 : vector<32x256xf32>
    %cst_56 = arith.constant 0.000000e+00 : f32
    %114 = vector.broadcast %cst_56 : f32 to vector<32x256xf32>
    %115 = arith.maximumf %113, %114 : vector<32x256xf32>
    %116 = arith.truncf %115 : vector<32x256xf32> to vector<32x256xbf16>
    %c2_57 = arith.constant 2 : index
    %c0_58 = arith.constant 0 : index
    %c0_59 = arith.constant 0 : index
    %117 = vector.load %arg7[%c2_57, %c0_58, %c0_59] : memref<3x32x32xbf16, #tpu.memory_space<vmem>>, vector<1x32x32xbf16>
    %118 = vector.shape_cast %117 : vector<1x32x32xbf16> to vector<32x32xbf16>
    %cst_60 = arith.constant dense<0.000000e+00> : vector<32x256xf32>
    %119 = tpu.matmul %118, %116, %cst_60 {dimension_numbers = #tpu.dot_dimension_numbers<[1], [0], [0], [1], [0, 0, 1, 1], [], []>} : vector<32x32xbf16>, vector<32x256xbf16>, vector<32x256xf32> -> vector<32x256xf32>
    %c2_61 = arith.constant 2 : index
    %c0_62 = arith.constant 0 : index
    %c0_63 = arith.constant 0 : index
    %120 = vector.load %arg8[%c2_61, %c0_62, %c0_63] : memref<3x32x1xf32, #tpu.memory_space<vmem>>, vector<1x32x1xf32>
    %121 = vector.shape_cast %120 : vector<1x32x1xf32> to vector<32x1xf32>
    %122 = vector.broadcast %121 : vector<32x1xf32> to vector<32x256xf32>
    %123 = arith.addf %119, %122 : vector<32x256xf32>
    %124 = arith.addf %88, %123 : vector<32x256xf32>
    %125 = vector.broadcast %3 : vector<1x256xf32> to vector<32x256xf32>
    %126 = arith.mulf %124, %125 : vector<32x256xf32>
    %c0_64 = arith.constant 0 : index
    %c0_65 = arith.constant 0 : index
    %c0_66 = arith.constant 0 : index
    %127 = vector.load %arg9[%c0_64, %c0_65, %c0_66] : memref<1x32x256xf32, #tpu.memory_space<vmem>>, vector<1x32x256xf32>
    %128 = vector.shape_cast %127 : vector<1x32x256xf32> to vector<32x256xf32>
    %129 = vector.shape_cast %126 : vector<32x256xf32> to vector<1x32x256xf32>
    tpu.vector_store %arg9[%c0_64, %c0_65, %c0_66], %129 {strides = array<i32>} : memref<1x32x256xf32, #tpu.memory_space<vmem>>, vector<1x32x256xf32>,
    return
  }
  func.func @transform_0(%arg0: i32) -> (i32, i32, i32) {
    %c0_i32 = arith.constant 0 : i32
    %c0_i32_0 = arith.constant 0 : i32
    %c0_i32_1 = arith.constant 0 : i32
    return %arg0, %c0_i32, %c0_i32_0 : i32, i32, i32
  }
  func.func @transform_1(%arg0: i32) -> (i32, i32, i32) {
    %c0_i32 = arith.constant 0 : i32
    %c0_i32_0 = arith.constant 0 : i32
    %c0_i32_1 = arith.constant 0 : i32
    return %arg0, %c0_i32, %c0_i32_0 : i32, i32, i32
  }
  func.func @transform_2(%arg0: i32) -> (i32, i32) {
    %c0_i32 = arith.constant 0 : i32
    %c0_i32_0 = arith.constant 0 : i32
    %c0_i32_1 = arith.constant 0 : i32
    return %c0_i32, %c0_i32_0 : i32, i32
  }
  func.func @transform_3(%arg0: i32) -> (i32, i32) {
    %c0_i32 = arith.constant 0 : i32
    %c0_i32_0 = arith.constant 0 : i32
    %c0_i32_1 = arith.constant 0 : i32
    return %c0_i32, %c0_i32_0 : i32, i32
  }
  func.func @transform_4(%arg0: i32) -> (i32, i32, i32) {
    %c0_i32 = arith.constant 0 : i32
    %c0_i32_0 = arith.constant 0 : i32
    %c0_i32_1 = arith.constant 0 : i32
    %c0_i32_2 = arith.constant 0 : i32
    return %c0_i32, %c0_i32_0, %c0_i32_1 : i32, i32, i32
  }
  func.func @transform_5(%arg0: i32) -> (i32, i32, i32) {
    %c0_i32 = arith.constant 0 : i32
    %c0_i32_0 = arith.constant 0 : i32
    %c0_i32_1 = arith.constant 0 : i32
    %c0_i32_2 = arith.constant 0 : i32
    return %c0_i32, %c0_i32_0, %c0_i32_1 : i32, i32, i32
  }
  func.func @transform_6(%arg0: i32) -> (i32, i32, i32) {
    %c0_i32 = arith.constant 0 : i32
    %c0_i32_0 = arith.constant 0 : i32
    %c0_i32_1 = arith.constant 0 : i32
    %c0_i32_2 = arith.constant 0 : i32
    return %c0_i32, %c0_i32_0, %c0_i32_1 : i32, i32, i32
  }
  func.func @transform_7(%arg0: i32) -> (i32, i32, i32) {
    %c0_i32 = arith.constant 0 : i32
    %c0_i32_0 = arith.constant 0 : i32
    %c0_i32_1 = arith.constant 0 : i32
    %c0_i32_2 = arith.constant 0 : i32
    return %c0_i32, %c0_i32_0, %c0_i32_1 : i32, i32, i32
  }
  func.func @transform_8(%arg0: i32) -> (i32, i32, i32) {
    %c0_i32 = arith.constant 0 : i32
    %c0_i32_0 = arith.constant 0 : i32
    %c0_i32_1 = arith.constant 0 : i32
    return %arg0, %c0_i32, %c0_i32_0 : i32, i32, i32
  }
}

module attributes {stable_mosaic.version = 11 : i64} {
  func.func @_out_conv_kernel(%arg0: i32, %arg1: memref<1x32x256xf32, #tpu.memory_space<vmem>>, %arg2: memref<1x1x256xf32, #tpu.memory_space<vmem>>, %arg3: memref<16x32xbf16, #tpu.memory_space<vmem>>, %arg4: memref<16x1xf32, #tpu.memory_space<vmem>>, %arg5: memref<1x16x256xf32, #tpu.memory_space<vmem>>) attributes {dimension_semantics = [#tpu.dimension_semantics<parallel>], iteration_bounds = array<i64: 2>, scalar_prefetch = 0 : i64, scratch_operands = 0 : i64, tpu.core_type = #tpu.core_type<tc>, window_params = [{transform_indices = @transform_0, window_bounds = array<i64: 1, 32, 256>}, {transform_indices = @transform_1, window_bounds = array<i64: 1, 1, 256>}, {pipeline_mode = #tpu.pipeline_mode<synchronous>, transform_indices = @transform_2, window_bounds = array<i64: 16, 32>}, {pipeline_mode = #tpu.pipeline_mode<synchronous>, transform_indices = @transform_3, window_bounds = array<i64: 16, 1>}, {transform_indices = @transform_4, window_bounds = array<i64: 1, 16, 256>}]} {
    %c0 = arith.constant 0 : index
    %c0_0 = arith.constant 0 : index
    %c0_1 = arith.constant 0 : index
    %0 = vector.load %arg1[%c0, %c0_0, %c0_1] : memref<1x32x256xf32, #tpu.memory_space<vmem>>, vector<1x32x256xf32>
    %1 = vector.shape_cast %0 : vector<1x32x256xf32> to vector<32x256xf32>
    %c0_2 = arith.constant 0 : index
    %c0_3 = arith.constant 0 : index
    %2 = vector.load %arg3[%c0_2, %c0_3] : memref<16x32xbf16, #tpu.memory_space<vmem>>, vector<16x32xbf16>
    %3 = arith.truncf %1 : vector<32x256xf32> to vector<32x256xbf16>
    %cst = arith.constant dense<0.000000e+00> : vector<16x256xf32>
    %4 = tpu.matmul %2, %3, %cst {dimension_numbers = #tpu.dot_dimension_numbers<[1], [0], [0], [1], [0, 0, 1, 1], [], []>} : vector<16x32xbf16>, vector<32x256xbf16>, vector<16x256xf32> -> vector<16x256xf32>
    %c0_4 = arith.constant 0 : index
    %c0_5 = arith.constant 0 : index
    %5 = vector.load %arg4[%c0_4, %c0_5] : memref<16x1xf32, #tpu.memory_space<vmem>>, vector<16x1xf32>
    %6 = vector.broadcast %5 : vector<16x1xf32> to vector<16x256xf32>
    %7 = arith.addf %4, %6 : vector<16x256xf32>
    %c0_6 = arith.constant 0 : index
    %c0_7 = arith.constant 0 : index
    %c0_8 = arith.constant 0 : index
    %8 = vector.load %arg2[%c0_6, %c0_7, %c0_8] : memref<1x1x256xf32, #tpu.memory_space<vmem>>, vector<1x1x256xf32>
    %9 = vector.shape_cast %8 : vector<1x1x256xf32> to vector<1x256xf32>
    %10 = vector.broadcast %9 : vector<1x256xf32> to vector<16x256xf32>
    %11 = arith.mulf %7, %10 : vector<16x256xf32>
    %c0_9 = arith.constant 0 : index
    %c0_10 = arith.constant 0 : index
    %c0_11 = arith.constant 0 : index
    %12 = vector.load %arg5[%c0_9, %c0_10, %c0_11] : memref<1x16x256xf32, #tpu.memory_space<vmem>>, vector<1x16x256xf32>
    %13 = vector.shape_cast %12 : vector<1x16x256xf32> to vector<16x256xf32>
    %14 = vector.shape_cast %11 : vector<16x256xf32> to vector<1x16x256xf32>
    tpu.vector_store %arg5[%c0_9, %c0_10, %c0_11], %14 {strides = array<i32>} : memref<1x16x256xf32, #tpu.memory_space<vmem>>, vector<1x16x256xf32>,
    return
  }
  func.func @transform_0(%arg0: i32) -> (i32, i32, i32) {
    %c0_i32 = arith.constant 0 : i32
    %c0_i32_0 = arith.constant 0 : i32
    %c0_i32_1 = arith.constant 0 : i32
    return %arg0, %c0_i32, %c0_i32_0 : i32, i32, i32
  }
  func.func @transform_1(%arg0: i32) -> (i32, i32, i32) {
    %c0_i32 = arith.constant 0 : i32
    %c0_i32_0 = arith.constant 0 : i32
    %c0_i32_1 = arith.constant 0 : i32
    return %arg0, %c0_i32, %c0_i32_0 : i32, i32, i32
  }
  func.func @transform_2(%arg0: i32) -> (i32, i32) {
    %c0_i32 = arith.constant 0 : i32
    %c0_i32_0 = arith.constant 0 : i32
    %c0_i32_1 = arith.constant 0 : i32
    return %c0_i32, %c0_i32_0 : i32, i32
  }
  func.func @transform_3(%arg0: i32) -> (i32, i32) {
    %c0_i32 = arith.constant 0 : i32
    %c0_i32_0 = arith.constant 0 : i32
    %c0_i32_1 = arith.constant 0 : i32
    return %c0_i32, %c0_i32_0 : i32, i32
  }
  func.func @transform_4(%arg0: i32) -> (i32, i32, i32) {
    %c0_i32 = arith.constant 0 : i32
    %c0_i32_0 = arith.constant 0 : i32
    %c0_i32_1 = arith.constant 0 : i32
    return %arg0, %c0_i32, %c0_i32_0 : i32, i32, i32
  }
}

</mosaic_0001>

<llo_original>
// kernel: single_vq_forward.8
$region0: #{single_vq_forward.8}
  #allocation0 [shape = 'u32[]', space=smem, size = 0x4, offset = 0x4, fixed_abs, tag = 'smem constant byte address 0x4 - core index']
  #allocation1 [shape = 'u32[72,128]{1,0:T(1,128)}', space=vmem, size = 0x9000, scoped, tag = 'internal scratch']
  %s0 = inlined_call_operand.vmem [shape: f32[2,32,256], index: 0, kind: input, shape index: {}]
  %s1 = inlined_call_operand.vmem [shape: f32[8,32], index: 1, kind: input, shape index: {}]
  %s2 = inlined_call_operand.vmem [shape: f32[2,32,256], index: 2, kind: output, shape index: {0}]
  %s3 = inlined_call_operand.hbm [shape: f32[2,8,256], index: 3, kind: output, shape index: {1}]
  %4 = xla_tuple %s2, %s3
  %s5 = sld [smem:[#allocation0]]
  $region49: #{single_vq_forward.8} parent=0
    _
  %s7 = ssub.s32 1, %s5
  %s8 = scalar_select 0, %s7, %s5
  $region1: #{single_vq_forward.8} parent=0
    #allocation2 [shape = 'u8[16384]{0}', space=vmem, size = 0x4000, scoped, tag = 'output window, operand 1']
    #allocation3 [shape = 's32[2]{0}', space=sflag, size = 0x8, scoped, tag = 'scoped memory for single_vq_forward.8']
    %9 = vsyncpa [#allocation3], 0
    %s10 = scalar_lea.sflag [#allocation3], 1
    %11 = vsyncpa %s10, 0
    loop: start=0, step=1, limit=4
    $region2: #{single_vq_forward.8} parent=1 // loop_pre_header
      _
    $region3: #{single_vq_forward.8} parent=1 // loop_header
      %s13 = sphi 0, %s17
      %p14 = scmp.ge.s32.totalorder %s13, 4
      %s23 = sphi 0, %s25
      %s26 = sphi 0, %s23
      %s27 = sphi 0, %s26
      %s43 = sphi 0, %s27
      %s47 = sphi 0, %s47
      %s49 = sphi 0, %s47
      %s50 = sphi 0, %s49
      %s64 = sphi 0, %s50
      %s70 = sphi 0, %s72
      %s73 = sphi 0, %s70
      %s74 = sphi 0, %s73
      %s90 = sphi 0, %s74
      %s96 = sphi 0, %s98
      %s99 = sphi 0, %s96
      %s100 = sphi 0, %s99
      %s116 = sphi 0, %s100
    $region4: #{single_vq_forward.8} parent=1 // loop_header_branch
      %16 = sbr.rel (%p14) target = $region8
    $region5: #{single_vq_forward.8} parent=1 // loop_body
      %s18 = ssub.s32 %s13, 1
      %s19 = ssub.s32 %s13, 2
      %s20 = sadd.s32 %s13, 1
      %s21 = ssub.s32 %s13, %s20
      %p22 = scmp.eq.s32.totalorder %s21, 0
      %s24 = sadd.s32 %s23, 1
      %s25 = scalar_select %p22, %s23, %s24
      %p28 = pneg %p22
      %p29 = scmp.eq.s32.totalorder %s13, 1
      %p30 = por %p28, %p29
      %p31 = scmp.ne.s32.totalorder %s23, %s26
      %p32 = scmp.eq.s32.totalorder %s13, 0
      %p33 = por %p31, %p32
      %p34 = scmp.ne.s32.totalorder %s23, %s26
      %p35 = scmp.eq.s32.totalorder %s18, 1
      %p36 = por %p34, %p35
      %p37 = scmp.ne.s32.totalorder %s26, %s27
      %p38 = scmp.eq.s32.totalorder %s18, 0
      %p39 = por %p37, %p38
      %p40 = scmp.ne.s32.totalorder %s26, %s27
      %p41 = scmp.eq.s32.totalorder %s19, 1
      %p42 = por %p40, %p41
      %p44 = scmp.ne.s32.totalorder %s27, %s43
      %p45 = scmp.eq.s32.totalorder %s19, 0
      %p46 = por %p44, %p45
      %s48 = sadd.s32 %s47, 1
      %p51 = scmp.eq.s32.totalorder %s13, 1
      %p52 = scmp.ne.s32.totalorder %s47, %s49
      %p53 = scmp.eq.s32.totalorder %s13, 0
      %p54 = por %p52, %p53
      %p55 = scmp.ne.s32.totalorder %s47, %s49
      %p56 = scmp.eq.s32.totalorder %s18, 1
      %p57 = por %p55, %p56
      %p58 = scmp.ne.s32.totalorder %s49, %s50
      %p59 = scmp.eq.s32.totalorder %s18, 0
      %p60 = por %p58, %p59
      %p61 = scmp.ne.s32.totalorder %s49, %s50
      %p62 = scmp.eq.s32.totalorder %s19, 1
      %p63 = por %p61, %p62
      %p65 = scmp.ne.s32.totalorder %s50, %s64
      %p66 = scmp.eq.s32.totalorder %s19, 0
      %p67 = por %p65, %p66
      %s68 = ssub.s32 %s13, %s20
      %p69 = scmp.eq.s32.totalorder %s68, 0
      %s71 = sadd.s32 %s70, 1
      %s72 = scalar_select %p69, %s70, %s71
      %p75 = pneg %p69
      %p76 = scmp.eq.s32.totalorder %s13, 1
      %p77 = por %p75, %p76
      %p78 = scmp.ne.s32.totalorder %s70, %s73
      %p79 = scmp.eq.s32.totalorder %s13, 0
      %p80 = por %p78, %p79
      %p81 = scmp.ne.s32.totalorder %s70, %s73
      %p82 = scmp.eq.s32.totalorder %s18, 1
      %p83 = por %p81, %p82
      %p84 = scmp.ne.s32.totalorder %s73, %s74
      %p85 = scmp.eq.s32.totalorder %s18, 0
      %p86 = por %p84, %p85
      %p87 = scmp.ne.s32.totalorder %s73, %s74
      %p88 = scmp.eq.s32.totalorder %s19, 1
      %p89 = por %p87, %p88
      %p91 = scmp.ne.s32.totalorder %s74, %s90
      %p92 = scmp.eq.s32.totalorder %s19, 0
      %p93 = por %p91, %p92
      %s94 = ssub.s32 %s13, %s20
      %p95 = scmp.eq.s32.totalorder %s94, 0
      %s97 = sadd.s32 %s96, 1
      %s98 = scalar_select %p95, %s96, %s97
      %p101 = pneg %p95
      %p102 = scmp.eq.s32.totalorder %s13, 1
      %p103 = por %p101, %p102
      %p104 = scmp.ne.s32.totalorder %s96, %s99
      %p105 = scmp.eq.s32.totalorder %s13, 0
      %p106 = por %p104, %p105
      %p107 = scmp.ne.s32.totalorder %s96, %s99
      %p108 = scmp.eq.s32.totalorder %s18, 1
      %p109 = por %p107, %p108
      %p110 = scmp.ne.s32.totalorder %s99, %s100
      %p111 = scmp.eq.s32.totalorder %s18, 0
      %p112 = por %p110, %p111
      %p113 = scmp.ne.s32.totalorder %s99, %s100
      %p114 = scmp.eq.s32.totalorder %s19, 1
      %p115 = por %p113, %p114
      %p117 = scmp.ne.s32.totalorder %s100, %s116
      %p118 = scmp.eq.s32.totalorder %s19, 0
      %p119 = por %p117, %p118
      %p120 = scmp.le.s32.totalorder 1, %s13
      %p121 = scmp.lt.s32.totalorder %s13, 3
      %p122 = pnand %p120, %p121
      %p123 = pneg %p122
      // Predicated region
      $region9: #{single_vq_forward.8} parent=5 // pred_check
        _
      $region10: #{single_vq_forward.8} parent=5 // pred_check_branch
        %125 = sbr.rel (%p122) target = $region12
      $region11: #{single_vq_forward.8} parent=5 // pred_region
        %s126 = ssub.s32 %s13, 1
        // Predicated region
        $region13: #{single_vq_forward.8} parent=11 // pred_check
          %p127 = pneg %p60
        $region14: #{single_vq_forward.8} parent=11 // pred_check_branch
          %129 = sbr.rel (%p127) target = $region16
        $region15: #{single_vq_forward.8} parent=11 // pred_region
          _
        $region16: #{single_vq_forward.8} parent=11 // pred_fallthru
          _
      $region12: #{single_vq_forward.8} parent=5 // pred_fallthru
        _
      %p130 = scmp.lt.s32.totalorder %s13, 2
      // Predicated region
      $region17: #{single_vq_forward.8} parent=5 // pred_check
        %p131 = pneg %p130
      $region18: #{single_vq_forward.8} parent=5 // pred_check_branch
        %133 = sbr.rel (%p131) target = $region20
      $region19: #{single_vq_forward.8} parent=5 // pred_region
        // Predicated region
        $region21: #{single_vq_forward.8} parent=19 // pred_check
          %p134 = pneg %p33
        $region22: #{single_vq_forward.8} parent=19 // pred_check_branch
          %136 = sbr.rel (%p134) target = $region24
        $region23: #{single_vq_forward.8} parent=19 // pred_region
          %p137 = scmp.lt.s32.totalorder %s13, 1
          %s138 = scalar_select %p137, %s13, 1
          %s139 = smul.addr %s138, 8
          %s140 = smul.addr %s139, 8
          %s141 = scalar_lea.vmem %s0, %s140
        $region24: #{single_vq_forward.8} parent=19 // pred_fallthru
          _
      $region20: #{single_vq_forward.8} parent=5 // pred_fallthru
        _
      %p142 = scmp.le.s32.totalorder 1, %s13
      %p143 = scmp.lt.s32.totalorder %s13, 3
      %p144 = pnand %p142, %p143
      %p145 = pneg %p144
      // Predicated region
      $region25: #{single_vq_forward.8} parent=5 // pred_check
        _
      $region26: #{single_vq_forward.8} parent=5 // pred_check_branch
        %147 = sbr.rel (%p144) target = $region28
      $region27: #{single_vq_forward.8} parent=5 // pred_region
        %s148 = ssub.s32 %s13, 1
        %p149 = scmp.lt.s32.totalorder %s18, 1
        %s150 = scalar_select %p149, %s18, 1
        %s151 = smul.addr %s150, 8
        %s152 = smul.addr %s151, 8
        %s153 = scalar_lea.vmem %s0, %s152
        %p154 = pneg %p39
        %p155 = pneg %p36
        %p156 = pneg %p60
        %p157 = pneg %p57
        %p158 = pneg %p86
        %p159 = pneg %p83
        %p160 = scmp.lt.s32.totalorder %s18, 1
        %s161 = scalar_select %p160, %s18, 1
        %s162 = smul.addr %s161, 8
        %s163 = smul.addr %s162, 8
        %s164 = scalar_lea.vmem %s2, %s163
        %p165 = pneg %p112
        %p166 = pneg %p109
        %s167 = sand.u32 %s99, 1
        %s168 = scalar_lea.sflag [#allocation3], %s167
        %s169 = sand.u32 %s99, 1
        %s170 = smul.addr %s169, 16
        %s171 = scalar_lea.vmem [#allocation2], %s170
        %p172 = scmp.lt.s32.totalorder %s18, 1
        %s173 = scalar_select %p172, %s18, 1
        %s174 = smul.addr %s173, 8
        %s175 = smul.addr %s174, 8
        %s176 = scalar_lea.vmem %s0, %s175
        %p177 = scmp.lt.s32.totalorder %s18, 1
        %s178 = scalar_select %p177, %s18, 1
        %s179 = smul.addr %s178, 8
        %s180 = smul.addr %s179, 8
        %s181 = scalar_lea.vmem %s2, %s180
        %v182 = vld [vmem:[%s176] sm:$0xff]
        %v183 = vld [vmem:[%s176 + $0x8] sm:$0xff]
        %v184 = vld [vmem:[%s176 + $0x10] sm:$0xff]
        %v185 = vld [vmem:[%s176 + $0x18] sm:$0xff]
        %v186 = vld [vmem:[%s176 + $0x20] sm:$0xff]
        %v187 = vld [vmem:[%s176 + $0x28] sm:$0xff]
        %v188 = vld [vmem:[%s176 + $0x30] sm:$0xff]
        %v189 = vld [vmem:[%s176 + $0x38] sm:$0xff]
        %v190 = vld [vmem:[%s1] sm:$0xff]
        %v191 = vmul.f32 %v182, %v182
        %v192 = vmul.f32 %v183, %v183
        %v193 = vmul.f32 %v184, %v184
        %v194 = vmul.f32 %v185, %v185
        %v195 = vmul.f32 %v186, %v186
        %v196 = vmul.f32 %v187, %v187
        %v197 = vmul.f32 %v188, %v188
        %v198 = vmul.f32 %v189, %v189
        %v199 = vadd.f32 %v191, %v193
        %v200 = vadd.f32 %v199, %v195
        %v201 = vadd.f32 %v200, %v197
        %v202 = vrot.slane %v201, 4
        %v203 = vadd.f32 %v201, %v202
        %v204 = vrot.slane %v203, 2
        %v205 = vadd.f32 %v203, %v204
        %v206 = vrot.slane %v205, 1
        %v207 = vadd.f32 %v205, %v206
        %v208 = vadd.f32 %v192, %v194
        %v209 = vadd.f32 %v208, %v196
        %v210 = vadd.f32 %v209, %v198
        %v211 = vrot.slane %v210, 4
        %v212 = vadd.f32 %v210, %v211
        %v213 = vrot.slane %v212, 2
        %v214 = vadd.f32 %v212, %v213
        %v215 = vrot.slane %v214, 1
        %v216 = vadd.f32 %v214, %v215
        %v217 = vadd.f32 %v207, 1e-08
        %v218 = vadd.f32 %v216, 1e-08
        %v219 = vrsqrt.pop %v217
        %v220 = vmul.f32 %v219, %v217
        %v221 = vmul.f32 %v220, %v219
        %v222 = vmul.f32 0.5, %v221
        %v223 = vsub.f32 1.5, %v222
        %v224 = vmul.f32 %v219, %v223
        %vm225 = vweird.f32 %v217
        %vm226 = vweird.f32 %v219
        %vm227 = vmor %vm225, %vm226
        %v228 = vsel %vm227, %v219, %v224
        %v229 = vrsqrt.pop %v218
        %v230 = vmul.f32 %v229, %v218
        %v231 = vmul.f32 %v230, %v229
        %v232 = vmul.f32 0.5, %v231
        %v233 = vsub.f32 1.5, %v232
        %v234 = vmul.f32 %v229, %v233
        %vm235 = vweird.f32 %v218
        %vm236 = vweird.f32 %v229
        %vm237 = vmor %vm235, %vm236
        %v238 = vsel %vm237, %v229, %v234
        %v239 = vmul.f32 %v182, %v228
        %v240 = vmul.f32 %v183, %v238
        %v241 = vmul.f32 %v184, %v228
        %v242 = vmul.f32 %v185, %v238
        %v243 = vmul.f32 %v186, %v228
        %v244 = vmul.f32 %v187, %v238
        %v245 = vmul.f32 %v188, %v228
        %v246 = vmul.f32 %v189, %v238
        %v247 = vmul.f32 %v190, %v190
        %vm248 = vcmask 261120
        %v249 = vsel %vm248, %v247, 0.0
        %250 = vadd.xlane.f32.xlu0 %v249
        %v251 = vpop.xlane.xlu0 %250
        %v252 = vadd.f32 %v251, 1e-08
        %v253 = vrsqrt.pop %v252
        %v254 = vmul.f32 %v253, %v252
        %v255 = vmul.f32 %v254, %v253
        %v256 = vmul.f32 0.5, %v255
        %v257 = vsub.f32 1.5, %v256
        %v258 = vmul.f32 %v253, %v257
        %vm259 = vweird.f32 %v252
        %vm260 = vweird.f32 %v253
        %vm261 = vmor %vm259, %vm260
        %v262 = vsel %vm261, %v253, %v258
        %v263 = vmul.f32 %v190, %v262
        %v265 = vsel %vm248, %v263, 0
        %267 = vmatpush.msra.mxu0 0.0
        %268 = vmatpush.msra.mxu0 0.0
        %269 = vmatpush.msra.mxu0 0.0
        %270 = vmatpush.msra.mxu0 0.0
        %271 = vmatpush.msra.mxu0 0.0
        %272 = vmatpush.msra.mxu0 0.0
        %273 = vmatpush.msra.mxu0 0.0
        %274 = vmatpush.msra.mxu0 0.0
        %275 = vmatpush.msra.mxu0 0.0
        %276 = vmatpush.msra.mxu0 0.0
        %277 = vmatpush.msra.mxu0 0.0
        %278 = vmatpush.msra.mxu0 0.0
        %279 = vmatpush.msra.mxu0 %v245
        %280 = vmatpush.msra.mxu0 %v243
        %281 = vmatpush.msra.mxu0 %v241
        %282 = vmatpush.msra.mxu0 %v239
        %283 = vmatmul.f32.gmra.mxu0 %v265
        %v284 = vpop.f32.mrf.mxu0
        %v285 = vadd.f32 0.0, %v284
        %286 = vdwg.mxu0
        %287 = vmatpush.msra.mxu0 0.0
        %288 = vmatpush.msra.mxu0 0.0
        %289 = vmatpush.msra.mxu0 0.0
        %290 = vmatpush.msra.mxu0 0.0
        %291 = vmatpush.msra.mxu0 0.0
        %292 = vmatpush.msra.mxu0 0.0
        %293 = vmatpush.msra.mxu0 0.0
        %294 = vmatpush.msra.mxu0 0.0
        %295 = vmatpush.msra.mxu0 0.0
        %296 = vmatpush.msra.mxu0 0.0
        %297 = vmatpush.msra.mxu0 0.0
        %298 = vmatpush.msra.mxu0 0.0
        %299 = vmatpush.msra.mxu0 %v246
        %300 = vmatpush.msra.mxu0 %v244
        %301 = vmatpush.msra.mxu0 %v242
        %302 = vmatpush.msra.mxu0 %v240
        %303 = vmatmul.f32.gmra.mxu0 %v265
        %v304 = vpop.f32.mrf.mxu0
        %v305 = vadd.f32 0.0, %v304
        %306 = vdwg.mxu0
        %v307 = vlaneseq
        %v308 = vshrl.u32 %v307, 7
        %v309 = vrot.slane %v285, 4
        %v310 = vmax.f32 %v285, %v309
        %v311 = vrot.slane %v310, 2
        %v312 = vmax.f32 %v310, %v311
        %v313 = vrot.slane %v312, 1
        %v314 = vmax.f32 %v312, %v313
        %v315 = vrot.slane %v305, 4
        %v316 = vmax.f32 %v305, %v315
        %v317 = vrot.slane %v316, 2
        %v318 = vmax.f32 %v316, %v317
        %v319 = vrot.slane %v318, 1
        %v320 = vmax.f32 %v318, %v319
        %vm321 = vcmp.eq.f32.partialorder %v285, %v314
        %vm322 = vcmp.eq.f32.partialorder %v305, %v320
        %v323 = vsel %vm321, %v308, 8
        %v324 = vsel %vm322, %v308, 8
        %v325 = vrot.slane %v323, 4
        %vm326 = vcmp.lt.s32.totalorder %v323, %v325
        %v327 = vsel %vm326, %v323, %v325
        %v328 = vrot.slane %v327, 2
        %vm329 = vcmp.lt.s32.totalorder %v327, %v328
        %v330 = vsel %vm329, %v327, %v328
        %v331 = vrot.slane %v330, 1
        %vm332 = vcmp.lt.s32.totalorder %v330, %v331
        %v333 = vsel %vm332, %v330, %v331
        %v334 = vrot.slane %v324, 4
        %vm335 = vcmp.lt.s32.totalorder %v324, %v334
        %v336 = vsel %vm335, %v324, %v334
        %v337 = vrot.slane %v336, 2
        %vm338 = vcmp.lt.s32.totalorder %v336, %v337
        %v339 = vsel %vm338, %v336, %v337
        %v340 = vrot.slane %v339, 1
        %vm341 = vcmp.lt.s32.totalorder %v339, %v340
        %v342 = vsel %vm341, %v339, %v340
        %vm343 = vcmp.eq.s32.totalorder %v308, %v333
        %vm344 = vcmp.eq.s32.totalorder %v308, %v342
        %v345 = vsel %vm343, 1, 0
        %v346 = vsel %vm344, 1, 0
        %v347 = vcvt.s32.f32 %v345
        %v348 = vcvt.s32.f32 %v346
        %349 = vxpose.xlu0.b32.start [1/16] %v263, 128
        %350 = vxpose.xlu0.b32.cont [2/16] 0.0, 128
        %351 = vxpose.xlu0.b32.cont [3/16] 0.0, 128
        %352 = vxpose.xlu0.b32.cont [4/16] 0.0, 128
        %353 = vxpose.xlu0.b32.cont [5/16] 0.0, 128
        %354 = vxpose.xlu0.b32.cont [6/16] 0.0, 128
        %355 = vxpose.xlu0.b32.cont [7/16] 0.0, 128
        %356 = vxpose.xlu0.b32.cont [8/16] 0.0, 128
        %357 = vxpose.xlu0.b32.cont [9/16] 0.0, 128
        %358 = vxpose.xlu0.b32.cont [10/16] 0.0, 128
        %359 = vxpose.xlu0.b32.cont [11/16] 0.0, 128
        %360 = vxpose.xlu0.b32.cont [12/16] 0.0, 128
        %361 = vxpose.xlu0.b32.cont [13/16] 0.0, 128
        %362 = vxpose.xlu0.b32.cont [14/16] 0.0, 128
        %363 = vxpose.xlu0.b32.cont [15/16] 0.0, 128
        %364 = vxpose.xlu0.b32.end [16/16] 0.0, 128
        %v365 = vpop.trf.xlu0
        %v366 = vpop.trf.xlu0
        %v367 = vpop.trf.xlu0
        %v368 = vpop.trf.xlu0
        %v369 = vpop.trf.xlu0
        %v370 = vpop.trf.xlu0
        %v371 = vpop.trf.xlu0
        %v372 = vpop.trf.xlu0
        %v373 = vpop.trf.xlu0
        %v374 = vpop.trf.xlu0
        %v375 = vpop.trf.xlu0
        %v376 = vpop.trf.xlu0
        %v377 = vpop.trf.xlu0
        %v378 = vpop.trf.xlu0
        %v379 = vpop.trf.xlu0
        %v380 = vpop.trf.xlu0
        %vm381 = vcmask 64512
        %v383 = vsel %vm381, %v365, 0
        %v386 = vsel %vm381, %v366, 0
        %v389 = vsel %vm381, %v367, 0
        %v392 = vsel %vm381, %v368, 0
        %394 = vmatpush.msra.mxu0 0.0
        %395 = vmatpush.msra.mxu0 0.0
        %396 = vmatpush.msra.mxu0 0.0
        %397 = vmatpush.msra.mxu0 0.0
        %398 = vmatpush.msra.mxu0 0.0
        %399 = vmatpush.msra.mxu0 0.0
        %400 = vmatpush.msra.mxu0 0.0
        %401 = vmatpush.msra.mxu0 0.0
        %402 = vmatpush.msra.mxu0 0.0
        %403 = vmatpush.msra.mxu0 0.0
        %404 = vmatpush.msra.mxu0 0.0
        %405 = vmatpush.msra.mxu0 0.0
        %406 = vmatpush.msra.mxu0 0.0
        %407 = vmatpush.msra.mxu0 0.0
        %408 = vmatpush.msra.mxu0 0.0
        %409 = vmatpush.msra.mxu0 %v347
        %410 = vmatmul.f32.gmra.mxu0 %v383
        %v411 = vpop.f32.mrf.mxu0
        %v412 = vadd.f32 0.0, %v411
        %413 = vmatmul.f32.gmra.mxu0 %v386
        %v414 = vpop.f32.mrf.mxu0
        %v415 = vadd.f32 0.0, %v414
        %416 = vmatmul.f32.gmra.mxu0 %v389
        %v417 = vpop.f32.mrf.mxu0
        %v418 = vadd.f32 0.0, %v417
        %419 = vmatmul.f32.gmra.mxu0 %v392
        %v420 = vpop.f32.mrf.mxu0
        %v421 = vadd.f32 0.0, %v420
        %422 = vdwg.mxu0
        %423 = vmatpush.msra.mxu0 0.0
        %424 = vmatpush.msra.mxu0 0.0
        %425 = vmatpush.msra.mxu0 0.0
        %426 = vmatpush.msra.mxu0 0.0
        %427 = vmatpush.msra.mxu0 0.0
        %428 = vmatpush.msra.mxu0 0.0
        %429 = vmatpush.msra.mxu0 0.0
        %430 = vmatpush.msra.mxu0 0.0
        %431 = vmatpush.msra.mxu0 0.0
        %432 = vmatpush.msra.mxu0 0.0
        %433 = vmatpush.msra.mxu0 0.0
        %434 = vmatpush.msra.mxu0 0.0
        %435 = vmatpush.msra.mxu0 0.0
        %436 = vmatpush.msra.mxu0 0.0
        %437 = vmatpush.msra.mxu0 0.0
        %438 = vmatpush.msra.mxu0 %v348
        %439 = vmatmul.f32.gmra.mxu0 %v383
        %v440 = vpop.f32.mrf.mxu0
        %v441 = vadd.f32 0.0, %v440
        %442 = vmatmul.f32.gmra.mxu0 %v386
        %v443 = vpop.f32.mrf.mxu0
        %v444 = vadd.f32 0.0, %v443
        %445 = vmatmul.f32.gmra.mxu0 %v389
        %v446 = vpop.f32.mrf.mxu0
        %v447 = vadd.f32 0.0, %v446
        %448 = vmatmul.f32.gmra.mxu0 %v392
        %v449 = vpop.f32.mrf.mxu0
        %v450 = vadd.f32 0.0, %v449
        %451 = vdwg.mxu0
        %452 = vst [vmem:[%s181] sm:$0xff] %v412
        %453 = vst [vmem:[%s181 + $0x8] sm:$0xff] %v441
        %454 = vst [vmem:[%s181 + $0x10] sm:$0xff] %v415
        %455 = vst [vmem:[%s181 + $0x18] sm:$0xff] %v444
        %456 = vst [vmem:[%s181 + $0x20] sm:$0xff] %v418
        %457 = vst [vmem:[%s181 + $0x28] sm:$0xff] %v447
        %458 = vst [vmem:[%s181 + $0x30] sm:$0xff] %v421
        %459 = vst [vmem:[%s181 + $0x38] sm:$0xff] %v450
        %v460 = vsub.f32 %v285, %v314
        %v461 = vsub.f32 %v305, %v320
        %v462 = vmul.f32 %v460, 1.442695
        %v463 = vpow.pop %v462
        %v464 = vmul.f32 %v461, 1.442695
        %v465 = vpow.pop %v464
        %v466 = vrot.slane %v463, 4
        %v467 = vadd.f32 %v463, %v466
        %v468 = vrot.slane %v467, 2
        %v469 = vadd.f32 %v467, %v468
        %v470 = vrot.slane %v469, 1
        %v471 = vadd.f32 %v469, %v470
        %v472 = vrot.slane %v465, 4
        %v473 = vadd.f32 %v465, %v472
        %v474 = vrot.slane %v473, 2
        %v475 = vadd.f32 %v473, %v474
        %v476 = vrot.slane %v475, 1
        %v477 = vadd.f32 %v475, %v476
        %v478 = vrcp.pop %v471
        %v479 = vrcp.pop %v477
        %v480 = vmul.f32 %v463, %v478
        %v481 = vmul.f32 %v465, %v479
        %482 = vst [vmem:[%s171] sm:$0xff] %v480
        %483 = vst [vmem:[%s171 + $0x8] sm:$0xff] %v481
        %p484 = scmp.lt.s32.totalorder %s18, 1
        %s485 = scalar_select %p484, %s18, 1
        %s486 = smul.addr %s485, 8
        %s487 = smul.addr %s486, 8
        %s488 = scalar_lea.vmem %s2, %s487
        %s489 = sand.u32 %s99, 1
        %s490 = scalar_lea.sflag [#allocation3], %s489
        %s491 = sand.u32 %s99, 1
        %s492 = smul.addr %s491, 16
        %s493 = scalar_lea.vmem [#allocation2], %s492
        // Predicated region
        $region29: #{single_vq_forward.8} parent=27 // pred_check
          %p494 = pneg %p83
        $region30: #{single_vq_forward.8} parent=27 // pred_check_branch
          %496 = sbr.rel (%p494) target = $region32
        $region31: #{single_vq_forward.8} parent=27 // pred_region
          _
        $region32: #{single_vq_forward.8} parent=27 // pred_fallthru
          _
        // Predicated region
        $region33: #{single_vq_forward.8} parent=27 // pred_check
          %p497 = pneg %p109
        $region34: #{single_vq_forward.8} parent=27 // pred_check_branch
          %499 = sbr.rel (%p497) target = $region36
        $region35: #{single_vq_forward.8} parent=27 // pred_region
          %501 = vsyncadd %s490, 0
          %s502 = smul.addr %s18, 2
          %s503 = smul.addr %s502, 8
          %s504 = scalar_lea.hbm %s3, %s503
          %s506 = sshll.u32 %s493, 4
          %s507 = int_to_ptr.vmem [resolvable:$true] %s506
          %s508 = sshll.u32 %s504, 4
          %s509 = int_to_ptr.hbm [resolvable:$true] %s508
          %511 = dma.vmem_to_hbm [thread:$0]  %s507, 256, %s509, %s490
        $region36: #{single_vq_forward.8} parent=27 // pred_fallthru
          _
      $region28: #{single_vq_forward.8} parent=5 // pred_fallthru
        _
      %p512 = scmp.le.s32.totalorder 2, %s13
      // Predicated region
      $region37: #{single_vq_forward.8} parent=5 // pred_check
        %p513 = pneg %p512
      $region38: #{single_vq_forward.8} parent=5 // pred_check_branch
        %515 = sbr.rel (%p513) target = $region40
      $region39: #{single_vq_forward.8} parent=5 // pred_region
        %s516 = ssub.s32 %s13, 2
        // Predicated region
        $region41: #{single_vq_forward.8} parent=39 // pred_check
          %p517 = pneg %p89
        $region42: #{single_vq_forward.8} parent=39 // pred_check_branch
          %519 = sbr.rel (%p517) target = $region44
        $region43: #{single_vq_forward.8} parent=39 // pred_region
          %p520 = scmp.lt.s32.totalorder %s19, 1
          %s521 = scalar_select %p520, %s19, 1
          %s522 = smul.addr %s521, 8
          %s523 = smul.addr %s522, 8
          %s524 = scalar_lea.vmem %s2, %s523
        $region44: #{single_vq_forward.8} parent=39 // pred_fallthru
          _
        // Predicated region
        $region45: #{single_vq_forward.8} parent=39 // pred_check
          %p525 = pneg %p115
        $region46: #{single_vq_forward.8} parent=39 // pred_check_branch
          %527 = sbr.rel (%p525) target = $region48
        $region47: #{single_vq_forward.8} parent=39 // pred_region
          %s528 = sand.u32 %s100, 1
          %s529 = scalar_lea.sflag [#allocation3], %s528
          %s530 = sand.u32 %s100, 1
          %s531 = smul.addr %s530, 16
          %s532 = scalar_lea.vmem [#allocation2], %s531
          %534 = dma.done %s529, 256
        $region48: #{single_vq_forward.8} parent=39 // pred_fallthru
          _
      $region40: #{single_vq_forward.8} parent=5 // pred_fallthru
        _
    $region6: #{single_vq_forward.8} parent=1 // loop_footer
      %s17 = sadd.s32 1, %s13
    $region7: #{single_vq_forward.8} parent=1 // loop_footer_branch
      %12 = sbr.rel target = $region3
    $region8: #{single_vq_forward.8} parent=1 // loop_exit
      _
    %535 = vsyncpa [#allocation3], 1
    %s536 = scalar_lea.sflag [#allocation3], 1
    %537 = vsyncpa %s536, 1

// kernel: single_vq_forward.9
$region0: #{single_vq_forward.9}
  #allocation0 [shape = 'u32[]', space=smem, size = 0x4, offset = 0x4, fixed_abs, tag = 'smem constant byte address 0x4 - core index']
  #allocation1 [shape = 'u32[72,128]{1,0:T(1,128)}', space=vmem, size = 0x9000, scoped, tag = 'internal scratch']
  %s0 = inlined_call_operand.vmem [shape: f32[2,32,256], index: 0, kind: input, shape index: {}]
  %s1 = inlined_call_operand.vmem [shape: f32[2,1,256], index: 1, kind: input, shape index: {}]
  %s2 = inlined_call_operand.vmem [shape: bf16[32,32], index: 2, kind: input, shape index: {}]
  %s3 = inlined_call_operand.vmem [shape: f32[32,1], index: 3, kind: input, shape index: {}]
  %s4 = inlined_call_operand.vmem [shape: bf16[3,32,96], index: 4, kind: input, shape index: {}]
  %s5 = inlined_call_operand.vmem [shape: f32[3,32,1], index: 5, kind: input, shape index: {}]
  %s6 = inlined_call_operand.vmem [shape: bf16[3,32,32], index: 6, kind: input, shape index: {}]
  %s7 = inlined_call_operand.vmem [shape: f32[3,32,1], index: 7, kind: input, shape index: {}]
  %s8 = inlined_call_operand.vmem [shape: f32[2,32,256], index: 8, kind: output, shape index: {}]
  %s9 = sld [smem:[#allocation0]]
  $region65: #{single_vq_forward.9} parent=0
    _
  %s11 = ssub.s32 1, %s9
  %s12 = scalar_select 0, %s11, %s9
  loop: start=0, step=1, limit=4
  $region2: #{single_vq_forward.9} parent=0 // loop_pre_header
    _
  $region3: #{single_vq_forward.9} parent=0 // loop_header
    %s14 = sphi 0, %s18
    %p15 = scmp.ge.s32.totalorder %s14, 4
    %s24 = sphi 0, %s26
    %s27 = sphi 0, %s24
    %s28 = sphi 0, %s27
    %s44 = sphi 0, %s28
    %s50 = sphi 0, %s52
    %s53 = sphi 0, %s50
    %s54 = sphi 0, %s53
    %s70 = sphi 0, %s54
    %s74 = sphi 0, %s74
    %s76 = sphi 0, %s74
    %s77 = sphi 0, %s76
    %s91 = sphi 0, %s77
    %s95 = sphi 0, %s95
    %s97 = sphi 0, %s95
    %s98 = sphi 0, %s97
    %s112 = sphi 0, %s98
    %s116 = sphi 0, %s116
    %s118 = sphi 0, %s116
    %s119 = sphi 0, %s118
    %s133 = sphi 0, %s119
    %s137 = sphi 0, %s137
    %s139 = sphi 0, %s137
    %s140 = sphi 0, %s139
    %s154 = sphi 0, %s140
    %s158 = sphi 0, %s158
    %s160 = sphi 0, %s158
    %s161 = sphi 0, %s160
    %s175 = sphi 0, %s161
    %s179 = sphi 0, %s179
    %s181 = sphi 0, %s179
    %s182 = sphi 0, %s181
    %s196 = sphi 0, %s182
    %s202 = sphi 0, %s204
    %s205 = sphi 0, %s202
    %s206 = sphi 0, %s205
    %s222 = sphi 0, %s206
  $region4: #{single_vq_forward.9} parent=0 // loop_header_branch
    %17 = sbr.rel (%p15) target = $region8
  $region5: #{single_vq_forward.9} parent=0 // loop_body
    %s19 = ssub.s32 %s14, 1
    %s20 = ssub.s32 %s14, 2
    %s21 = sadd.s32 %s14, 1
    %s22 = ssub.s32 %s14, %s21
    %p23 = scmp.eq.s32.totalorder %s22, 0
    %s25 = sadd.s32 %s24, 1
    %s26 = scalar_select %p23, %s24, %s25
    %p29 = pneg %p23
    %p30 = scmp.eq.s32.totalorder %s14, 1
    %p31 = por %p29, %p30
    %p32 = scmp.ne.s32.totalorder %s24, %s27
    %p33 = scmp.eq.s32.totalorder %s14, 0
    %p34 = por %p32, %p33
    %p35 = scmp.ne.s32.totalorder %s24, %s27
    %p36 = scmp.eq.s32.totalorder %s19, 1
    %p37 = por %p35, %p36
    %p38 = scmp.ne.s32.totalorder %s27, %s28
    %p39 = scmp.eq.s32.totalorder %s19, 0
    %p40 = por %p38, %p39
    %p41 = scmp.ne.s32.totalorder %s27, %s28
    %p42 = scmp.eq.s32.totalorder %s20, 1
    %p43 = por %p41, %p42
    %p45 = scmp.ne.s32.totalorder %s28, %s44
    %p46 = scmp.eq.s32.totalorder %s20, 0
    %p47 = por %p45, %p46
    %s48 = ssub.s32 %s14, %s21
    %p49 = scmp.eq.s32.totalorder %s48, 0
    %s51 = sadd.s32 %s50, 1
    %s52 = scalar_select %p49, %s50, %s51
    %p55 = pneg %p49
    %p56 = scmp.eq.s32.totalorder %s14, 1
    %p57 = por %p55, %p56
    %p58 = scmp.ne.s32.totalorder %s50, %s53
    %p59 = scmp.eq.s32.totalorder %s14, 0
    %p60 = por %p58, %p59
    %p61 = scmp.ne.s32.totalorder %s50, %s53
    %p62 = scmp.eq.s32.totalorder %s19, 1
    %p63 = por %p61, %p62
    %p64 = scmp.ne.s32.totalorder %s53, %s54
    %p65 = scmp.eq.s32.totalorder %s19, 0
    %p66 = por %p64, %p65
    %p67 = scmp.ne.s32.totalorder %s53, %s54
    %p68 = scmp.eq.s32.totalorder %s20, 1
    %p69 = por %p67, %p68
    %p71 = scmp.ne.s32.totalorder %s54, %s70
    %p72 = scmp.eq.s32.totalorder %s20, 0
    %p73 = por %p71, %p72
    %s75 = sadd.s32 %s74, 1
    %p78 = scmp.eq.s32.totalorder %s14, 1
    %p79 = scmp.ne.s32.totalorder %s74, %s76
    %p80 = scmp.eq.s32.totalorder %s14, 0
    %p81 = por %p79, %p80
    %p82 = scmp.ne.s32.totalorder %s74, %s76
    %p83 = scmp.eq.s32.totalorder %s19, 1
    %p84 = por %p82, %p83
    %p85 = scmp.ne.s32.totalorder %s76, %s77
    %p86 = scmp.eq.s32.totalorder %s19, 0
    %p87 = por %p85, %p86
    %p88 = scmp.ne.s32.totalorder %s76, %s77
    %p89 = scmp.eq.s32.totalorder %s20, 1
    %p90 = por %p88, %p89
    %p92 = scmp.ne.s32.totalorder %s77, %s91
    %p93 = scmp.eq.s32.totalorder %s20, 0
    %p94 = por %p92, %p93
    %s96 = sadd.s32 %s95, 1
    %p99 = scmp.eq.s32.totalorder %s14, 1
    %p100 = scmp.ne.s32.totalorder %s95, %s97
    %p101 = scmp.eq.s32.totalorder %s14, 0
    %p102 = por %p100, %p101
    %p103 = scmp.ne.s32.totalorder %s95, %s97
    %p104 = scmp.eq.s32.totalorder %s19, 1
    %p105 = por %p103, %p104
    %p106 = scmp.ne.s32.totalorder %s97, %s98
    %p107 = scmp.eq.s32.totalorder %s19, 0
    %p108 = por %p106, %p107
    %p109 = scmp.ne.s32.totalorder %s97, %s98
    %p110 = scmp.eq.s32.totalorder %s20, 1
    %p111 = por %p109, %p110
    %p113 = scmp.ne.s32.totalorder %s98, %s112
    %p114 = scmp.eq.s32.totalorder %s20, 0
    %p115 = por %p113, %p114
    %s117 = sadd.s32 %s116, 1
    %p120 = scmp.eq.s32.totalorder %s14, 1
    %p121 = scmp.ne.s32.totalorder %s116, %s118
    %p122 = scmp.eq.s32.totalorder %s14, 0
    %p123 = por %p121, %p122
    %p124 = scmp.ne.s32.totalorder %s116, %s118
    %p125 = scmp.eq.s32.totalorder %s19, 1
    %p126 = por %p124, %p125
    %p127 = scmp.ne.s32.totalorder %s118, %s119
    %p128 = scmp.eq.s32.totalorder %s19, 0
    %p129 = por %p127, %p128
    %p130 = scmp.ne.s32.totalorder %s118, %s119
    %p131 = scmp.eq.s32.totalorder %s20, 1
    %p132 = por %p130, %p131
    %p134 = scmp.ne.s32.totalorder %s119, %s133
    %p135 = scmp.eq.s32.totalorder %s20, 0
    %p136 = por %p134, %p135
    %s138 = sadd.s32 %s137, 1
    %p141 = scmp.eq.s32.totalorder %s14, 1
    %p142 = scmp.ne.s32.totalorder %s137, %s139
    %p143 = scmp.eq.s32.totalorder %s14, 0
    %p144 = por %p142, %p143
    %p145 = scmp.ne.s32.totalorder %s137, %s139
    %p146 = scmp.eq.s32.totalorder %s19, 1
    %p147 = por %p145, %p146
    %p148 = scmp.ne.s32.totalorder %s139, %s140
    %p149 = scmp.eq.s32.totalorder %s19, 0
    %p150 = por %p148, %p149
    %p151 = scmp.ne.s32.totalorder %s139, %s140
    %p152 = scmp.eq.s32.totalorder %s20, 1
    %p153 = por %p151, %p152
    %p155 = scmp.ne.s32.totalorder %s140, %s154
    %p156 = scmp.eq.s32.totalorder %s20, 0
    %p157 = por %p155, %p156
    %s159 = sadd.s32 %s158, 1
    %p162 = scmp.eq.s32.totalorder %s14, 1
    %p163 = scmp.ne.s32.totalorder %s158, %s160
    %p164 = scmp.eq.s32.totalorder %s14, 0
    %p165 = por %p163, %p164
    %p166 = scmp.ne.s32.totalorder %s158, %s160
    %p167 = scmp.eq.s32.totalorder %s19, 1
    %p168 = por %p166, %p167
    %p169 = scmp.ne.s32.totalorder %s160, %s161
    %p170 = scmp.eq.s32.totalorder %s19, 0
    %p171 = por %p169, %p170
    %p172 = scmp.ne.s32.totalorder %s160, %s161
    %p173 = scmp.eq.s32.totalorder %s20, 1
    %p174 = por %p172, %p173
    %p176 = scmp.ne.s32.totalorder %s161, %s175
    %p177 = scmp.eq.s32.totalorder %s20, 0
    %p178 = por %p176, %p177
    %s180 = sadd.s32 %s179, 1
    %p183 = scmp.eq.s32.totalorder %s14, 1
    %p184 = scmp.ne.s32.totalorder %s179, %s181
    %p185 = scmp.eq.s32.totalorder %s14, 0
    %p186 = por %p184, %p185
    %p187 = scmp.ne.s32.totalorder %s179, %s181
    %p188 = scmp.eq.s32.totalorder %s19, 1
    %p189 = por %p187, %p188
    %p190 = scmp.ne.s32.totalorder %s181, %s182
    %p191 = scmp.eq.s32.totalorder %s19, 0
    %p192 = por %p190, %p191
    %p193 = scmp.ne.s32.totalorder %s181, %s182
    %p194 = scmp.eq.s32.totalorder %s20, 1
    %p195 = por %p193, %p194
    %p197 = scmp.ne.s32.totalorder %s182, %s196
    %p198 = scmp.eq.s32.totalorder %s20, 0
    %p199 = por %p197, %p198
    %s200 = ssub.s32 %s14, %s21
    %p201 = scmp.eq.s32.totalorder %s200, 0
    %s203 = sadd.s32 %s202, 1
    %s204 = scalar_select %p201, %s202, %s203
    %p207 = pneg %p201
    %p208 = scmp.eq.s32.totalorder %s14, 1
    %p209 = por %p207, %p208
    %p210 = scmp.ne.s32.totalorder %s202, %s205
    %p211 = scmp.eq.s32.totalorder %s14, 0
    %p212 = por %p210, %p211
    %p213 = scmp.ne.s32.totalorder %s202, %s205
    %p214 = scmp.eq.s32.totalorder %s19, 1
    %p215 = por %p213, %p214
    %p216 = scmp.ne.s32.totalorder %s205, %s206
    %p217 = scmp.eq.s32.totalorder %s19, 0
    %p218 = por %p216, %p217
    %p219 = scmp.ne.s32.totalorder %s205, %s206
    %p220 = scmp.eq.s32.totalorder %s20, 1
    %p221 = por %p219, %p220
    %p223 = scmp.ne.s32.totalorder %s206, %s222
    %p224 = scmp.eq.s32.totalorder %s20, 0
    %p225 = por %p223, %p224
    %p226 = scmp.le.s32.totalorder 1, %s14
    %p227 = scmp.lt.s32.totalorder %s14, 3
    %p228 = pnand %p226, %p227
    %p229 = pneg %p228
    // Predicated region
    $region9: #{single_vq_forward.9} parent=5 // pred_check
      _
    $region10: #{single_vq_forward.9} parent=5 // pred_check_branch
      %231 = sbr.rel (%p228) target = $region12
    $region11: #{single_vq_forward.9} parent=5 // pred_region
      %s232 = ssub.s32 %s14, 1
      // Predicated region
      $region13: #{single_vq_forward.9} parent=11 // pred_check
        %p233 = pneg %p87
      $region14: #{single_vq_forward.9} parent=11 // pred_check_branch
        %235 = sbr.rel (%p233) target = $region16
      $region15: #{single_vq_forward.9} parent=11 // pred_region
        _
      $region16: #{single_vq_forward.9} parent=11 // pred_fallthru
        _
      // Predicated region
      $region17: #{single_vq_forward.9} parent=11 // pred_check
        %p236 = pneg %p108
      $region18: #{single_vq_forward.9} parent=11 // pred_check_branch
        %238 = sbr.rel (%p236) target = $region20
      $region19: #{single_vq_forward.9} parent=11 // pred_region
        _
      $region20: #{single_vq_forward.9} parent=11 // pred_fallthru
        _
      // Predicated region
      $region21: #{single_vq_forward.9} parent=11 // pred_check
        %p239 = pneg %p129
      $region22: #{single_vq_forward.9} parent=11 // pred_check_branch
        %241 = sbr.rel (%p239) target = $region24
      $region23: #{single_vq_forward.9} parent=11 // pred_region
        _
      $region24: #{single_vq_forward.9} parent=11 // pred_fallthru
        _
      // Predicated region
      $region25: #{single_vq_forward.9} parent=11 // pred_check
        %p242 = pneg %p150
      $region26: #{single_vq_forward.9} parent=11 // pred_check_branch
        %244 = sbr.rel (%p242) target = $region28
      $region27: #{single_vq_forward.9} parent=11 // pred_region
        _
      $region28: #{single_vq_forward.9} parent=11 // pred_fallthru
        _
      // Predicated region
      $region29: #{single_vq_forward.9} parent=11 // pred_check
        %p245 = pneg %p171
      $region30: #{single_vq_forward.9} parent=11 // pred_check_branch
        %247 = sbr.rel (%p245) target = $region32
      $region31: #{single_vq_forward.9} parent=11 // pred_region
        _
      $region32: #{single_vq_forward.9} parent=11 // pred_fallthru
        _
      // Predicated region
      $region33: #{single_vq_forward.9} parent=11 // pred_check
        %p248 = pneg %p192
      $region34: #{single_vq_forward.9} parent=11 // pred_check_branch
        %250 = sbr.rel (%p248) target = $region36
      $region35: #{single_vq_forward.9} parent=11 // pred_region
        _
      $region36: #{single_vq_forward.9} parent=11 // pred_fallthru
        _
    $region12: #{single_vq_forward.9} parent=5 // pred_fallthru
      _
    %p251 = scmp.lt.s32.totalorder %s14, 2
    // Predicated region
    $region37: #{single_vq_forward.9} parent=5 // pred_check
      %p252 = pneg %p251
    $region38: #{single_vq_forward.9} parent=5 // pred_check_branch
      %254 = sbr.rel (%p252) target = $region40
    $region39: #{single_vq_forward.9} parent=5 // pred_region
      // Predicated region
      $region41: #{single_vq_forward.9} parent=39 // pred_check
        %p255 = pneg %p34
      $region42: #{single_vq_forward.9} parent=39 // pred_check_branch
        %257 = sbr.rel (%p255) target = $region44
      $region43: #{single_vq_forward.9} parent=39 // pred_region
        %p258 = scmp.lt.s32.totalorder %s14, 1
        %s259 = scalar_select %p258, %s14, 1
        %s260 = smul.addr %s259, 8
        %s261 = smul.addr %s260, 8
        %s262 = scalar_lea.vmem %s0, %s261
      $region44: #{single_vq_forward.9} parent=39 // pred_fallthru
        _
      // Predicated region
      $region45: #{single_vq_forward.9} parent=39 // pred_check
        %p263 = pneg %p60
      $region46: #{single_vq_forward.9} parent=39 // pred_check_branch
        %265 = sbr.rel (%p263) target = $region48
      $region47: #{single_vq_forward.9} parent=39 // pred_region
        %p266 = scmp.lt.s32.totalorder %s14, 1
        %s267 = scalar_select %p266, %s14, 1
        %s268 = smul.addr %s267, 2
        %s269 = scalar_lea.vmem %s1, %s268
      $region48: #{single_vq_forward.9} parent=39 // pred_fallthru
        _
    $region40: #{single_vq_forward.9} parent=5 // pred_fallthru
      _
    %p270 = scmp.le.s32.totalorder 1, %s14
    %p271 = scmp.lt.s32.totalorder %s14, 3
    %p272 = pnand %p270, %p271
    %p273 = pneg %p272
    // Predicated region
    $region49: #{single_vq_forward.9} parent=5 // pred_check
      _
    $region50: #{single_vq_forward.9} parent=5 // pred_check_branch
      %275 = sbr.rel (%p272) target = $region52
    $region51: #{single_vq_forward.9} parent=5 // pred_region
      %s276 = ssub.s32 %s14, 1
      %p277 = scmp.lt.s32.totalorder %s19, 1
      %s278 = scalar_select %p277, %s19, 1
      %s279 = smul.addr %s278, 8
      %s280 = smul.addr %s279, 8
      %s281 = scalar_lea.vmem %s0, %s280
      %p282 = pneg %p40
      %p283 = pneg %p37
      %p284 = scmp.lt.s32.totalorder %s19, 1
      %s285 = scalar_select %p284, %s19, 1
      %s286 = smul.addr %s285, 2
      %s287 = scalar_lea.vmem %s1, %s286
      %p288 = pneg %p66
      %p289 = pneg %p63
      %p290 = pneg %p87
      %p291 = pneg %p84
      %p292 = pneg %p108
      %p293 = pneg %p105
      %p294 = pneg %p129
      %p295 = pneg %p126
      %p296 = pneg %p150
      %p297 = pneg %p147
      %p298 = pneg %p171
      %p299 = pneg %p168
      %p300 = pneg %p192
      %p301 = pneg %p189
      %p302 = pneg %p218
      %p303 = pneg %p215
      %p304 = scmp.lt.s32.totalorder %s19, 1
      %s305 = scalar_select %p304, %s19, 1
      %s306 = smul.addr %s305, 8
      %s307 = smul.addr %s306, 8
      %s308 = scalar_lea.vmem %s8, %s307
      %p309 = scmp.lt.s32.totalorder %s19, 1
      %s310 = scalar_select %p309, %s19, 1
      %s311 = smul.addr %s310, 8
      %s312 = smul.addr %s311, 8
      %s313 = scalar_lea.vmem %s0, %s312
      %p314 = scmp.lt.s32.totalorder %s19, 1
      %s315 = scalar_select %p314, %s19, 1
      %s316 = smul.addr %s315, 2
      %s317 = scalar_lea.vmem %s1, %s316
      %p318 = scmp.lt.s32.totalorder %s19, 1
      %s319 = scalar_select %p318, %s19, 1
      %s320 = smul.addr %s319, 8
      %s321 = smul.addr %s320, 8
      %s322 = scalar_lea.vmem %s8, %s321
      %v324 = vld [vmem:[%s313] sm:$0xff]
      %v325 = vld [vmem:[%s313 + $0x8] sm:$0xff]
      %v326 = vld [vmem:[%s313 + $0x10] sm:$0xff]
      %v327 = vld [vmem:[%s313 + $0x18] sm:$0xff]
      %v328 = vld [vmem:[%s313 + $0x20] sm:$0xff]
      %v329 = vld [vmem:[%s313 + $0x28] sm:$0xff]
      %v330 = vld [vmem:[%s313 + $0x30] sm:$0xff]
      %v331 = vld [vmem:[%s313 + $0x38] sm:$0xff]
      %v332 = vld [vmem:[%s317] sm:$0x3]
      %v333 = vld [vmem:[%s2] sm:$0xf]
      %v334 = vld [vmem:[%s2 + $0x4] sm:$0xf]
      %v335 = vld [vmem:[%s2 + $0x8] sm:$0xf]
      %v336 = vld [vmem:[%s2 + $0xc] sm:$0xf]
      %v337 = vpack.c.bf16 %v326, %v324
      %v338 = vpack.c.bf16 %v327, %v325
      %v339 = vpack.c.bf16 %v330, %v328
      %v340 = vpack.c.bf16 %v331, %v329
      %v341 = vld [vmem:[%s3] sm:$0xff]
      %v342 = vld [vmem:[%s3 + $0x8] sm:$0xff]
      %v343 = vld [vmem:[%s3 + $0x10] sm:$0xff]
      %v344 = vld [vmem:[%s3 + $0x18] sm:$0xff]
      %346 = vset.pattern.permute.xlu0 0
      %347 = vperm.xlu0 %346, %v341
      %v348 = vpop.permute.xlu0 %347
      %351 = vset.pattern.permute.xlu0 0
      %352 = vperm.xlu0 %351, %v342
      %v353 = vpop.permute.xlu0 %352
      %356 = vset.pattern.permute.xlu0 0
      %357 = vperm.xlu0 %356, %v343
      %v358 = vpop.permute.xlu0 %357
      %361 = vset.pattern.permute.xlu0 0
      %362 = vperm.xlu0 %361, %v344
      %v363 = vpop.permute.xlu0 %362
      %v369 = vunpack.c.l.b16 %v333
      %v370 = vunpack.c.l.b16 %v334
      %v371 = vunpack.c.l.b16 %v335
      %v372 = vunpack.c.l.b16 %v336
      %v373 = vpack.c.b16 %v370, %v369
      %v374 = vpack.c.b16 %v372, %v371
      %vm375 = vcmask 261120
      %v377 = vsel %vm375, %v373, 0
      %v380 = vsel %vm375, %v374, 0
      %382 = vmatpush.bf16.msra.mxu0 0
      %383 = vmatpush.bf16.msra.mxu0 0
      %384 = vmatpush.bf16.msra.mxu0 0
      %385 = vmatpush.bf16.msra.mxu0 0
      %386 = vmatpush.bf16.msra.mxu0 0
      %387 = vmatpush.bf16.msra.mxu0 0
      %388 = vmatpush.bf16.msra.mxu0 %v339
      %389 = vmatpush.bf16.msra.mxu0 %v337
      %390 = vmatmul.bf16.gmra.mxu0 %v377
      %v391 = vpop.f32.mrf.mxu0
      %v392 = vadd.f32 %v348, %v391
      %v393 = vpop.f32.mrf.mxu0
      %v394 = vadd.f32 %v353, %v393
      %395 = vmatmul.bf16.gmra.mxu0 %v380
      %v396 = vpop.f32.mrf.mxu0
      %v397 = vadd.f32 %v358, %v396
      %v398 = vpop.f32.mrf.mxu0
      %v399 = vadd.f32 %v363, %v398
      %400 = vdwg.mxu0
      %401 = vmatpush.bf16.msra.mxu0 0
      %402 = vmatpush.bf16.msra.mxu0 0
      %403 = vmatpush.bf16.msra.mxu0 0
      %404 = vmatpush.bf16.msra.mxu0 0
      %405 = vmatpush.bf16.msra.mxu0 0
      %406 = vmatpush.bf16.msra.mxu0 0
      %407 = vmatpush.bf16.msra.mxu0 %v340
      %408 = vmatpush.bf16.msra.mxu0 %v338
      %409 = vmatmul.bf16.gmra.mxu0 %v377
      %v410 = vpop.f32.mrf.mxu0
      %v411 = vadd.f32 %v348, %v410
      %v412 = vpop.f32.mrf.mxu0
      %v413 = vadd.f32 %v353, %v412
      %414 = vmatmul.bf16.gmra.mxu0 %v380
      %v415 = vpop.f32.mrf.mxu0
      %v416 = vadd.f32 %v358, %v415
      %v417 = vpop.f32.mrf.mxu0
      %v418 = vadd.f32 %v363, %v417
      %419 = vdwg.mxu0
      %v420 = vlaneseq
      %v421 = vand.u32 %v420, 127
      %v422 = vadd.s32 %v421, 128
      %v423 = vpack.c.bf16 %v411, %v392
      %v424 = vpack.c.bf16 %v413, %v394
      %v425 = vpack.c.bf16 %v416, %v397
      %v426 = vpack.c.bf16 %v418, %v399
      %vm427 = vcmp.ge.s32.totalorder %v421, 1
      %vm428 = vcmp.ge.s32.totalorder %v422, 1
      %429 = vrot.lane.b32.xlu0 %v392, 1
      %v430 = vpop.permute.xlu0 %429
      %431 = vrot.lane.b32.xlu0 %v394, 1
      %v432 = vpop.permute.xlu0 %431
      %433 = vrot.lane.b32.xlu0 %v397, 1
      %v434 = vpop.permute.xlu0 %433
      %435 = vrot.lane.b32.xlu0 %v399, 1
      %v436 = vpop.permute.xlu0 %435
      %437 = vrot.lane.b32.xlu0 %v411, 1
      %v438 = vpop.permute.xlu0 %437
      %439 = vrot.lane.b32.xlu0 %v413, 1
      %v440 = vpop.permute.xlu0 %439
      %441 = vrot.lane.b32.xlu0 %v416, 1
      %v442 = vpop.permute.xlu0 %441
      %443 = vrot.lane.b32.xlu0 %v418, 1
      %v444 = vpop.permute.xlu0 %443
      %vm445 = vcmp.lt.s32.totalorder %v421, 1
      %v446 = vsel %vm445, %v430, %v438
      %v447 = vsel %vm445, %v432, %v440
      %v448 = vsel %vm445, %v434, %v442
      %v449 = vsel %vm445, %v436, %v444
      %v450 = vsel %vm445, %v438, %v430
      %v451 = vsel %vm445, %v440, %v432
      %v452 = vsel %vm445, %v442, %v434
      %v453 = vsel %vm445, %v444, %v436
      %v454 = vsel %vm427, 1, 0
      %v455 = vsel %vm428, 1, 0
      %vm456 = vcmp.eq.s32.totalorder %v454, 1
      %vm457 = vcmp.eq.s32.totalorder %v455, 1
      %v458 = vsel %vm456, %v450, 0.0
      %v459 = vsel %vm457, %v446, 0.0
      %v460 = vsel %vm456, %v451, 0.0
      %v461 = vsel %vm457, %v447, 0.0
      %v462 = vsel %vm456, %v452, 0.0
      %v463 = vsel %vm457, %v448, 0.0
      %v464 = vsel %vm456, %v453, 0.0
      %v465 = vsel %vm457, %v449, 0.0
      %v466 = vpack.c.bf16 %v459, %v458
      %v467 = vpack.c.bf16 %v461, %v460
      %v468 = vpack.c.bf16 %v463, %v462
      %v469 = vpack.c.bf16 %v465, %v464
      %vm470 = vcmp.lt.s32.totalorder %v421, 255
      %vm471 = vcmp.lt.s32.totalorder %v422, 255
      %472 = vrot.lane.b32.xlu0 %v392, 127
      %v473 = vpop.permute.xlu0 %472
      %474 = vrot.lane.b32.xlu0 %v394, 127
      %v475 = vpop.permute.xlu0 %474
      %476 = vrot.lane.b32.xlu0 %v397, 127
      %v477 = vpop.permute.xlu0 %476
      %478 = vrot.lane.b32.xlu0 %v399, 127
      %v479 = vpop.permute.xlu0 %478
      %480 = vrot.lane.b32.xlu0 %v411, 127
      %v481 = vpop.permute.xlu0 %480
      %482 = vrot.lane.b32.xlu0 %v413, 127
      %v483 = vpop.permute.xlu0 %482
      %484 = vrot.lane.b32.xlu0 %v416, 127
      %v485 = vpop.permute.xlu0 %484
      %486 = vrot.lane.b32.xlu0 %v418, 127
      %v487 = vpop.permute.xlu0 %486
      %vm488 = vcmp.lt.s32.totalorder %v421, 127
      %v489 = vsel %vm488, %v473, %v481
      %v490 = vsel %vm488, %v475, %v483
      %v491 = vsel %vm488, %v477, %v485
      %v492 = vsel %vm488, %v479, %v487
      %v493 = vsel %vm488, %v481, %v473
      %v494 = vsel %vm488, %v483, %v475
      %v495 = vsel %vm488, %v485, %v477
      %v496 = vsel %vm488, %v487, %v479
      %v497 = vsel %vm470, 1, 0
      %v498 = vsel %vm471, 1, 0
      %vm499 = vcmp.eq.s32.totalorder %v497, 1
      %vm500 = vcmp.eq.s32.totalorder %v498, 1
      %v501 = vsel %vm499, %v489, 0.0
      %v502 = vsel %vm500, %v493, 0.0
      %v503 = vsel %vm499, %v490, 0.0
      %v504 = vsel %vm500, %v494, 0.0
      %v505 = vsel %vm499, %v491, 0.0
      %v506 = vsel %vm500, %v495, 0.0
      %v507 = vsel %vm499, %v492, 0.0
      %v508 = vsel %vm500, %v496, 0.0
      %v509 = vpack.c.bf16 %v502, %v501
      %v510 = vpack.c.bf16 %v504, %v503
      %v511 = vpack.c.bf16 %v506, %v505
      %v512 = vpack.c.bf16 %v508, %v507
      %v517 = vunpack.c.l.b16 %v466
      %v518 = vunpack.c.h.b16 %v466
      %v519 = vunpack.c.l.b16 %v467
      %v520 = vunpack.c.h.b16 %v467
      %v521 = vunpack.c.l.b16 %v468
      %v522 = vunpack.c.h.b16 %v468
      %v523 = vunpack.c.l.b16 %v469
      %v524 = vunpack.c.h.b16 %v469
      %v525 = vpack.c.b16 %v519, %v517
      %v526 = vpack.c.b16 %v520, %v518
      %v527 = vpack.c.b16 %v523, %v521
      %v528 = vpack.c.b16 %v524, %v522
      %v537 = vunpack.c.l.b16 %v423
      %v538 = vunpack.c.h.b16 %v423
      %v539 = vunpack.c.l.b16 %v424
      %v540 = vunpack.c.h.b16 %v424
      %v541 = vunpack.c.l.b16 %v425
      %v542 = vunpack.c.h.b16 %v425
      %v543 = vunpack.c.l.b16 %v426
      %v544 = vunpack.c.h.b16 %v426
      %v545 = vpack.c.b16 %v539, %v537
      %v546 = vpack.c.b16 %v540, %v538
      %v547 = vpack.c.b16 %v543, %v541
      %v548 = vpack.c.b16 %v544, %v542
      %v557 = vunpack.c.l.b16 %v509
      %v558 = vunpack.c.h.b16 %v509
      %v559 = vunpack.c.l.b16 %v510
      %v560 = vunpack.c.h.b16 %v510
      %v561 = vunpack.c.l.b16 %v511
      %v562 = vunpack.c.h.b16 %v511
      %v563 = vunpack.c.l.b16 %v512
      %v564 = vunpack.c.h.b16 %v512
      %v565 = vpack.c.b16 %v559, %v557
      %v566 = vpack.c.b16 %v560, %v558
      %v567 = vpack.c.b16 %v563, %v561
      %v568 = vpack.c.b16 %v564, %v562
      %v573 = vld [vmem:[%s4] sm:$0xf]
      %v574 = vld [vmem:[%s4 + $0x4] sm:$0xf]
      %v575 = vld [vmem:[%s4 + $0x8] sm:$0xf]
      %v576 = vld [vmem:[%s4 + $0xc] sm:$0xf]
      %v577 = vld [vmem:[%s5] sm:$0xff]
      %v578 = vld [vmem:[%s5 + $0x8] sm:$0xff]
      %v579 = vld [vmem:[%s5 + $0x10] sm:$0xff]
      %v580 = vld [vmem:[%s5 + $0x18] sm:$0xff]
      %582 = vset.pattern.permute.xlu0 0
      %583 = vperm.xlu0 %582, %v577
      %v584 = vpop.permute.xlu0 %583
      %587 = vset.pattern.permute.xlu0 0
      %588 = vperm.xlu0 %587, %v578
      %v589 = vpop.permute.xlu0 %588
      %592 = vset.pattern.permute.xlu0 0
      %593 = vperm.xlu0 %592, %v579
      %v594 = vpop.permute.xlu0 %593
      %597 = vset.pattern.permute.xlu0 0
      %598 = vperm.xlu0 %597, %v580
      %v599 = vpop.permute.xlu0 %598
      %v605 = vunpack.c.l.b16 %v573
      %v606 = vunpack.c.l.b16 %v574
      %v607 = vunpack.c.l.b16 %v575
      %v608 = vunpack.c.l.b16 %v576
      %v609 = vpack.c.b16 %v606, %v605
      %v610 = vpack.c.b16 %v608, %v607
      %vm611 = vcmask 785408
      %v613 = vsel %vm611, %v609, 0
      %v616 = vsel %vm611, %v610, 0
      %618 = vmatpush.bf16.msra.mxu0 0
      %619 = vmatpush.bf16.msra.mxu0 0
      %620 = vmatpush.bf16.msra.mxu0 %v567
      %621 = vmatpush.bf16.msra.mxu0 %v565
      %622 = vmatpush.bf16.msra.mxu0 %v547
      %623 = vmatpush.bf16.msra.mxu0 %v545
      %624 = vmatpush.bf16.msra.mxu0 %v527
      %625 = vmatpush.bf16.msra.mxu0 %v525
      %626 = vmatmul.bf16.gmra.mxu0 %v613
      %v627 = vpop.f32.mrf.mxu0
      %v628 = vadd.f32 %v584, %v627
      %v629 = vpop.f32.mrf.mxu0
      %v630 = vadd.f32 %v589, %v629
      %631 = vmatmul.bf16.gmra.mxu0 %v616
      %v632 = vpop.f32.mrf.mxu0
      %v633 = vadd.f32 %v594, %v632
      %v634 = vpop.f32.mrf.mxu0
      %v635 = vadd.f32 %v599, %v634
      %636 = vdwg.mxu0
      %637 = vmatpush.bf16.msra.mxu0 0
      %638 = vmatpush.bf16.msra.mxu0 0
      %639 = vmatpush.bf16.msra.mxu0 %v568
      %640 = vmatpush.bf16.msra.mxu0 %v566
      %641 = vmatpush.bf16.msra.mxu0 %v548
      %642 = vmatpush.bf16.msra.mxu0 %v546
      %643 = vmatpush.bf16.msra.mxu0 %v528
      %644 = vmatpush.bf16.msra.mxu0 %v526
      %645 = vmatmul.bf16.gmra.mxu0 %v613
      %v646 = vpop.f32.mrf.mxu0
      %v647 = vadd.f32 %v584, %v646
      %v648 = vpop.f32.mrf.mxu0
      %v649 = vadd.f32 %v589, %v648
      %650 = vmatmul.bf16.gmra.mxu0 %v616
      %v651 = vpop.f32.mrf.mxu0
      %v652 = vadd.f32 %v594, %v651
      %v653 = vpop.f32.mrf.mxu0
      %v654 = vadd.f32 %v599, %v653
      %655 = vdwg.mxu0
      %v656 = vmax.f32 %v628, 0.0
      %v657 = vmax.f32 %v647, 0.0
      %v658 = vmax.f32 %v630, 0.0
      %v659 = vmax.f32 %v649, 0.0
      %v660 = vmax.f32 %v633, 0.0
      %v661 = vmax.f32 %v652, 0.0
      %v662 = vmax.f32 %v635, 0.0
      %v663 = vmax.f32 %v654, 0.0
      %v664 = vpack.c.bf16 %v658, %v656
      %v665 = vpack.c.bf16 %v659, %v657
      %v666 = vpack.c.bf16 %v662, %v660
      %v667 = vpack.c.bf16 %v663, %v661
      %v668 = vld [vmem:[%s6] sm:$0xf]
      %v669 = vld [vmem:[%s6 + $0x4] sm:$0xf]
      %v670 = vld [vmem:[%s6 + $0x8] sm:$0xf]
      %v671 = vld [vmem:[%s6 + $0xc] sm:$0xf]
      %v672 = vld [vmem:[%s7] sm:$0xff]
      %v673 = vld [vmem:[%s7 + $0x8] sm:$0xff]
      %v674 = vld [vmem:[%s7 + $0x10] sm:$0xff]
      %v675 = vld [vmem:[%s7 + $0x18] sm:$0xff]
      %677 = vset.pattern.permute.xlu0 0
      %678 = vperm.xlu0 %677, %v672
      %v679 = vpop.permute.xlu0 %678
      %682 = vset.pattern.permute.xlu0 0
      %683 = vperm.xlu0 %682, %v673
      %v684 = vpop.permute.xlu0 %683
      %687 = vset.pattern.permute.xlu0 0
      %688 = vperm.xlu0 %687, %v674
      %v689 = vpop.permute.xlu0 %688
      %692 = vset.pattern.permute.xlu0 0
      %693 = vperm.xlu0 %692, %v675
      %v694 = vpop.permute.xlu0 %693
      %v700 = vunpack.c.l.b16 %v668
      %v701 = vunpack.c.l.b16 %v669
      %v702 = vunpack.c.l.b16 %v670
      %v703 = vunpack.c.l.b16 %v671
      %v704 = vpack.c.b16 %v701, %v700
      %v705 = vpack.c.b16 %v703, %v702
      %v707 = vsel %vm375, %v704, 0
      %v710 = vsel %vm375, %v705, 0
      %712 = vmatpush.bf16.msra.mxu0 0
      %713 = vmatpush.bf16.msra.mxu0 0
      %714 = vmatpush.bf16.msra.mxu0 0
      %715 = vmatpush.bf16.msra.mxu0 0
      %716 = vmatpush.bf16.msra.mxu0 0
      %717 = vmatpush.bf16.msra.mxu0 0
      %718 = vmatpush.bf16.msra.mxu0 %v666
      %719 = vmatpush.bf16.msra.mxu0 %v664
      %720 = vmatmul.bf16.gmra.mxu0 %v707
      %v721 = vpop.f32.mrf.mxu0
      %v722 = vadd.f32 %v679, %v721
      %v723 = vpop.f32.mrf.mxu0
      %v724 = vadd.f32 %v684, %v723
      %725 = vmatmul.bf16.gmra.mxu0 %v710
      %v726 = vpop.f32.mrf.mxu0
      %v727 = vadd.f32 %v689, %v726
      %v728 = vpop.f32.mrf.mxu0
      %v729 = vadd.f32 %v694, %v728
      %730 = vdwg.mxu0
      %731 = vmatpush.bf16.msra.mxu0 0
      %732 = vmatpush.bf16.msra.mxu0 0
      %733 = vmatpush.bf16.msra.mxu0 0
      %734 = vmatpush.bf16.msra.mxu0 0
      %735 = vmatpush.bf16.msra.mxu0 0
      %736 = vmatpush.bf16.msra.mxu0 0
      %737 = vmatpush.bf16.msra.mxu0 %v667
      %738 = vmatpush.bf16.msra.mxu0 %v665
      %739 = vmatmul.bf16.gmra.mxu0 %v707
      %v740 = vpop.f32.mrf.mxu0
      %v741 = vadd.f32 %v679, %v740
      %v742 = vpop.f32.mrf.mxu0
      %v743 = vadd.f32 %v684, %v742
      %744 = vmatmul.bf16.gmra.mxu0 %v710
      %v745 = vpop.f32.mrf.mxu0
      %v746 = vadd.f32 %v689, %v745
      %v747 = vpop.f32.mrf.mxu0
      %v748 = vadd.f32 %v694, %v747
      %749 = vdwg.mxu0
      %v750 = vadd.f32 %v392, %v722
      %v751 = vadd.f32 %v411, %v741
      %v752 = vadd.f32 %v394, %v724
      %v753 = vadd.f32 %v413, %v743
      %v754 = vadd.f32 %v397, %v727
      %v755 = vadd.f32 %v416, %v746
      %v756 = vadd.f32 %v399, %v729
      %v757 = vadd.f32 %v418, %v748
      %v759 = vperm.slane %v332, 0
      %v760 = vperm.slane %v332, 1
      %v763 = vmul.f32 %v750, %v759
      %v764 = vmul.f32 %v751, %v760
      %v765 = vmul.f32 %v752, %v759
      %v766 = vmul.f32 %v753, %v760
      %v767 = vmul.f32 %v754, %v759
      %v768 = vmul.f32 %v755, %v760
      %v769 = vmul.f32 %v756, %v759
      %v770 = vmul.f32 %v757, %v760
      %v771 = vpack.c.bf16 %v764, %v763
      %v772 = vpack.c.bf16 %v766, %v765
      %v773 = vpack.c.bf16 %v768, %v767
      %v774 = vpack.c.bf16 %v770, %v769
      %vm775 = vcmp.ge.s32.totalorder %v421, 2
      %vm776 = vcmp.ge.s32.totalorder %v422, 2
      %777 = vrot.lane.b32.xlu0 %v763, 2
      %v778 = vpop.permute.xlu0 %777
      %779 = vrot.lane.b32.xlu0 %v765, 2
      %v780 = vpop.permute.xlu0 %779
      %781 = vrot.lane.b32.xlu0 %v767, 2
      %v782 = vpop.permute.xlu0 %781
      %783 = vrot.lane.b32.xlu0 %v769, 2
      %v784 = vpop.permute.xlu0 %783
      %785 = vrot.lane.b32.xlu0 %v764, 2
      %v786 = vpop.permute.xlu0 %785
      %787 = vrot.lane.b32.xlu0 %v766, 2
      %v788 = vpop.permute.xlu0 %787
      %789 = vrot.lane.b32.xlu0 %v768, 2
      %v790 = vpop.permute.xlu0 %789
      %791 = vrot.lane.b32.xlu0 %v770, 2
      %v792 = vpop.permute.xlu0 %791
      %vm793 = vcmp.lt.s32.totalorder %v421, 2
      %v794 = vsel %vm793, %v778, %v786
      %v795 = vsel %vm793, %v780, %v788
      %v796 = vsel %vm793, %v782, %v790
      %v797 = vsel %vm793, %v784, %v792
      %v798 = vsel %vm793, %v786, %v778
      %v799 = vsel %vm793, %v788, %v780
      %v800 = vsel %vm793, %v790, %v782
      %v801 = vsel %vm793, %v792, %v784
      %v802 = vsel %vm775, 1, 0
      %v803 = vsel %vm776, 1, 0
      %vm804 = vcmp.eq.s32.totalorder %v802, 1
      %vm805 = vcmp.eq.s32.totalorder %v803, 1
      %v806 = vsel %vm804, %v798, 0.0
      %v807 = vsel %vm805, %v794, 0.0
      %v808 = vsel %vm804, %v799, 0.0
      %v809 = vsel %vm805, %v795, 0.0
      %v810 = vsel %vm804, %v800, 0.0
      %v811 = vsel %vm805, %v796, 0.0
      %v812 = vsel %vm804, %v801, 0.0
      %v813 = vsel %vm805, %v797, 0.0
      %v814 = vpack.c.bf16 %v807, %v806
      %v815 = vpack.c.bf16 %v809, %v808
      %v816 = vpack.c.bf16 %v811, %v810
      %v817 = vpack.c.bf16 %v813, %v812
      %vm818 = vcmp.lt.s32.totalorder %v421, 254
      %vm819 = vcmp.lt.s32.totalorder %v422, 254
      %820 = vrot.lane.b32.xlu0 %v763, 126
      %v821 = vpop.permute.xlu0 %820
      %822 = vrot.lane.b32.xlu0 %v765, 126
      %v823 = vpop.permute.xlu0 %822
      %824 = vrot.lane.b32.xlu0 %v767, 126
      %v825 = vpop.permute.xlu0 %824
      %826 = vrot.lane.b32.xlu0 %v769, 126
      %v827 = vpop.permute.xlu0 %826
      %828 = vrot.lane.b32.xlu0 %v764, 126
      %v829 = vpop.permute.xlu0 %828
      %830 = vrot.lane.b32.xlu0 %v766, 126
      %v831 = vpop.permute.xlu0 %830
      %832 = vrot.lane.b32.xlu0 %v768, 126
      %v833 = vpop.permute.xlu0 %832
      %834 = vrot.lane.b32.xlu0 %v770, 126
      %v835 = vpop.permute.xlu0 %834
      %vm836 = vcmp.lt.s32.totalorder %v421, 126
      %v837 = vsel %vm836, %v821, %v829
      %v838 = vsel %vm836, %v823, %v831
      %v839 = vsel %vm836, %v825, %v833
      %v840 = vsel %vm836, %v827, %v835
      %v841 = vsel %vm836, %v829, %v821
      %v842 = vsel %vm836, %v831, %v823
      %v843 = vsel %vm836, %v833, %v825
      %v844 = vsel %vm836, %v835, %v827
      %v845 = vsel %vm818, 1, 0
      %v846 = vsel %vm819, 1, 0
      %vm847 = vcmp.eq.s32.totalorder %v845, 1
      %vm848 = vcmp.eq.s32.totalorder %v846, 1
      %v849 = vsel %vm847, %v837, 0.0
      %v850 = vsel %vm848, %v841, 0.0
      %v851 = vsel %vm847, %v838, 0.0
      %v852 = vsel %vm848, %v842, 0.0
      %v853 = vsel %vm847, %v839, 0.0
      %v854 = vsel %vm848, %v843, 0.0
      %v855 = vsel %vm847, %v840, 0.0
      %v856 = vsel %vm848, %v844, 0.0
      %v857 = vpack.c.bf16 %v850, %v849
      %v858 = vpack.c.bf16 %v852, %v851
      %v859 = vpack.c.bf16 %v854, %v853
      %v860 = vpack.c.bf16 %v856, %v855
      %v865 = vunpack.c.l.b16 %v814
      %v866 = vunpack.c.h.b16 %v814
      %v867 = vunpack.c.l.b16 %v815
      %v868 = vunpack.c.h.b16 %v815
      %v869 = vunpack.c.l.b16 %v816
      %v870 = vunpack.c.h.b16 %v816
      %v871 = vunpack.c.l.b16 %v817
      %v872 = vunpack.c.h.b16 %v817
      %v873 = vpack.c.b16 %v867, %v865
      %v874 = vpack.c.b16 %v868, %v866
      %v875 = vpack.c.b16 %v871, %v869
      %v876 = vpack.c.b16 %v872, %v870
      %v885 = vunpack.c.l.b16 %v771
      %v886 = vunpack.c.h.b16 %v771
      %v887 = vunpack.c.l.b16 %v772
      %v888 = vunpack.c.h.b16 %v772
      %v889 = vunpack.c.l.b16 %v773
      %v890 = vunpack.c.h.b16 %v773
      %v891 = vunpack.c.l.b16 %v774
      %v892 = vunpack.c.h.b16 %v774
      %v893 = vpack.c.b16 %v887, %v885
      %v894 = vpack.c.b16 %v888, %v886
      %v895 = vpack.c.b16 %v891, %v889
      %v896 = vpack.c.b16 %v892, %v890
      %v905 = vunpack.c.l.b16 %v857
      %v906 = vunpack.c.h.b16 %v857
      %v907 = vunpack.c.l.b16 %v858
      %v908 = vunpack.c.h.b16 %v858
      %v909 = vunpack.c.l.b16 %v859
      %v910 = vunpack.c.h.b16 %v859
      %v911 = vunpack.c.l.b16 %v860
      %v912 = vunpack.c.h.b16 %v860
      %v913 = vpack.c.b16 %v907, %v905
      %v914 = vpack.c.b16 %v908, %v906
      %v915 = vpack.c.b16 %v911, %v909
      %v916 = vpack.c.b16 %v912, %v910
      %s921 = scalar_lea.vmem %s4, 16
      %v922 = vld [vmem:[%s921] sm:$0xf]
      %v923 = vld [vmem:[%s921 + $0x4] sm:$0xf]
      %v924 = vld [vmem:[%s921 + $0x8] sm:$0xf]
      %v925 = vld [vmem:[%s921 + $0xc] sm:$0xf]
      %s926 = scalar_lea.vmem %s5, 32
      %v927 = vld [vmem:[%s926] sm:$0xff]
      %v928 = vld [vmem:[%s926 + $0x8] sm:$0xff]
      %v929 = vld [vmem:[%s926 + $0x10] sm:$0xff]
      %v930 = vld [vmem:[%s926 + $0x18] sm:$0xff]
      %932 = vset.pattern.permute.xlu0 0
      %933 = vperm.xlu0 %932, %v927
      %v934 = vpop.permute.xlu0 %933
      %937 = vset.pattern.permute.xlu0 0
      %938 = vperm.xlu0 %937, %v928
      %v939 = vpop.permute.xlu0 %938
      %942 = vset.pattern.permute.xlu0 0
      %943 = vperm.xlu0 %942, %v929
      %v944 = vpop.permute.xlu0 %943
      %947 = vset.pattern.permute.xlu0 0
      %948 = vperm.xlu0 %947, %v930
      %v949 = vpop.permute.xlu0 %948
      %v955 = vunpack.c.l.b16 %v922
      %v956 = vunpack.c.l.b16 %v923
      %v957 = vunpack.c.l.b16 %v924
      %v958 = vunpack.c.l.b16 %v925
      %v959 = vpack.c.b16 %v956, %v955
      %v960 = vpack.c.b16 %v958, %v957
      %v962 = vsel %vm611, %v959, 0
      %v965 = vsel %vm611, %v960, 0
      %967 = vmatpush.bf16.msra.mxu0 0
      %968 = vmatpush.bf16.msra.mxu0 0
      %969 = vmatpush.bf16.msra.mxu0 %v915
      %970 = vmatpush.bf16.msra.mxu0 %v913
      %971 = vmatpush.bf16.msra.mxu0 %v895
      %972 = vmatpush.bf16.msra.mxu0 %v893
      %973 = vmatpush.bf16.msra.mxu0 %v875
      %974 = vmatpush.bf16.msra.mxu0 %v873
      %975 = vmatmul.bf16.gmra.mxu0 %v962
      %v976 = vpop.f32.mrf.mxu0
      %v977 = vadd.f32 %v934, %v976
      %v978 = vpop.f32.mrf.mxu0
      %v979 = vadd.f32 %v939, %v978
      %980 = vmatmul.bf16.gmra.mxu0 %v965
      %v981 = vpop.f32.mrf.mxu0
      %v982 = vadd.f32 %v944, %v981
      %v983 = vpop.f32.mrf.mxu0
      %v984 = vadd.f32 %v949, %v983
      %985 = vdwg.mxu0
      %986 = vmatpush.bf16.msra.mxu0 0
      %987 = vmatpush.bf16.msra.mxu0 0
      %988 = vmatpush.bf16.msra.mxu0 %v916
      %989 = vmatpush.bf16.msra.mxu0 %v914
      %990 = vmatpush.bf16.msra.mxu0 %v896
      %991 = vmatpush.bf16.msra.mxu0 %v894
      %992 = vmatpush.bf16.msra.mxu0 %v876
      %993 = vmatpush.bf16.msra.mxu0 %v874
      %994 = vmatmul.bf16.gmra.mxu0 %v962
      %v995 = vpop.f32.mrf.mxu0
      %v996 = vadd.f32 %v934, %v995
      %v997 = vpop.f32.mrf.mxu0
      %v998 = vadd.f32 %v939, %v997
      %999 = vmatmul.bf16.gmra.mxu0 %v965
      %v1000 = vpop.f32.mrf.mxu0
      %v1001 = vadd.f32 %v944, %v1000
      %v1002 = vpop.f32.mrf.mxu0
      %v1003 = vadd.f32 %v949, %v1002
      %1004 = vdwg.mxu0
      %v1005 = vmax.f32 %v977, 0.0
      %v1006 = vmax.f32 %v996, 0.0
      %v1007 = vmax.f32 %v979, 0.0
      %v1008 = vmax.f32 %v998, 0.0
      %v1009 = vmax.f32 %v982, 0.0
      %v1010 = vmax.f32 %v1001, 0.0
      %v1011 = vmax.f32 %v984, 0.0
      %v1012 = vmax.f32 %v1003, 0.0
      %v1013 = vpack.c.bf16 %v1007, %v1005
      %v1014 = vpack.c.bf16 %v1008, %v1006
      %v1015 = vpack.c.bf16 %v1011, %v1009
      %v1016 = vpack.c.bf16 %v1012, %v1010
      %s1017 = scalar_lea.vmem %s6, 16
      %v1018 = vld [vmem:[%s1017] sm:$0xf]
      %v1019 = vld [vmem:[%s1017 + $0x4] sm:$0xf]
      %v1020 = vld [vmem:[%s1017 + $0x8] sm:$0xf]
      %v1021 = vld [vmem:[%s1017 + $0xc] sm:$0xf]
      %s1022 = scalar_lea.vmem %s7, 32
      %v1023 = vld [vmem:[%s1022] sm:$0xff]
      %v1024 = vld [vmem:[%s1022 + $0x8] sm:$0xff]
      %v1025 = vld [vmem:[%s1022 + $0x10] sm:$0xff]
      %v1026 = vld [vmem:[%s1022 + $0x18] sm:$0xff]
      %1028 = vset.pattern.permute.xlu0 0
      %1029 = vperm.xlu0 %1028, %v1023
      %v1030 = vpop.permute.xlu0 %1029
      %1033 = vset.pattern.permute.xlu0 0
      %1034 = vperm.xlu0 %1033, %v1024
      %v1035 = vpop.permute.xlu0 %1034
      %1038 = vset.pattern.permute.xlu0 0
      %1039 = vperm.xlu0 %1038, %v1025
      %v1040 = vpop.permute.xlu0 %1039
      %1043 = vset.pattern.permute.xlu0 0
      %1044 = vperm.xlu0 %1043, %v1026
      %v1045 = vpop.permute.xlu0 %1044
      %v1051 = vunpack.c.l.b16 %v1018
      %v1052 = vunpack.c.l.b16 %v1019
      %v1053 = vunpack.c.l.b16 %v1020
      %v1054 = vunpack.c.l.b16 %v1021
      %v1055 = vpack.c.b16 %v1052, %v1051
      %v1056 = vpack.c.b16 %v1054, %v1053
      %v1058 = vsel %vm375, %v1055, 0
      %v1061 = vsel %vm375, %v1056, 0
      %1063 = vmatpush.bf16.msra.mxu0 0
      %1064 = vmatpush.bf16.msra.mxu0 0
      %1065 = vmatpush.bf16.msra.mxu0 0
      %1066 = vmatpush.bf16.msra.mxu0 0
      %1067 = vmatpush.bf16.msra.mxu0 0
      %1068 = vmatpush.bf16.msra.mxu0 0
      %1069 = vmatpush.bf16.msra.mxu0 %v1015
      %1070 = vmatpush.bf16.msra.mxu0 %v1013
      %1071 = vmatmul.bf16.gmra.mxu0 %v1058
      %v1072 = vpop.f32.mrf.mxu0
      %v1073 = vadd.f32 %v1030, %v1072
      %v1074 = vpop.f32.mrf.mxu0
      %v1075 = vadd.f32 %v1035, %v1074
      %1076 = vmatmul.bf16.gmra.mxu0 %v1061
      %v1077 = vpop.f32.mrf.mxu0
      %v1078 = vadd.f32 %v1040, %v1077
      %v1079 = vpop.f32.mrf.mxu0
      %v1080 = vadd.f32 %v1045, %v1079
      %1081 = vdwg.mxu0
      %1082 = vmatpush.bf16.msra.mxu0 0
      %1083 = vmatpush.bf16.msra.mxu0 0
      %1084 = vmatpush.bf16.msra.mxu0 0
      %1085 = vmatpush.bf16.msra.mxu0 0
      %1086 = vmatpush.bf16.msra.mxu0 0
      %1087 = vmatpush.bf16.msra.mxu0 0
      %1088 = vmatpush.bf16.msra.mxu0 %v1016
      %1089 = vmatpush.bf16.msra.mxu0 %v1014
      %1090 = vmatmul.bf16.gmra.mxu0 %v1058
      %v1091 = vpop.f32.mrf.mxu0
      %v1092 = vadd.f32 %v1030, %v1091
      %v1093 = vpop.f32.mrf.mxu0
      %v1094 = vadd.f32 %v1035, %v1093
      %1095 = vmatmul.bf16.gmra.mxu0 %v1061
      %v1096 = vpop.f32.mrf.mxu0
      %v1097 = vadd.f32 %v1040, %v1096
      %v1098 = vpop.f32.mrf.mxu0
      %v1099 = vadd.f32 %v1045, %v1098
      %1100 = vdwg.mxu0
      %v1101 = vadd.f32 %v763, %v1073
      %v1102 = vadd.f32 %v764, %v1092
      %v1103 = vadd.f32 %v765, %v1075
      %v1104 = vadd.f32 %v766, %v1094
      %v1105 = vadd.f32 %v767, %v1078
      %v1106 = vadd.f32 %v768, %v1097
      %v1107 = vadd.f32 %v769, %v1080
      %v1108 = vadd.f32 %v770, %v1099
      %v1109 = vmul.f32 %v1101, %v759
      %v1110 = vmul.f32 %v1102, %v760
      %v1111 = vmul.f32 %v1103, %v759
      %v1112 = vmul.f32 %v1104, %v760
      %v1113 = vmul.f32 %v1105, %v759
      %v1114 = vmul.f32 %v1106, %v760
      %v1115 = vmul.f32 %v1107, %v759
      %v1116 = vmul.f32 %v1108, %v760
      %v1117 = vpack.c.bf16 %v1110, %v1109
      %v1118 = vpack.c.bf16 %v1112, %v1111
      %v1119 = vpack.c.bf16 %v1114, %v1113
      %v1120 = vpack.c.bf16 %v1116, %v1115
      %vm1121 = vcmp.ge.s32.totalorder %v421, 4
      %vm1122 = vcmp.ge.s32.totalorder %v422, 4
      %1123 = vrot.lane.b32.xlu0 %v1109, 4
      %v1124 = vpop.permute.xlu0 %1123
      %1125 = vrot.lane.b32.xlu0 %v1111, 4
      %v1126 = vpop.permute.xlu0 %1125
      %1127 = vrot.lane.b32.xlu0 %v1113, 4
      %v1128 = vpop.permute.xlu0 %1127
      %1129 = vrot.lane.b32.xlu0 %v1115, 4
      %v1130 = vpop.permute.xlu0 %1129
      %1131 = vrot.lane.b32.xlu0 %v1110, 4
      %v1132 = vpop.permute.xlu0 %1131
      %1133 = vrot.lane.b32.xlu0 %v1112, 4
      %v1134 = vpop.permute.xlu0 %1133
      %1135 = vrot.lane.b32.xlu0 %v1114, 4
      %v1136 = vpop.permute.xlu0 %1135
      %1137 = vrot.lane.b32.xlu0 %v1116, 4
      %v1138 = vpop.permute.xlu0 %1137
      %vm1139 = vcmp.lt.s32.totalorder %v421, 4
      %v1140 = vsel %vm1139, %v1124, %v1132
      %v1141 = vsel %vm1139, %v1126, %v1134
      %v1142 = vsel %vm1139, %v1128, %v1136
      %v1143 = vsel %vm1139, %v1130, %v1138
      %v1144 = vsel %vm1139, %v1132, %v1124
      %v1145 = vsel %vm1139, %v1134, %v1126
      %v1146 = vsel %vm1139, %v1136, %v1128
      %v1147 = vsel %vm1139, %v1138, %v1130
      %v1148 = vsel %vm1121, 1, 0
      %v1149 = vsel %vm1122, 1, 0
      %vm1150 = vcmp.eq.s32.totalorder %v1148, 1
      %vm1151 = vcmp.eq.s32.totalorder %v1149, 1
      %v1152 = vsel %vm1150, %v1144, 0.0
      %v1153 = vsel %vm1151, %v1140, 0.0
      %v1154 = vsel %vm1150, %v1145, 0.0
      %v1155 = vsel %vm1151, %v1141, 0.0
      %v1156 = vsel %vm1150, %v1146, 0.0
      %v1157 = vsel %vm1151, %v1142, 0.0
      %v1158 = vsel %vm1150, %v1147, 0.0
      %v1159 = vsel %vm1151, %v1143, 0.0
      %v1160 = vpack.c.bf16 %v1153, %v1152
      %v1161 = vpack.c.bf16 %v1155, %v1154
      %v1162 = vpack.c.bf16 %v1157, %v1156
      %v1163 = vpack.c.bf16 %v1159, %v1158
      %vm1164 = vcmp.lt.s32.totalorder %v421, 252
      %vm1165 = vcmp.lt.s32.totalorder %v422, 252
      %1166 = vrot.lane.b32.xlu0 %v1109, 124
      %v1167 = vpop.permute.xlu0 %1166
      %1168 = vrot.lane.b32.xlu0 %v1111, 124
      %v1169 = vpop.permute.xlu0 %1168
      %1170 = vrot.lane.b32.xlu0 %v1113, 124
      %v1171 = vpop.permute.xlu0 %1170
      %1172 = vrot.lane.b32.xlu0 %v1115, 124
      %v1173 = vpop.permute.xlu0 %1172
      %1174 = vrot.lane.b32.xlu0 %v1110, 124
      %v1175 = vpop.permute.xlu0 %1174
      %1176 = vrot.lane.b32.xlu0 %v1112, 124
      %v1177 = vpop.permute.xlu0 %1176
      %1178 = vrot.lane.b32.xlu0 %v1114, 124
      %v1179 = vpop.permute.xlu0 %1178
      %1180 = vrot.lane.b32.xlu0 %v1116, 124
      %v1181 = vpop.permute.xlu0 %1180
      %vm1182 = vcmp.lt.s32.totalorder %v421, 124
      %v1183 = vsel %vm1182, %v1167, %v1175
      %v1184 = vsel %vm1182, %v1169, %v1177
      %v1185 = vsel %vm1182, %v1171, %v1179
      %v1186 = vsel %vm1182, %v1173, %v1181
      %v1187 = vsel %vm1182, %v1175, %v1167
      %v1188 = vsel %vm1182, %v1177, %v1169
      %v1189 = vsel %vm1182, %v1179, %v1171
      %v1190 = vsel %vm1182, %v1181, %v1173
      %v1191 = vsel %vm1164, 1, 0
      %v1192 = vsel %vm1165, 1, 0
      %vm1193 = vcmp.eq.s32.totalorder %v1191, 1
      %vm1194 = vcmp.eq.s32.totalorder %v1192, 1
      %v1195 = vsel %vm1193, %v1183, 0.0
      %v1196 = vsel %vm1194, %v1187, 0.0
      %v1197 = vsel %vm1193, %v1184, 0.0
      %v1198 = vsel %vm1194, %v1188, 0.0
      %v1199 = vsel %vm1193, %v1185, 0.0
      %v1200 = vsel %vm1194, %v1189, 0.0
      %v1201 = vsel %vm1193, %v1186, 0.0
      %v1202 = vsel %vm1194, %v1190, 0.0
      %v1203 = vpack.c.bf16 %v1196, %v1195
      %v1204 = vpack.c.bf16 %v1198, %v1197
      %v1205 = vpack.c.bf16 %v1200, %v1199
      %v1206 = vpack.c.bf16 %v1202, %v1201
      %v1211 = vunpack.c.l.b16 %v1160
      %v1212 = vunpack.c.h.b16 %v1160
      %v1213 = vunpack.c.l.b16 %v1161
      %v1214 = vunpack.c.h.b16 %v1161
      %v1215 = vunpack.c.l.b16 %v1162
      %v1216 = vunpack.c.h.b16 %v1162
      %v1217 = vunpack.c.l.b16 %v1163
      %v1218 = vunpack.c.h.b16 %v1163
      %v1219 = vpack.c.b16 %v1213, %v1211
      %v1220 = vpack.c.b16 %v1214, %v1212
      %v1221 = vpack.c.b16 %v1217, %v1215
      %v1222 = vpack.c.b16 %v1218, %v1216
      %v1231 = vunpack.c.l.b16 %v1117
      %v1232 = vunpack.c.h.b16 %v1117
      %v1233 = vunpack.c.l.b16 %v1118
      %v1234 = vunpack.c.h.b16 %v1118
      %v1235 = vunpack.c.l.b16 %v1119
      %v1236 = vunpack.c.h.b16 %v1119
      %v1237 = vunpack.c.l.b16 %v1120
      %v1238 = vunpack.c.h.b16 %v1120
      %v1239 = vpack.c.b16 %v1233, %v1231
      %v1240 = vpack.c.b16 %v1234, %v1232
      %v1241 = vpack.c.b16 %v1237, %v1235
      %v1242 = vpack.c.b16 %v1238, %v1236
      %v1251 = vunpack.c.l.b16 %v1203
      %v1252 = vunpack.c.h.b16 %v1203
      %v1253 = vunpack.c.l.b16 %v1204
      %v1254 = vunpack.c.h.b16 %v1204
      %v1255 = vunpack.c.l.b16 %v1205
      %v1256 = vunpack.c.h.b16 %v1205
      %v1257 = vunpack.c.l.b16 %v1206
      %v1258 = vunpack.c.h.b16 %v1206
      %v1259 = vpack.c.b16 %v1253, %v1251
      %v1260 = vpack.c.b16 %v1254, %v1252
      %v1261 = vpack.c.b16 %v1257, %v1255
      %v1262 = vpack.c.b16 %v1258, %v1256
      %s1267 = scalar_lea.vmem %s4, 32
      %v1268 = vld [vmem:[%s1267] sm:$0xf]
      %v1269 = vld [vmem:[%s1267 + $0x4] sm:$0xf]
      %v1270 = vld [vmem:[%s1267 + $0x8] sm:$0xf]
      %v1271 = vld [vmem:[%s1267 + $0xc] sm:$0xf]
      %s1272 = scalar_lea.vmem %s5, 64
      %v1273 = vld [vmem:[%s1272] sm:$0xff]
      %v1274 = vld [vmem:[%s1272 + $0x8] sm:$0xff]
      %v1275 = vld [vmem:[%s1272 + $0x10] sm:$0xff]
      %v1276 = vld [vmem:[%s1272 + $0x18] sm:$0xff]
      %1278 = vset.pattern.permute.xlu0 0
      %1279 = vperm.xlu0 %1278, %v1273
      %v1280 = vpop.permute.xlu0 %1279
      %1283 = vset.pattern.permute.xlu0 0
      %1284 = vperm.xlu0 %1283, %v1274
      %v1285 = vpop.permute.xlu0 %1284
      %1288 = vset.pattern.permute.xlu0 0
      %1289 = vperm.xlu0 %1288, %v1275
      %v1290 = vpop.permute.xlu0 %1289
      %1293 = vset.pattern.permute.xlu0 0
      %1294 = vperm.xlu0 %1293, %v1276
      %v1295 = vpop.permute.xlu0 %1294
      %v1301 = vunpack.c.l.b16 %v1268
      %v1302 = vunpack.c.l.b16 %v1269
      %v1303 = vunpack.c.l.b16 %v1270
      %v1304 = vunpack.c.l.b16 %v1271
      %v1305 = vpack.c.b16 %v1302, %v1301
      %v1306 = vpack.c.b16 %v1304, %v1303
      %v1308 = vsel %vm611, %v1305, 0
      %v1311 = vsel %vm611, %v1306, 0
      %1313 = vmatpush.bf16.msra.mxu0 0
      %1314 = vmatpush.bf16.msra.mxu0 0
      %1315 = vmatpush.bf16.msra.mxu0 %v1261
      %1316 = vmatpush.bf16.msra.mxu0 %v1259
      %1317 = vmatpush.bf16.msra.mxu0 %v1241
      %1318 = vmatpush.bf16.msra.mxu0 %v1239
      %1319 = vmatpush.bf16.msra.mxu0 %v1221
      %1320 = vmatpush.bf16.msra.mxu0 %v1219
      %1321 = vmatmul.bf16.gmra.mxu0 %v1308
      %v1322 = vpop.f32.mrf.mxu0
      %v1323 = vadd.f32 %v1280, %v1322
      %v1324 = vpop.f32.mrf.mxu0
      %v1325 = vadd.f32 %v1285, %v1324
      %1326 = vmatmul.bf16.gmra.mxu0 %v1311
      %v1327 = vpop.f32.mrf.mxu0
      %v1328 = vadd.f32 %v1290, %v1327
      %v1329 = vpop.f32.mrf.mxu0
      %v1330 = vadd.f32 %v1295, %v1329
      %1331 = vdwg.mxu0
      %1332 = vmatpush.bf16.msra.mxu0 0
      %1333 = vmatpush.bf16.msra.mxu0 0
      %1334 = vmatpush.bf16.msra.mxu0 %v1262
      %1335 = vmatpush.bf16.msra.mxu0 %v1260
      %1336 = vmatpush.bf16.msra.mxu0 %v1242
      %1337 = vmatpush.bf16.msra.mxu0 %v1240
      %1338 = vmatpush.bf16.msra.mxu0 %v1222
      %1339 = vmatpush.bf16.msra.mxu0 %v1220
      %1340 = vmatmul.bf16.gmra.mxu0 %v1308
      %v1341 = vpop.f32.mrf.mxu0
      %v1342 = vadd.f32 %v1280, %v1341
      %v1343 = vpop.f32.mrf.mxu0
      %v1344 = vadd.f32 %v1285, %v1343
      %1345 = vmatmul.bf16.gmra.mxu0 %v1311
      %v1346 = vpop.f32.mrf.mxu0
      %v1347 = vadd.f32 %v1290, %v1346
      %v1348 = vpop.f32.mrf.mxu0
      %v1349 = vadd.f32 %v1295, %v1348
      %1350 = vdwg.mxu0
      %v1351 = vmax.f32 %v1323, 0.0
      %v1352 = vmax.f32 %v1342, 0.0
      %v1353 = vmax.f32 %v1325, 0.0
      %v1354 = vmax.f32 %v1344, 0.0
      %v1355 = vmax.f32 %v1328, 0.0
      %v1356 = vmax.f32 %v1347, 0.0
      %v1357 = vmax.f32 %v1330, 0.0
      %v1358 = vmax.f32 %v1349, 0.0
      %v1359 = vpack.c.bf16 %v1353, %v1351
      %v1360 = vpack.c.bf16 %v1354, %v1352
      %v1361 = vpack.c.bf16 %v1357, %v1355
      %v1362 = vpack.c.bf16 %v1358, %v1356
      %s1363 = scalar_lea.vmem %s6, 32
      %v1364 = vld [vmem:[%s1363] sm:$0xf]
      %v1365 = vld [vmem:[%s1363 + $0x4] sm:$0xf]
      %v1366 = vld [vmem:[%s1363 + $0x8] sm:$0xf]
      %v1367 = vld [vmem:[%s1363 + $0xc] sm:$0xf]
      %s1368 = scalar_lea.vmem %s7, 64
      %v1369 = vld [vmem:[%s1368] sm:$0xff]
      %v1370 = vld [vmem:[%s1368 + $0x8] sm:$0xff]
      %v1371 = vld [vmem:[%s1368 + $0x10] sm:$0xff]
      %v1372 = vld [vmem:[%s1368 + $0x18] sm:$0xff]
      %1374 = vset.pattern.permute.xlu0 0
      %1375 = vperm.xlu0 %1374, %v1369
      %v1376 = vpop.permute.xlu0 %1375
      %1379 = vset.pattern.permute.xlu0 0
      %1380 = vperm.xlu0 %1379, %v1370
      %v1381 = vpop.permute.xlu0 %1380
      %1384 = vset.pattern.permute.xlu0 0
      %1385 = vperm.xlu0 %1384, %v1371
      %v1386 = vpop.permute.xlu0 %1385
      %1389 = vset.pattern.permute.xlu0 0
      %1390 = vperm.xlu0 %1389, %v1372
      %v1391 = vpop.permute.xlu0 %1390
      %v1397 = vunpack.c.l.b16 %v1364
      %v1398 = vunpack.c.l.b16 %v1365
      %v1399 = vunpack.c.l.b16 %v1366
      %v1400 = vunpack.c.l.b16 %v1367
      %v1401 = vpack.c.b16 %v1398, %v1397
      %v1402 = vpack.c.b16 %v1400, %v1399
      %v1404 = vsel %vm375, %v1401, 0
      %v1407 = vsel %vm375, %v1402, 0
      %1409 = vmatpush.bf16.msra.mxu0 0
      %1410 = vmatpush.bf16.msra.mxu0 0
      %1411 = vmatpush.bf16.msra.mxu0 0
      %1412 = vmatpush.bf16.msra.mxu0 0
      %1413 = vmatpush.bf16.msra.mxu0 0
      %1414 = vmatpush.bf16.msra.mxu0 0
      %1415 = vmatpush.bf16.msra.mxu0 %v1361
      %1416 = vmatpush.bf16.msra.mxu0 %v1359
      %1417 = vmatmul.bf16.gmra.mxu0 %v1404
      %v1418 = vpop.f32.mrf.mxu0
      %v1419 = vadd.f32 %v1376, %v1418
      %v1420 = vpop.f32.mrf.mxu0
      %v1421 = vadd.f32 %v1381, %v1420
      %1422 = vmatmul.bf16.gmra.mxu0 %v1407
      %v1423 = vpop.f32.mrf.mxu0
      %v1424 = vadd.f32 %v1386, %v1423
      %v1425 = vpop.f32.mrf.mxu0
      %v1426 = vadd.f32 %v1391, %v1425
      %1427 = vdwg.mxu0
      %1428 = vmatpush.bf16.msra.mxu0 0
      %1429 = vmatpush.bf16.msra.mxu0 0
      %1430 = vmatpush.bf16.msra.mxu0 0
      %1431 = vmatpush.bf16.msra.mxu0 0
      %1432 = vmatpush.bf16.msra.mxu0 0
      %1433 = vmatpush.bf16.msra.mxu0 0
      %1434 = vmatpush.bf16.msra.mxu0 %v1362
      %1435 = vmatpush.bf16.msra.mxu0 %v1360
      %1436 = vmatmul.bf16.gmra.mxu0 %v1404
      %v1437 = vpop.f32.mrf.mxu0
      %v1438 = vadd.f32 %v1376, %v1437
      %v1439 = vpop.f32.mrf.mxu0
      %v1440 = vadd.f32 %v1381, %v1439
      %1441 = vmatmul.bf16.gmra.mxu0 %v1407
      %v1442 = vpop.f32.mrf.mxu0
      %v1443 = vadd.f32 %v1386, %v1442
      %v1444 = vpop.f32.mrf.mxu0
      %v1445 = vadd.f32 %v1391, %v1444
      %1446 = vdwg.mxu0
      %v1447 = vadd.f32 %v1109, %v1419
      %v1448 = vadd.f32 %v1110, %v1438
      %v1449 = vadd.f32 %v1111, %v1421
      %v1450 = vadd.f32 %v1112, %v1440
      %v1451 = vadd.f32 %v1113, %v1424
      %v1452 = vadd.f32 %v1114, %v1443
      %v1453 = vadd.f32 %v1115, %v1426
      %v1454 = vadd.f32 %v1116, %v1445
      %v1455 = vmul.f32 %v1447, %v759
      %v1456 = vmul.f32 %v1448, %v760
      %v1457 = vmul.f32 %v1449, %v759
      %v1458 = vmul.f32 %v1450, %v760
      %v1459 = vmul.f32 %v1451, %v759
      %v1460 = vmul.f32 %v1452, %v760
      %v1461 = vmul.f32 %v1453, %v759
      %v1462 = vmul.f32 %v1454, %v760
      %1463 = vst [vmem:[%s322] sm:$0xff] %v1455
      %1464 = vst [vmem:[%s322 + $0x8] sm:$0xff] %v1456
      %1465 = vst [vmem:[%s322 + $0x10] sm:$0xff] %v1457
      %1466 = vst [vmem:[%s322 + $0x18] sm:$0xff] %v1458
      %1467 = vst [vmem:[%s322 + $0x20] sm:$0xff] %v1459
      %1468 = vst [vmem:[%s322 + $0x28] sm:$0xff] %v1460
      %1469 = vst [vmem:[%s322 + $0x30] sm:$0xff] %v1461
      %1470 = vst [vmem:[%s322 + $0x38] sm:$0xff] %v1462
      %p1471 = scmp.lt.s32.totalorder %s19, 1
      %s1472 = scalar_select %p1471, %s19, 1
      %s1473 = smul.addr %s1472, 8
      %s1474 = smul.addr %s1473, 8
      %s1475 = scalar_lea.vmem %s8, %s1474
      // Predicated region
      $region53: #{single_vq_forward.9} parent=51 // pred_check
        %p1476 = pneg %p215
      $region54: #{single_vq_forward.9} parent=51 // pred_check_branch
        %1478 = sbr.rel (%p1476) target = $region56
      $region55: #{single_vq_forward.9} parent=51 // pred_region
        _
      $region56: #{single_vq_forward.9} parent=51 // pred_fallthru
        _
    $region52: #{single_vq_forward.9} parent=5 // pred_fallthru
      _
    %p1479 = scmp.le.s32.totalorder 2, %s14
    // Predicated region
    $region57: #{single_vq_forward.9} parent=5 // pred_check
      %p1480 = pneg %p1479
    $region58: #{single_vq_forward.9} parent=5 // pred_check_branch
      %1482 = sbr.rel (%p1480) target = $region60
    $region59: #{single_vq_forward.9} parent=5 // pred_region
      %s1483 = ssub.s32 %s14, 2
      // Predicated region
      $region61: #{single_vq_forward.9} parent=59 // pred_check
        %p1484 = pneg %p221
      $region62: #{single_vq_forward.9} parent=59 // pred_check_branch
        %1486 = sbr.rel (%p1484) target = $region64
      $region63: #{single_vq_forward.9} parent=59 // pred_region
        %p1487 = scmp.lt.s32.totalorder %s20, 1
        %s1488 = scalar_select %p1487, %s20, 1
        %s1489 = smul.addr %s1488, 8
        %s1490 = smul.addr %s1489, 8
        %s1491 = scalar_lea.vmem %s8, %s1490
      $region64: #{single_vq_forward.9} parent=59 // pred_fallthru
        _
    $region60: #{single_vq_forward.9} parent=5 // pred_fallthru
      _
  $region6: #{single_vq_forward.9} parent=0 // loop_footer
    %s18 = sadd.s32 1, %s14
  $region7: #{single_vq_forward.9} parent=0 // loop_footer_branch
    %13 = sbr.rel target = $region3
  $region8: #{single_vq_forward.9} parent=0 // loop_exit
    _

// kernel: single_vq_forward.6
$region0: #{single_vq_forward.6}
  #allocation0 [shape = 'u32[]', space=smem, size = 0x4, offset = 0x4, fixed_abs, tag = 'smem constant byte address 0x4 - core index']
  #allocation1 [shape = 'u32[72,128]{1,0:T(1,128)}', space=vmem, size = 0x9000, scoped, tag = 'internal scratch']
  %s0 = inlined_call_operand.vmem [shape: f32[2,16,256], index: 0, kind: input, shape index: {}]
  %s1 = inlined_call_operand.vmem [shape: f32[2,1,256], index: 1, kind: input, shape index: {}]
  %s2 = inlined_call_operand.vmem [shape: bf16[32,16], index: 2, kind: input, shape index: {}]
  %s3 = inlined_call_operand.vmem [shape: f32[32,1], index: 3, kind: input, shape index: {}]
  %s4 = inlined_call_operand.vmem [shape: bf16[3,32,96], index: 4, kind: input, shape index: {}]
  %s5 = inlined_call_operand.vmem [shape: f32[3,32,1], index: 5, kind: input, shape index: {}]
  %s6 = inlined_call_operand.vmem [shape: bf16[3,32,32], index: 6, kind: input, shape index: {}]
  %s7 = inlined_call_operand.vmem [shape: f32[3,32,1], index: 7, kind: input, shape index: {}]
  %s8 = inlined_call_operand.vmem [shape: f32[2,32,256], index: 8, kind: output, shape index: {}]
  %s9 = sld [smem:[#allocation0]]
  $region65: #{single_vq_forward.6} parent=0
    _
  %s11 = ssub.s32 1, %s9
  %s12 = scalar_select 0, %s11, %s9
  loop: start=0, step=1, limit=4
  $region2: #{single_vq_forward.6} parent=0 // loop_pre_header
    _
  $region3: #{single_vq_forward.6} parent=0 // loop_header
    %s14 = sphi 0, %s18
    %p15 = scmp.ge.s32.totalorder %s14, 4
    %s24 = sphi 0, %s26
    %s27 = sphi 0, %s24
    %s28 = sphi 0, %s27
    %s44 = sphi 0, %s28
    %s50 = sphi 0, %s52
    %s53 = sphi 0, %s50
    %s54 = sphi 0, %s53
    %s70 = sphi 0, %s54
    %s74 = sphi 0, %s74
    %s76 = sphi 0, %s74
    %s77 = sphi 0, %s76
    %s91 = sphi 0, %s77
    %s95 = sphi 0, %s95
    %s97 = sphi 0, %s95
    %s98 = sphi 0, %s97
    %s112 = sphi 0, %s98
    %s116 = sphi 0, %s116
    %s118 = sphi 0, %s116
    %s119 = sphi 0, %s118
    %s133 = sphi 0, %s119
    %s137 = sphi 0, %s137
    %s139 = sphi 0, %s137
    %s140 = sphi 0, %s139
    %s154 = sphi 0, %s140
    %s158 = sphi 0, %s158
    %s160 = sphi 0, %s158
    %s161 = sphi 0, %s160
    %s175 = sphi 0, %s161
    %s179 = sphi 0, %s179
    %s181 = sphi 0, %s179
    %s182 = sphi 0, %s181
    %s196 = sphi 0, %s182
    %s202 = sphi 0, %s204
    %s205 = sphi 0, %s202
    %s206 = sphi 0, %s205
    %s222 = sphi 0, %s206
  $region4: #{single_vq_forward.6} parent=0 // loop_header_branch
    %17 = sbr.rel (%p15) target = $region8
  $region5: #{single_vq_forward.6} parent=0 // loop_body
    %s19 = ssub.s32 %s14, 1
    %s20 = ssub.s32 %s14, 2
    %s21 = sadd.s32 %s14, 1
    %s22 = ssub.s32 %s14, %s21
    %p23 = scmp.eq.s32.totalorder %s22, 0
    %s25 = sadd.s32 %s24, 1
    %s26 = scalar_select %p23, %s24, %s25
    %p29 = pneg %p23
    %p30 = scmp.eq.s32.totalorder %s14, 1
    %p31 = por %p29, %p30
    %p32 = scmp.ne.s32.totalorder %s24, %s27
    %p33 = scmp.eq.s32.totalorder %s14, 0
    %p34 = por %p32, %p33
    %p35 = scmp.ne.s32.totalorder %s24, %s27
    %p36 = scmp.eq.s32.totalorder %s19, 1
    %p37 = por %p35, %p36
    %p38 = scmp.ne.s32.totalorder %s27, %s28
    %p39 = scmp.eq.s32.totalorder %s19, 0
    %p40 = por %p38, %p39
    %p41 = scmp.ne.s32.totalorder %s27, %s28
    %p42 = scmp.eq.s32.totalorder %s20, 1
    %p43 = por %p41, %p42
    %p45 = scmp.ne.s32.totalorder %s28, %s44
    %p46 = scmp.eq.s32.totalorder %s20, 0
    %p47 = por %p45, %p46
    %s48 = ssub.s32 %s14, %s21
    %p49 = scmp.eq.s32.totalorder %s48, 0
    %s51 = sadd.s32 %s50, 1
    %s52 = scalar_select %p49, %s50, %s51
    %p55 = pneg %p49
    %p56 = scmp.eq.s32.totalorder %s14, 1
    %p57 = por %p55, %p56
    %p58 = scmp.ne.s32.totalorder %s50, %s53
    %p59 = scmp.eq.s32.totalorder %s14, 0
    %p60 = por %p58, %p59
    %p61 = scmp.ne.s32.totalorder %s50, %s53
    %p62 = scmp.eq.s32.totalorder %s19, 1
    %p63 = por %p61, %p62
    %p64 = scmp.ne.s32.totalorder %s53, %s54
    %p65 = scmp.eq.s32.totalorder %s19, 0
    %p66 = por %p64, %p65
    %p67 = scmp.ne.s32.totalorder %s53, %s54
    %p68 = scmp.eq.s32.totalorder %s20, 1
    %p69 = por %p67, %p68
    %p71 = scmp.ne.s32.totalorder %s54, %s70
    %p72 = scmp.eq.s32.totalorder %s20, 0
    %p73 = por %p71, %p72
    %s75 = sadd.s32 %s74, 1
    %p78 = scmp.eq.s32.totalorder %s14, 1
    %p79 = scmp.ne.s32.totalorder %s74, %s76
    %p80 = scmp.eq.s32.totalorder %s14, 0
    %p81 = por %p79, %p80
    %p82 = scmp.ne.s32.totalorder %s74, %s76
    %p83 = scmp.eq.s32.totalorder %s19, 1
    %p84 = por %p82, %p83
    %p85 = scmp.ne.s32.totalorder %s76, %s77
    %p86 = scmp.eq.s32.totalorder %s19, 0
    %p87 = por %p85, %p86
    %p88 = scmp.ne.s32.totalorder %s76, %s77
    %p89 = scmp.eq.s32.totalorder %s20, 1
    %p90 = por %p88, %p89
    %p92 = scmp.ne.s32.totalorder %s77, %s91
    %p93 = scmp.eq.s32.totalorder %s20, 0
    %p94 = por %p92, %p93
    %s96 = sadd.s32 %s95, 1
    %p99 = scmp.eq.s32.totalorder %s14, 1
    %p100 = scmp.ne.s32.totalorder %s95, %s97
    %p101 = scmp.eq.s32.totalorder %s14, 0
    %p102 = por %p100, %p101
    %p103 = scmp.ne.s32.totalorder %s95, %s97
    %p104 = scmp.eq.s32.totalorder %s19, 1
    %p105 = por %p103, %p104
    %p106 = scmp.ne.s32.totalorder %s97, %s98
    %p107 = scmp.eq.s32.totalorder %s19, 0
    %p108 = por %p106, %p107
    %p109 = scmp.ne.s32.totalorder %s97, %s98
    %p110 = scmp.eq.s32.totalorder %s20, 1
    %p111 = por %p109, %p110
    %p113 = scmp.ne.s32.totalorder %s98, %s112
    %p114 = scmp.eq.s32.totalorder %s20, 0
    %p115 = por %p113, %p114
    %s117 = sadd.s32 %s116, 1
    %p120 = scmp.eq.s32.totalorder %s14, 1
    %p121 = scmp.ne.s32.totalorder %s116, %s118
    %p122 = scmp.eq.s32.totalorder %s14, 0
    %p123 = por %p121, %p122
    %p124 = scmp.ne.s32.totalorder %s116, %s118
    %p125 = scmp.eq.s32.totalorder %s19, 1
    %p126 = por %p124, %p125
    %p127 = scmp.ne.s32.totalorder %s118, %s119
    %p128 = scmp.eq.s32.totalorder %s19, 0
    %p129 = por %p127, %p128
    %p130 = scmp.ne.s32.totalorder %s118, %s119
    %p131 = scmp.eq.s32.totalorder %s20, 1
    %p132 = por %p130, %p131
    %p134 = scmp.ne.s32.totalorder %s119, %s133
    %p135 = scmp.eq.s32.totalorder %s20, 0
    %p136 = por %p134, %p135
    %s138 = sadd.s32 %s137, 1
    %p141 = scmp.eq.s32.totalorder %s14, 1
    %p142 = scmp.ne.s32.totalorder %s137, %s139
    %p143 = scmp.eq.s32.totalorder %s14, 0
    %p144 = por %p142, %p143
    %p145 = scmp.ne.s32.totalorder %s137, %s139
    %p146 = scmp.eq.s32.totalorder %s19, 1
    %p147 = por %p145, %p146
    %p148 = scmp.ne.s32.totalorder %s139, %s140
    %p149 = scmp.eq.s32.totalorder %s19, 0
    %p150 = por %p148, %p149
    %p151 = scmp.ne.s32.totalorder %s139, %s140
    %p152 = scmp.eq.s32.totalorder %s20, 1
    %p153 = por %p151, %p152
    %p155 = scmp.ne.s32.totalorder %s140, %s154
    %p156 = scmp.eq.s32.totalorder %s20, 0
    %p157 = por %p155, %p156
    %s159 = sadd.s32 %s158, 1
    %p162 = scmp.eq.s32.totalorder %s14, 1
    %p163 = scmp.ne.s32.totalorder %s158, %s160
    %p164 = scmp.eq.s32.totalorder %s14, 0
    %p165 = por %p163, %p164
    %p166 = scmp.ne.s32.totalorder %s158, %s160
    %p167 = scmp.eq.s32.totalorder %s19, 1
    %p168 = por %p166, %p167
    %p169 = scmp.ne.s32.totalorder %s160, %s161
    %p170 = scmp.eq.s32.totalorder %s19, 0
    %p171 = por %p169, %p170
    %p172 = scmp.ne.s32.totalorder %s160, %s161
    %p173 = scmp.eq.s32.totalorder %s20, 1
    %p174 = por %p172, %p173
    %p176 = scmp.ne.s32.totalorder %s161, %s175
    %p177 = scmp.eq.s32.totalorder %s20, 0
    %p178 = por %p176, %p177
    %s180 = sadd.s32 %s179, 1
    %p183 = scmp.eq.s32.totalorder %s14, 1
    %p184 = scmp.ne.s32.totalorder %s179, %s181
    %p185 = scmp.eq.s32.totalorder %s14, 0
    %p186 = por %p184, %p185
    %p187 = scmp.ne.s32.totalorder %s179, %s181
    %p188 = scmp.eq.s32.totalorder %s19, 1
    %p189 = por %p187, %p188
    %p190 = scmp.ne.s32.totalorder %s181, %s182
    %p191 = scmp.eq.s32.totalorder %s19, 0
    %p192 = por %p190, %p191
    %p193 = scmp.ne.s32.totalorder %s181, %s182
    %p194 = scmp.eq.s32.totalorder %s20, 1
    %p195 = por %p193, %p194
    %p197 = scmp.ne.s32.totalorder %s182, %s196
    %p198 = scmp.eq.s32.totalorder %s20, 0
    %p199 = por %p197, %p198
    %s200 = ssub.s32 %s14, %s21
    %p201 = scmp.eq.s32.totalorder %s200, 0
    %s203 = sadd.s32 %s202, 1
    %s204 = scalar_select %p201, %s202, %s203
    %p207 = pneg %p201
    %p208 = scmp.eq.s32.totalorder %s14, 1
    %p209 = por %p207, %p208
    %p210 = scmp.ne.s32.totalorder %s202, %s205
    %p211 = scmp.eq.s32.totalorder %s14, 0
    %p212 = por %p210, %p211
    %p213 = scmp.ne.s32.totalorder %s202, %s205
    %p214 = scmp.eq.s32.totalorder %s19, 1
    %p215 = por %p213, %p214
    %p216 = scmp.ne.s32.totalorder %s205, %s206
    %p217 = scmp.eq.s32.totalorder %s19, 0
    %p218 = por %p216, %p217
    %p219 = scmp.ne.s32.totalorder %s205, %s206
    %p220 = scmp.eq.s32.totalorder %s20, 1
    %p221 = por %p219, %p220
    %p223 = scmp.ne.s32.totalorder %s206, %s222
    %p224 = scmp.eq.s32.totalorder %s20, 0
    %p225 = por %p223, %p224
    %p226 = scmp.le.s32.totalorder 1, %s14
    %p227 = scmp.lt.s32.totalorder %s14, 3
    %p228 = pnand %p226, %p227
    %p229 = pneg %p228
    // Predicated region
    $region9: #{single_vq_forward.6} parent=5 // pred_check
      _
    $region10: #{single_vq_forward.6} parent=5 // pred_check_branch
      %231 = sbr.rel (%p228) target = $region12
    $region11: #{single_vq_forward.6} parent=5 // pred_region
      %s232 = ssub.s32 %s14, 1
      // Predicated region
      $region13: #{single_vq_forward.6} parent=11 // pred_check
        %p233 = pneg %p87
      $region14: #{single_vq_forward.6} parent=11 // pred_check_branch
        %235 = sbr.rel (%p233) target = $region16
      $region15: #{single_vq_forward.6} parent=11 // pred_region
        _
      $region16: #{single_vq_forward.6} parent=11 // pred_fallthru
        _
      // Predicated region
      $region17: #{single_vq_forward.6} parent=11 // pred_check
        %p236 = pneg %p108
      $region18: #{single_vq_forward.6} parent=11 // pred_check_branch
        %238 = sbr.rel (%p236) target = $region20
      $region19: #{single_vq_forward.6} parent=11 // pred_region
        _
      $region20: #{single_vq_forward.6} parent=11 // pred_fallthru
        _
      // Predicated region
      $region21: #{single_vq_forward.6} parent=11 // pred_check
        %p239 = pneg %p129
      $region22: #{single_vq_forward.6} parent=11 // pred_check_branch
        %241 = sbr.rel (%p239) target = $region24
      $region23: #{single_vq_forward.6} parent=11 // pred_region
        _
      $region24: #{single_vq_forward.6} parent=11 // pred_fallthru
        _
      // Predicated region
      $region25: #{single_vq_forward.6} parent=11 // pred_check
        %p242 = pneg %p150
      $region26: #{single_vq_forward.6} parent=11 // pred_check_branch
        %244 = sbr.rel (%p242) target = $region28
      $region27: #{single_vq_forward.6} parent=11 // pred_region
        _
      $region28: #{single_vq_forward.6} parent=11 // pred_fallthru
        _
      // Predicated region
      $region29: #{single_vq_forward.6} parent=11 // pred_check
        %p245 = pneg %p171
      $region30: #{single_vq_forward.6} parent=11 // pred_check_branch
        %247 = sbr.rel (%p245) target = $region32
      $region31: #{single_vq_forward.6} parent=11 // pred_region
        _
      $region32: #{single_vq_forward.6} parent=11 // pred_fallthru
        _
      // Predicated region
      $region33: #{single_vq_forward.6} parent=11 // pred_check
        %p248 = pneg %p192
      $region34: #{single_vq_forward.6} parent=11 // pred_check_branch
        %250 = sbr.rel (%p248) target = $region36
      $region35: #{single_vq_forward.6} parent=11 // pred_region
        _
      $region36: #{single_vq_forward.6} parent=11 // pred_fallthru
        _
    $region12: #{single_vq_forward.6} parent=5 // pred_fallthru
      _
    %p251 = scmp.lt.s32.totalorder %s14, 2
    // Predicated region
    $region37: #{single_vq_forward.6} parent=5 // pred_check
      %p252 = pneg %p251
    $region38: #{single_vq_forward.6} parent=5 // pred_check_branch
      %254 = sbr.rel (%p252) target = $region40
    $region39: #{single_vq_forward.6} parent=5 // pred_region
      // Predicated region
      $region41: #{single_vq_forward.6} parent=39 // pred_check
        %p255 = pneg %p34
      $region42: #{single_vq_forward.6} parent=39 // pred_check_branch
        %257 = sbr.rel (%p255) target = $region44
      $region43: #{single_vq_forward.6} parent=39 // pred_region
        %p258 = scmp.lt.s32.totalorder %s14, 1
        %s259 = scalar_select %p258, %s14, 1
        %s260 = smul.addr %s259, 4
        %s261 = smul.addr %s260, 8
        %s262 = scalar_lea.vmem %s0, %s261
      $region44: #{single_vq_forward.6} parent=39 // pred_fallthru
        _
      // Predicated region
      $region45: #{single_vq_forward.6} parent=39 // pred_check
        %p263 = pneg %p60
      $region46: #{single_vq_forward.6} parent=39 // pred_check_branch
        %265 = sbr.rel (%p263) target = $region48
      $region47: #{single_vq_forward.6} parent=39 // pred_region
        %p266 = scmp.lt.s32.totalorder %s14, 1
        %s267 = scalar_select %p266, %s14, 1
        %s268 = smul.addr %s267, 2
        %s269 = scalar_lea.vmem %s1, %s268
      $region48: #{single_vq_forward.6} parent=39 // pred_fallthru
        _
    $region40: #{single_vq_forward.6} parent=5 // pred_fallthru
      _
    %p270 = scmp.le.s32.totalorder 1, %s14
    %p271 = scmp.lt.s32.totalorder %s14, 3
    %p272 = pnand %p270, %p271
    %p273 = pneg %p272
    // Predicated region
    $region49: #{single_vq_forward.6} parent=5 // pred_check
      _
    $region50: #{single_vq_forward.6} parent=5 // pred_check_branch
      %275 = sbr.rel (%p272) target = $region52
    $region51: #{single_vq_forward.6} parent=5 // pred_region
      %s276 = ssub.s32 %s14, 1
      %p277 = scmp.lt.s32.totalorder %s19, 1
      %s278 = scalar_select %p277, %s19, 1
      %s279 = smul.addr %s278, 4
      %s280 = smul.addr %s279, 8
      %s281 = scalar_lea.vmem %s0, %s280
      %p282 = pneg %p40
      %p283 = pneg %p37
      %p284 = scmp.lt.s32.totalorder %s19, 1
      %s285 = scalar_select %p284, %s19, 1
      %s286 = smul.addr %s285, 2
      %s287 = scalar_lea.vmem %s1, %s286
      %p288 = pneg %p66
      %p289 = pneg %p63
      %p290 = pneg %p87
      %p291 = pneg %p84
      %p292 = pneg %p108
      %p293 = pneg %p105
      %p294 = pneg %p129
      %p295 = pneg %p126
      %p296 = pneg %p150
      %p297 = pneg %p147
      %p298 = pneg %p171
      %p299 = pneg %p168
      %p300 = pneg %p192
      %p301 = pneg %p189
      %p302 = pneg %p218
      %p303 = pneg %p215
      %p304 = scmp.lt.s32.totalorder %s19, 1
      %s305 = scalar_select %p304, %s19, 1
      %s306 = smul.addr %s305, 8
      %s307 = smul.addr %s306, 8
      %s308 = scalar_lea.vmem %s8, %s307
      %p309 = scmp.lt.s32.totalorder %s19, 1
      %s310 = scalar_select %p309, %s19, 1
      %s311 = smul.addr %s310, 4
      %s312 = smul.addr %s311, 8
      %s313 = scalar_lea.vmem %s0, %s312
      %p314 = scmp.lt.s32.totalorder %s19, 1
      %s315 = scalar_select %p314, %s19, 1
      %s316 = smul.addr %s315, 2
      %s317 = scalar_lea.vmem %s1, %s316
      %p318 = scmp.lt.s32.totalorder %s19, 1
      %s319 = scalar_select %p318, %s19, 1
      %s320 = smul.addr %s319, 8
      %s321 = smul.addr %s320, 8
      %s322 = scalar_lea.vmem %s8, %s321
      %v324 = vld [vmem:[%s313] sm:$0xff]
      %v325 = vld [vmem:[%s313 + $0x8] sm:$0xff]
      %v326 = vld [vmem:[%s313 + $0x10] sm:$0xff]
      %v327 = vld [vmem:[%s313 + $0x18] sm:$0xff]
      %v328 = vld [vmem:[%s317] sm:$0x3]
      %v329 = vld [vmem:[%s2] sm:$0xf]
      %v330 = vld [vmem:[%s2 + $0x4] sm:$0xf]
      %v331 = vld [vmem:[%s2 + $0x8] sm:$0xf]
      %v332 = vld [vmem:[%s2 + $0xc] sm:$0xf]
      %v333 = vpack.c.bf16 %v326, %v324
      %v334 = vpack.c.bf16 %v327, %v325
      %v335 = vld [vmem:[%s3] sm:$0xff]
      %v336 = vld [vmem:[%s3 + $0x8] sm:$0xff]
      %v337 = vld [vmem:[%s3 + $0x10] sm:$0xff]
      %v338 = vld [vmem:[%s3 + $0x18] sm:$0xff]
      %340 = vset.pattern.permute.xlu0 0
      %341 = vperm.xlu0 %340, %v335
      %v342 = vpop.permute.xlu0 %341
      %345 = vset.pattern.permute.xlu0 0
      %346 = vperm.xlu0 %345, %v336
      %v347 = vpop.permute.xlu0 %346
      %350 = vset.pattern.permute.xlu0 0
      %351 = vperm.xlu0 %350, %v337
      %v352 = vpop.permute.xlu0 %351
      %355 = vset.pattern.permute.xlu0 0
      %356 = vperm.xlu0 %355, %v338
      %v357 = vpop.permute.xlu0 %356
      %v363 = vunpack.c.l.b16 %v329
      %v364 = vunpack.c.l.b16 %v330
      %v365 = vunpack.c.l.b16 %v331
      %v366 = vunpack.c.l.b16 %v332
      %v367 = vpack.c.b16 %v364, %v363
      %v368 = vpack.c.b16 %v366, %v365
      %vm369 = vcmask 130048
      %v371 = vsel %vm369, %v367, 0
      %v374 = vsel %vm369, %v368, 0
      %376 = vmatpush.bf16.msra.mxu0 0
      %377 = vmatpush.bf16.msra.mxu0 0
      %378 = vmatpush.bf16.msra.mxu0 0
      %379 = vmatpush.bf16.msra.mxu0 0
      %380 = vmatpush.bf16.msra.mxu0 0
      %381 = vmatpush.bf16.msra.mxu0 0
      %382 = vmatpush.bf16.msra.mxu0 0
      %383 = vmatpush.bf16.msra.mxu0 %v333
      %384 = vmatmul.bf16.gmra.mxu0 %v371
      %v385 = vpop.f32.mrf.mxu0
      %v386 = vadd.f32 %v342, %v385
      %v387 = vpop.f32.mrf.mxu0
      %v388 = vadd.f32 %v347, %v387
      %389 = vmatmul.bf16.gmra.mxu0 %v374
      %v390 = vpop.f32.mrf.mxu0
      %v391 = vadd.f32 %v352, %v390
      %v392 = vpop.f32.mrf.mxu0
      %v393 = vadd.f32 %v357, %v392
      %394 = vdwg.mxu0
      %395 = vmatpush.bf16.msra.mxu0 0
      %396 = vmatpush.bf16.msra.mxu0 0
      %397 = vmatpush.bf16.msra.mxu0 0
      %398 = vmatpush.bf16.msra.mxu0 0
      %399 = vmatpush.bf16.msra.mxu0 0
      %400 = vmatpush.bf16.msra.mxu0 0
      %401 = vmatpush.bf16.msra.mxu0 0
      %402 = vmatpush.bf16.msra.mxu0 %v334
      %403 = vmatmul.bf16.gmra.mxu0 %v371
      %v404 = vpop.f32.mrf.mxu0
      %v405 = vadd.f32 %v342, %v404
      %v406 = vpop.f32.mrf.mxu0
      %v407 = vadd.f32 %v347, %v406
      %408 = vmatmul.bf16.gmra.mxu0 %v374
      %v409 = vpop.f32.mrf.mxu0
      %v410 = vadd.f32 %v352, %v409
      %v411 = vpop.f32.mrf.mxu0
      %v412 = vadd.f32 %v357, %v411
      %413 = vdwg.mxu0
      %v414 = vlaneseq
      %v415 = vand.u32 %v414, 127
      %v416 = vadd.s32 %v415, 128
      %v417 = vpack.c.bf16 %v405, %v386
      %v418 = vpack.c.bf16 %v407, %v388
      %v419 = vpack.c.bf16 %v410, %v391
      %v420 = vpack.c.bf16 %v412, %v393
      %vm421 = vcmp.ge.s32.totalorder %v415, 1
      %vm422 = vcmp.ge.s32.totalorder %v416, 1
      %423 = vrot.lane.b32.xlu0 %v386, 1
      %v424 = vpop.permute.xlu0 %423
      %425 = vrot.lane.b32.xlu0 %v388, 1
      %v426 = vpop.permute.xlu0 %425
      %427 = vrot.lane.b32.xlu0 %v391, 1
      %v428 = vpop.permute.xlu0 %427
      %429 = vrot.lane.b32.xlu0 %v393, 1
      %v430 = vpop.permute.xlu0 %429
      %431 = vrot.lane.b32.xlu0 %v405, 1
      %v432 = vpop.permute.xlu0 %431
      %433 = vrot.lane.b32.xlu0 %v407, 1
      %v434 = vpop.permute.xlu0 %433
      %435 = vrot.lane.b32.xlu0 %v410, 1
      %v436 = vpop.permute.xlu0 %435
      %437 = vrot.lane.b32.xlu0 %v412, 1
      %v438 = vpop.permute.xlu0 %437
      %vm439 = vcmp.lt.s32.totalorder %v415, 1
      %v440 = vsel %vm439, %v424, %v432
      %v441 = vsel %vm439, %v426, %v434
      %v442 = vsel %vm439, %v428, %v436
      %v443 = vsel %vm439, %v430, %v438
      %v444 = vsel %vm439, %v432, %v424
      %v445 = vsel %vm439, %v434, %v426
      %v446 = vsel %vm439, %v436, %v428
      %v447 = vsel %vm439, %v438, %v430
      %v448 = vsel %vm421, 1, 0
      %v449 = vsel %vm422, 1, 0
      %vm450 = vcmp.eq.s32.totalorder %v448, 1
      %vm451 = vcmp.eq.s32.totalorder %v449, 1
      %v452 = vsel %vm450, %v444, 0.0
      %v453 = vsel %vm451, %v440, 0.0
      %v454 = vsel %vm450, %v445, 0.0
      %v455 = vsel %vm451, %v441, 0.0
      %v456 = vsel %vm450, %v446, 0.0
      %v457 = vsel %vm451, %v442, 0.0
      %v458 = vsel %vm450, %v447, 0.0
      %v459 = vsel %vm451, %v443, 0.0
      %v460 = vpack.c.bf16 %v453, %v452
      %v461 = vpack.c.bf16 %v455, %v454
      %v462 = vpack.c.bf16 %v457, %v456
      %v463 = vpack.c.bf16 %v459, %v458
      %vm464 = vcmp.lt.s32.totalorder %v415, 255
      %vm465 = vcmp.lt.s32.totalorder %v416, 255
      %466 = vrot.lane.b32.xlu0 %v386, 127
      %v467 = vpop.permute.xlu0 %466
      %468 = vrot.lane.b32.xlu0 %v388, 127
      %v469 = vpop.permute.xlu0 %468
      %470 = vrot.lane.b32.xlu0 %v391, 127
      %v471 = vpop.permute.xlu0 %470
      %472 = vrot.lane.b32.xlu0 %v393, 127
      %v473 = vpop.permute.xlu0 %472
      %474 = vrot.lane.b32.xlu0 %v405, 127
      %v475 = vpop.permute.xlu0 %474
      %476 = vrot.lane.b32.xlu0 %v407, 127
      %v477 = vpop.permute.xlu0 %476
      %478 = vrot.lane.b32.xlu0 %v410, 127
      %v479 = vpop.permute.xlu0 %478
      %480 = vrot.lane.b32.xlu0 %v412, 127
      %v481 = vpop.permute.xlu0 %480
      %vm482 = vcmp.lt.s32.totalorder %v415, 127
      %v483 = vsel %vm482, %v467, %v475
      %v484 = vsel %vm482, %v469, %v477
      %v485 = vsel %vm482, %v471, %v479
      %v486 = vsel %vm482, %v473, %v481
      %v487 = vsel %vm482, %v475, %v467
      %v488 = vsel %vm482, %v477, %v469
      %v489 = vsel %vm482, %v479, %v471
      %v490 = vsel %vm482, %v481, %v473
      %v491 = vsel %vm464, 1, 0
      %v492 = vsel %vm465, 1, 0
      %vm493 = vcmp.eq.s32.totalorder %v491, 1
      %vm494 = vcmp.eq.s32.totalorder %v492, 1
      %v495 = vsel %vm493, %v483, 0.0
      %v496 = vsel %vm494, %v487, 0.0
      %v497 = vsel %vm493, %v484, 0.0
      %v498 = vsel %vm494, %v488, 0.0
      %v499 = vsel %vm493, %v485, 0.0
      %v500 = vsel %vm494, %v489, 0.0
      %v501 = vsel %vm493, %v486, 0.0
      %v502 = vsel %vm494, %v490, 0.0
      %v503 = vpack.c.bf16 %v496, %v495
      %v504 = vpack.c.bf16 %v498, %v497
      %v505 = vpack.c.bf16 %v500, %v499
      %v506 = vpack.c.bf16 %v502, %v501
      %v511 = vunpack.c.l.b16 %v460
      %v512 = vunpack.c.h.b16 %v460
      %v513 = vunpack.c.l.b16 %v461
      %v514 = vunpack.c.h.b16 %v461
      %v515 = vunpack.c.l.b16 %v462
      %v516 = vunpack.c.h.b16 %v462
      %v517 = vunpack.c.l.b16 %v463
      %v518 = vunpack.c.h.b16 %v463
      %v519 = vpack.c.b16 %v513, %v511
      %v520 = vpack.c.b16 %v514, %v512
      %v521 = vpack.c.b16 %v517, %v515
      %v522 = vpack.c.b16 %v518, %v516
      %v531 = vunpack.c.l.b16 %v417
      %v532 = vunpack.c.h.b16 %v417
      %v533 = vunpack.c.l.b16 %v418
      %v534 = vunpack.c.h.b16 %v418
      %v535 = vunpack.c.l.b16 %v419
      %v536 = vunpack.c.h.b16 %v419
      %v537 = vunpack.c.l.b16 %v420
      %v538 = vunpack.c.h.b16 %v420
      %v539 = vpack.c.b16 %v533, %v531
      %v540 = vpack.c.b16 %v534, %v532
      %v541 = vpack.c.b16 %v537, %v535
      %v542 = vpack.c.b16 %v538, %v536
      %v551 = vunpack.c.l.b16 %v503
      %v552 = vunpack.c.h.b16 %v503
      %v553 = vunpack.c.l.b16 %v504
      %v554 = vunpack.c.h.b16 %v504
      %v555 = vunpack.c.l.b16 %v505
      %v556 = vunpack.c.h.b16 %v505
      %v557 = vunpack.c.l.b16 %v506
      %v558 = vunpack.c.h.b16 %v506
      %v559 = vpack.c.b16 %v553, %v551
      %v560 = vpack.c.b16 %v554, %v552
      %v561 = vpack.c.b16 %v557, %v555
      %v562 = vpack.c.b16 %v558, %v556
      %v567 = vld [vmem:[%s4] sm:$0xf]
      %v568 = vld [vmem:[%s4 + $0x4] sm:$0xf]
      %v569 = vld [vmem:[%s4 + $0x8] sm:$0xf]
      %v570 = vld [vmem:[%s4 + $0xc] sm:$0xf]
      %v571 = vld [vmem:[%s5] sm:$0xff]
      %v572 = vld [vmem:[%s5 + $0x8] sm:$0xff]
      %v573 = vld [vmem:[%s5 + $0x10] sm:$0xff]
      %v574 = vld [vmem:[%s5 + $0x18] sm:$0xff]
      %576 = vset.pattern.permute.xlu0 0
      %577 = vperm.xlu0 %576, %v571
      %v578 = vpop.permute.xlu0 %577
      %581 = vset.pattern.permute.xlu0 0
      %582 = vperm.xlu0 %581, %v572
      %v583 = vpop.permute.xlu0 %582
      %586 = vset.pattern.permute.xlu0 0
      %587 = vperm.xlu0 %586, %v573
      %v588 = vpop.permute.xlu0 %587
      %591 = vset.pattern.permute.xlu0 0
      %592 = vperm.xlu0 %591, %v574
      %v593 = vpop.permute.xlu0 %592
      %v599 = vunpack.c.l.b16 %v567
      %v600 = vunpack.c.l.b16 %v568
      %v601 = vunpack.c.l.b16 %v569
      %v602 = vunpack.c.l.b16 %v570
      %v603 = vpack.c.b16 %v600, %v599
      %v604 = vpack.c.b16 %v602, %v601
      %vm605 = vcmask 785408
      %v607 = vsel %vm605, %v603, 0
      %v610 = vsel %vm605, %v604, 0
      %612 = vmatpush.bf16.msra.mxu0 0
      %613 = vmatpush.bf16.msra.mxu0 0
      %614 = vmatpush.bf16.msra.mxu0 %v561
      %615 = vmatpush.bf16.msra.mxu0 %v559
      %616 = vmatpush.bf16.msra.mxu0 %v541
      %617 = vmatpush.bf16.msra.mxu0 %v539
      %618 = vmatpush.bf16.msra.mxu0 %v521
      %619 = vmatpush.bf16.msra.mxu0 %v519
      %620 = vmatmul.bf16.gmra.mxu0 %v607
      %v621 = vpop.f32.mrf.mxu0
      %v622 = vadd.f32 %v578, %v621
      %v623 = vpop.f32.mrf.mxu0
      %v624 = vadd.f32 %v583, %v623
      %625 = vmatmul.bf16.gmra.mxu0 %v610
      %v626 = vpop.f32.mrf.mxu0
      %v627 = vadd.f32 %v588, %v626
      %v628 = vpop.f32.mrf.mxu0
      %v629 = vadd.f32 %v593, %v628
      %630 = vdwg.mxu0
      %631 = vmatpush.bf16.msra.mxu0 0
      %632 = vmatpush.bf16.msra.mxu0 0
      %633 = vmatpush.bf16.msra.mxu0 %v562
      %634 = vmatpush.bf16.msra.mxu0 %v560
      %635 = vmatpush.bf16.msra.mxu0 %v542
      %636 = vmatpush.bf16.msra.mxu0 %v540
      %637 = vmatpush.bf16.msra.mxu0 %v522
      %638 = vmatpush.bf16.msra.mxu0 %v520
      %639 = vmatmul.bf16.gmra.mxu0 %v607
      %v640 = vpop.f32.mrf.mxu0
      %v641 = vadd.f32 %v578, %v640
      %v642 = vpop.f32.mrf.mxu0
      %v643 = vadd.f32 %v583, %v642
      %644 = vmatmul.bf16.gmra.mxu0 %v610
      %v645 = vpop.f32.mrf.mxu0
      %v646 = vadd.f32 %v588, %v645
      %v647 = vpop.f32.mrf.mxu0
      %v648 = vadd.f32 %v593, %v647
      %649 = vdwg.mxu0
      %v650 = vmax.f32 %v622, 0.0
      %v651 = vmax.f32 %v641, 0.0
      %v652 = vmax.f32 %v624, 0.0
      %v653 = vmax.f32 %v643, 0.0
      %v654 = vmax.f32 %v627, 0.0
      %v655 = vmax.f32 %v646, 0.0
      %v656 = vmax.f32 %v629, 0.0
      %v657 = vmax.f32 %v648, 0.0
      %v658 = vpack.c.bf16 %v652, %v650
      %v659 = vpack.c.bf16 %v653, %v651
      %v660 = vpack.c.bf16 %v656, %v654
      %v661 = vpack.c.bf16 %v657, %v655
      %v662 = vld [vmem:[%s6] sm:$0xf]
      %v663 = vld [vmem:[%s6 + $0x4] sm:$0xf]
      %v664 = vld [vmem:[%s6 + $0x8] sm:$0xf]
      %v665 = vld [vmem:[%s6 + $0xc] sm:$0xf]
      %v666 = vld [vmem:[%s7] sm:$0xff]
      %v667 = vld [vmem:[%s7 + $0x8] sm:$0xff]
      %v668 = vld [vmem:[%s7 + $0x10] sm:$0xff]
      %v669 = vld [vmem:[%s7 + $0x18] sm:$0xff]
      %671 = vset.pattern.permute.xlu0 0
      %672 = vperm.xlu0 %671, %v666
      %v673 = vpop.permute.xlu0 %672
      %676 = vset.pattern.permute.xlu0 0
      %677 = vperm.xlu0 %676, %v667
      %v678 = vpop.permute.xlu0 %677
      %681 = vset.pattern.permute.xlu0 0
      %682 = vperm.xlu0 %681, %v668
      %v683 = vpop.permute.xlu0 %682
      %686 = vset.pattern.permute.xlu0 0
      %687 = vperm.xlu0 %686, %v669
      %v688 = vpop.permute.xlu0 %687
      %v694 = vunpack.c.l.b16 %v662
      %v695 = vunpack.c.l.b16 %v663
      %v696 = vunpack.c.l.b16 %v664
      %v697 = vunpack.c.l.b16 %v665
      %v698 = vpack.c.b16 %v695, %v694
      %v699 = vpack.c.b16 %v697, %v696
      %vm700 = vcmask 261120
      %v702 = vsel %vm700, %v698, 0
      %v705 = vsel %vm700, %v699, 0
      %707 = vmatpush.bf16.msra.mxu0 0
      %708 = vmatpush.bf16.msra.mxu0 0
      %709 = vmatpush.bf16.msra.mxu0 0
      %710 = vmatpush.bf16.msra.mxu0 0
      %711 = vmatpush.bf16.msra.mxu0 0
      %712 = vmatpush.bf16.msra.mxu0 0
      %713 = vmatpush.bf16.msra.mxu0 %v660
      %714 = vmatpush.bf16.msra.mxu0 %v658
      %715 = vmatmul.bf16.gmra.mxu0 %v702
      %v716 = vpop.f32.mrf.mxu0
      %v717 = vadd.f32 %v673, %v716
      %v718 = vpop.f32.mrf.mxu0
      %v719 = vadd.f32 %v678, %v718
      %720 = vmatmul.bf16.gmra.mxu0 %v705
      %v721 = vpop.f32.mrf.mxu0
      %v722 = vadd.f32 %v683, %v721
      %v723 = vpop.f32.mrf.mxu0
      %v724 = vadd.f32 %v688, %v723
      %725 = vdwg.mxu0
      %726 = vmatpush.bf16.msra.mxu0 0
      %727 = vmatpush.bf16.msra.mxu0 0
      %728 = vmatpush.bf16.msra.mxu0 0
      %729 = vmatpush.bf16.msra.mxu0 0
      %730 = vmatpush.bf16.msra.mxu0 0
      %731 = vmatpush.bf16.msra.mxu0 0
      %732 = vmatpush.bf16.msra.mxu0 %v661
      %733 = vmatpush.bf16.msra.mxu0 %v659
      %734 = vmatmul.bf16.gmra.mxu0 %v702
      %v735 = vpop.f32.mrf.mxu0
      %v736 = vadd.f32 %v673, %v735
      %v737 = vpop.f32.mrf.mxu0
      %v738 = vadd.f32 %v678, %v737
      %739 = vmatmul.bf16.gmra.mxu0 %v705
      %v740 = vpop.f32.mrf.mxu0
      %v741 = vadd.f32 %v683, %v740
      %v742 = vpop.f32.mrf.mxu0
      %v743 = vadd.f32 %v688, %v742
      %744 = vdwg.mxu0
      %v745 = vadd.f32 %v386, %v717
      %v746 = vadd.f32 %v405, %v736
      %v747 = vadd.f32 %v388, %v719
      %v748 = vadd.f32 %v407, %v738
      %v749 = vadd.f32 %v391, %v722
      %v750 = vadd.f32 %v410, %v741
      %v751 = vadd.f32 %v393, %v724
      %v752 = vadd.f32 %v412, %v743
      %v754 = vperm.slane %v328, 0
      %v755 = vperm.slane %v328, 1
      %v758 = vmul.f32 %v745, %v754
      %v759 = vmul.f32 %v746, %v755
      %v760 = vmul.f32 %v747, %v754
      %v761 = vmul.f32 %v748, %v755
      %v762 = vmul.f32 %v749, %v754
      %v763 = vmul.f32 %v750, %v755
      %v764 = vmul.f32 %v751, %v754
      %v765 = vmul.f32 %v752, %v755
      %v766 = vpack.c.bf16 %v759, %v758
      %v767 = vpack.c.bf16 %v761, %v760
      %v768 = vpack.c.bf16 %v763, %v762
      %v769 = vpack.c.bf16 %v765, %v764
      %vm770 = vcmp.ge.s32.totalorder %v415, 2
      %vm771 = vcmp.ge.s32.totalorder %v416, 2
      %772 = vrot.lane.b32.xlu0 %v758, 2
      %v773 = vpop.permute.xlu0 %772
      %774 = vrot.lane.b32.xlu0 %v760, 2
      %v775 = vpop.permute.xlu0 %774
      %776 = vrot.lane.b32.xlu0 %v762, 2
      %v777 = vpop.permute.xlu0 %776
      %778 = vrot.lane.b32.xlu0 %v764, 2
      %v779 = vpop.permute.xlu0 %778
      %780 = vrot.lane.b32.xlu0 %v759, 2
      %v781 = vpop.permute.xlu0 %780
      %782 = vrot.lane.b32.xlu0 %v761, 2
      %v783 = vpop.permute.xlu0 %782
      %784 = vrot.lane.b32.xlu0 %v763, 2
      %v785 = vpop.permute.xlu0 %784
      %786 = vrot.lane.b32.xlu0 %v765, 2
      %v787 = vpop.permute.xlu0 %786
      %vm788 = vcmp.lt.s32.totalorder %v415, 2
      %v789 = vsel %vm788, %v773, %v781
      %v790 = vsel %vm788, %v775, %v783
      %v791 = vsel %vm788, %v777, %v785
      %v792 = vsel %vm788, %v779, %v787
      %v793 = vsel %vm788, %v781, %v773
      %v794 = vsel %vm788, %v783, %v775
      %v795 = vsel %vm788, %v785, %v777
      %v796 = vsel %vm788, %v787, %v779
      %v797 = vsel %vm770, 1, 0
      %v798 = vsel %vm771, 1, 0
      %vm799 = vcmp.eq.s32.totalorder %v797, 1
      %vm800 = vcmp.eq.s32.totalorder %v798, 1
      %v801 = vsel %vm799, %v793, 0.0
      %v802 = vsel %vm800, %v789, 0.0
      %v803 = vsel %vm799, %v794, 0.0
      %v804 = vsel %vm800, %v790, 0.0
      %v805 = vsel %vm799, %v795, 0.0
      %v806 = vsel %vm800, %v791, 0.0
      %v807 = vsel %vm799, %v796, 0.0
      %v808 = vsel %vm800, %v792, 0.0
      %v809 = vpack.c.bf16 %v802, %v801
      %v810 = vpack.c.bf16 %v804, %v803
      %v811 = vpack.c.bf16 %v806, %v805
      %v812 = vpack.c.bf16 %v808, %v807
      %vm813 = vcmp.lt.s32.totalorder %v415, 254
      %vm814 = vcmp.lt.s32.totalorder %v416, 254
      %815 = vrot.lane.b32.xlu0 %v758, 126
      %v816 = vpop.permute.xlu0 %815
      %817 = vrot.lane.b32.xlu0 %v760, 126
      %v818 = vpop.permute.xlu0 %817
      %819 = vrot.lane.b32.xlu0 %v762, 126
      %v820 = vpop.permute.xlu0 %819
      %821 = vrot.lane.b32.xlu0 %v764, 126
      %v822 = vpop.permute.xlu0 %821
      %823 = vrot.lane.b32.xlu0 %v759, 126
      %v824 = vpop.permute.xlu0 %823
      %825 = vrot.lane.b32.xlu0 %v761, 126
      %v826 = vpop.permute.xlu0 %825
      %827 = vrot.lane.b32.xlu0 %v763, 126
      %v828 = vpop.permute.xlu0 %827
      %829 = vrot.lane.b32.xlu0 %v765, 126
      %v830 = vpop.permute.xlu0 %829
      %vm831 = vcmp.lt.s32.totalorder %v415, 126
      %v832 = vsel %vm831, %v816, %v824
      %v833 = vsel %vm831, %v818, %v826
      %v834 = vsel %vm831, %v820, %v828
      %v835 = vsel %vm831, %v822, %v830
      %v836 = vsel %vm831, %v824, %v816
      %v837 = vsel %vm831, %v826, %v818
      %v838 = vsel %vm831, %v828, %v820
      %v839 = vsel %vm831, %v830, %v822
      %v840 = vsel %vm813, 1, 0
      %v841 = vsel %vm814, 1, 0
      %vm842 = vcmp.eq.s32.totalorder %v840, 1
      %vm843 = vcmp.eq.s32.totalorder %v841, 1
      %v844 = vsel %vm842, %v832, 0.0
      %v845 = vsel %vm843, %v836, 0.0
      %v846 = vsel %vm842, %v833, 0.0
      %v847 = vsel %vm843, %v837, 0.0
      %v848 = vsel %vm842, %v834, 0.0
      %v849 = vsel %vm843, %v838, 0.0
      %v850 = vsel %vm842, %v835, 0.0
      %v851 = vsel %vm843, %v839, 0.0
      %v852 = vpack.c.bf16 %v845, %v844
      %v853 = vpack.c.bf16 %v847, %v846
      %v854 = vpack.c.bf16 %v849, %v848
      %v855 = vpack.c.bf16 %v851, %v850
      %v860 = vunpack.c.l.b16 %v809
      %v861 = vunpack.c.h.b16 %v809
      %v862 = vunpack.c.l.b16 %v810
      %v863 = vunpack.c.h.b16 %v810
      %v864 = vunpack.c.l.b16 %v811
      %v865 = vunpack.c.h.b16 %v811
      %v866 = vunpack.c.l.b16 %v812
      %v867 = vunpack.c.h.b16 %v812
      %v868 = vpack.c.b16 %v862, %v860
      %v869 = vpack.c.b16 %v863, %v861
      %v870 = vpack.c.b16 %v866, %v864
      %v871 = vpack.c.b16 %v867, %v865
      %v880 = vunpack.c.l.b16 %v766
      %v881 = vunpack.c.h.b16 %v766
      %v882 = vunpack.c.l.b16 %v767
      %v883 = vunpack.c.h.b16 %v767
      %v884 = vunpack.c.l.b16 %v768
      %v885 = vunpack.c.h.b16 %v768
      %v886 = vunpack.c.l.b16 %v769
      %v887 = vunpack.c.h.b16 %v769
      %v888 = vpack.c.b16 %v882, %v880
      %v889 = vpack.c.b16 %v883, %v881
      %v890 = vpack.c.b16 %v886, %v884
      %v891 = vpack.c.b16 %v887, %v885
      %v900 = vunpack.c.l.b16 %v852
      %v901 = vunpack.c.h.b16 %v852
      %v902 = vunpack.c.l.b16 %v853
      %v903 = vunpack.c.h.b16 %v853
      %v904 = vunpack.c.l.b16 %v854
      %v905 = vunpack.c.h.b16 %v854
      %v906 = vunpack.c.l.b16 %v855
      %v907 = vunpack.c.h.b16 %v855
      %v908 = vpack.c.b16 %v902, %v900
      %v909 = vpack.c.b16 %v903, %v901
      %v910 = vpack.c.b16 %v906, %v904
      %v911 = vpack.c.b16 %v907, %v905
      %s916 = scalar_lea.vmem %s4, 16
      %v917 = vld [vmem:[%s916] sm:$0xf]
      %v918 = vld [vmem:[%s916 + $0x4] sm:$0xf]
      %v919 = vld [vmem:[%s916 + $0x8] sm:$0xf]
      %v920 = vld [vmem:[%s916 + $0xc] sm:$0xf]
      %s921 = scalar_lea.vmem %s5, 32
      %v922 = vld [vmem:[%s921] sm:$0xff]
      %v923 = vld [vmem:[%s921 + $0x8] sm:$0xff]
      %v924 = vld [vmem:[%s921 + $0x10] sm:$0xff]
      %v925 = vld [vmem:[%s921 + $0x18] sm:$0xff]
      %927 = vset.pattern.permute.xlu0 0
      %928 = vperm.xlu0 %927, %v922
      %v929 = vpop.permute.xlu0 %928
      %932 = vset.pattern.permute.xlu0 0
      %933 = vperm.xlu0 %932, %v923
      %v934 = vpop.permute.xlu0 %933
      %937 = vset.pattern.permute.xlu0 0
      %938 = vperm.xlu0 %937, %v924
      %v939 = vpop.permute.xlu0 %938
      %942 = vset.pattern.permute.xlu0 0
      %943 = vperm.xlu0 %942, %v925
      %v944 = vpop.permute.xlu0 %943
      %v950 = vunpack.c.l.b16 %v917
      %v951 = vunpack.c.l.b16 %v918
      %v952 = vunpack.c.l.b16 %v919
      %v953 = vunpack.c.l.b16 %v920
      %v954 = vpack.c.b16 %v951, %v950
      %v955 = vpack.c.b16 %v953, %v952
      %v957 = vsel %vm605, %v954, 0
      %v960 = vsel %vm605, %v955, 0
      %962 = vmatpush.bf16.msra.mxu0 0
      %963 = vmatpush.bf16.msra.mxu0 0
      %964 = vmatpush.bf16.msra.mxu0 %v910
      %965 = vmatpush.bf16.msra.mxu0 %v908
      %966 = vmatpush.bf16.msra.mxu0 %v890
      %967 = vmatpush.bf16.msra.mxu0 %v888
      %968 = vmatpush.bf16.msra.mxu0 %v870
      %969 = vmatpush.bf16.msra.mxu0 %v868
      %970 = vmatmul.bf16.gmra.mxu0 %v957
      %v971 = vpop.f32.mrf.mxu0
      %v972 = vadd.f32 %v929, %v971
      %v973 = vpop.f32.mrf.mxu0
      %v974 = vadd.f32 %v934, %v973
      %975 = vmatmul.bf16.gmra.mxu0 %v960
      %v976 = vpop.f32.mrf.mxu0
      %v977 = vadd.f32 %v939, %v976
      %v978 = vpop.f32.mrf.mxu0
      %v979 = vadd.f32 %v944, %v978
      %980 = vdwg.mxu0
      %981 = vmatpush.bf16.msra.mxu0 0
      %982 = vmatpush.bf16.msra.mxu0 0
      %983 = vmatpush.bf16.msra.mxu0 %v911
      %984 = vmatpush.bf16.msra.mxu0 %v909
      %985 = vmatpush.bf16.msra.mxu0 %v891
      %986 = vmatpush.bf16.msra.mxu0 %v889
      %987 = vmatpush.bf16.msra.mxu0 %v871
      %988 = vmatpush.bf16.msra.mxu0 %v869
      %989 = vmatmul.bf16.gmra.mxu0 %v957
      %v990 = vpop.f32.mrf.mxu0
      %v991 = vadd.f32 %v929, %v990
      %v992 = vpop.f32.mrf.mxu0
      %v993 = vadd.f32 %v934, %v992
      %994 = vmatmul.bf16.gmra.mxu0 %v960
      %v995 = vpop.f32.mrf.mxu0
      %v996 = vadd.f32 %v939, %v995
      %v997 = vpop.f32.mrf.mxu0
      %v998 = vadd.f32 %v944, %v997
      %999 = vdwg.mxu0
      %v1000 = vmax.f32 %v972, 0.0
      %v1001 = vmax.f32 %v991, 0.0
      %v1002 = vmax.f32 %v974, 0.0
      %v1003 = vmax.f32 %v993, 0.0
      %v1004 = vmax.f32 %v977, 0.0
      %v1005 = vmax.f32 %v996, 0.0
      %v1006 = vmax.f32 %v979, 0.0
      %v1007 = vmax.f32 %v998, 0.0
      %v1008 = vpack.c.bf16 %v1002, %v1000
      %v1009 = vpack.c.bf16 %v1003, %v1001
      %v1010 = vpack.c.bf16 %v1006, %v1004
      %v1011 = vpack.c.bf16 %v1007, %v1005
      %s1012 = scalar_lea.vmem %s6, 16
      %v1013 = vld [vmem:[%s1012] sm:$0xf]
      %v1014 = vld [vmem:[%s1012 + $0x4] sm:$0xf]
      %v1015 = vld [vmem:[%s1012 + $0x8] sm:$0xf]
      %v1016 = vld [vmem:[%s1012 + $0xc] sm:$0xf]
      %s1017 = scalar_lea.vmem %s7, 32
      %v1018 = vld [vmem:[%s1017] sm:$0xff]
      %v1019 = vld [vmem:[%s1017 + $0x8] sm:$0xff]
      %v1020 = vld [vmem:[%s1017 + $0x10] sm:$0xff]
      %v1021 = vld [vmem:[%s1017 + $0x18] sm:$0xff]
      %1023 = vset.pattern.permute.xlu0 0
      %1024 = vperm.xlu0 %1023, %v1018
      %v1025 = vpop.permute.xlu0 %1024
      %1028 = vset.pattern.permute.xlu0 0
      %1029 = vperm.xlu0 %1028, %v1019
      %v1030 = vpop.permute.xlu0 %1029
      %1033 = vset.pattern.permute.xlu0 0
      %1034 = vperm.xlu0 %1033, %v1020
      %v1035 = vpop.permute.xlu0 %1034
      %1038 = vset.pattern.permute.xlu0 0
      %1039 = vperm.xlu0 %1038, %v1021
      %v1040 = vpop.permute.xlu0 %1039
      %v1046 = vunpack.c.l.b16 %v1013
      %v1047 = vunpack.c.l.b16 %v1014
      %v1048 = vunpack.c.l.b16 %v1015
      %v1049 = vunpack.c.l.b16 %v1016
      %v1050 = vpack.c.b16 %v1047, %v1046
      %v1051 = vpack.c.b16 %v1049, %v1048
      %v1053 = vsel %vm700, %v1050, 0
      %v1056 = vsel %vm700, %v1051, 0
      %1058 = vmatpush.bf16.msra.mxu0 0
      %1059 = vmatpush.bf16.msra.mxu0 0
      %1060 = vmatpush.bf16.msra.mxu0 0
      %1061 = vmatpush.bf16.msra.mxu0 0
      %1062 = vmatpush.bf16.msra.mxu0 0
      %1063 = vmatpush.bf16.msra.mxu0 0
      %1064 = vmatpush.bf16.msra.mxu0 %v1010
      %1065 = vmatpush.bf16.msra.mxu0 %v1008
      %1066 = vmatmul.bf16.gmra.mxu0 %v1053
      %v1067 = vpop.f32.mrf.mxu0
      %v1068 = vadd.f32 %v1025, %v1067
      %v1069 = vpop.f32.mrf.mxu0
      %v1070 = vadd.f32 %v1030, %v1069
      %1071 = vmatmul.bf16.gmra.mxu0 %v1056
      %v1072 = vpop.f32.mrf.mxu0
      %v1073 = vadd.f32 %v1035, %v1072
      %v1074 = vpop.f32.mrf.mxu0
      %v1075 = vadd.f32 %v1040, %v1074
      %1076 = vdwg.mxu0
      %1077 = vmatpush.bf16.msra.mxu0 0
      %1078 = vmatpush.bf16.msra.mxu0 0
      %1079 = vmatpush.bf16.msra.mxu0 0
      %1080 = vmatpush.bf16.msra.mxu0 0
      %1081 = vmatpush.bf16.msra.mxu0 0
      %1082 = vmatpush.bf16.msra.mxu0 0
      %1083 = vmatpush.bf16.msra.mxu0 %v1011
      %1084 = vmatpush.bf16.msra.mxu0 %v1009
      %1085 = vmatmul.bf16.gmra.mxu0 %v1053
      %v1086 = vpop.f32.mrf.mxu0
      %v1087 = vadd.f32 %v1025, %v1086
      %v1088 = vpop.f32.mrf.mxu0
      %v1089 = vadd.f32 %v1030, %v1088
      %1090 = vmatmul.bf16.gmra.mxu0 %v1056
      %v1091 = vpop.f32.mrf.mxu0
      %v1092 = vadd.f32 %v1035, %v1091
      %v1093 = vpop.f32.mrf.mxu0
      %v1094 = vadd.f32 %v1040, %v1093
      %1095 = vdwg.mxu0
      %v1096 = vadd.f32 %v758, %v1068
      %v1097 = vadd.f32 %v759, %v1087
      %v1098 = vadd.f32 %v760, %v1070
      %v1099 = vadd.f32 %v761, %v1089
      %v1100 = vadd.f32 %v762, %v1073
      %v1101 = vadd.f32 %v763, %v1092
      %v1102 = vadd.f32 %v764, %v1075
      %v1103 = vadd.f32 %v765, %v1094
      %v1104 = vmul.f32 %v1096, %v754
      %v1105 = vmul.f32 %v1097, %v755
      %v1106 = vmul.f32 %v1098, %v754
      %v1107 = vmul.f32 %v1099, %v755
      %v1108 = vmul.f32 %v1100, %v754
      %v1109 = vmul.f32 %v1101, %v755
      %v1110 = vmul.f32 %v1102, %v754
      %v1111 = vmul.f32 %v1103, %v755
      %v1112 = vpack.c.bf16 %v1105, %v1104
      %v1113 = vpack.c.bf16 %v1107, %v1106
      %v1114 = vpack.c.bf16 %v1109, %v1108
      %v1115 = vpack.c.bf16 %v1111, %v1110
      %vm1116 = vcmp.ge.s32.totalorder %v415, 4
      %vm1117 = vcmp.ge.s32.totalorder %v416, 4
      %1118 = vrot.lane.b32.xlu0 %v1104, 4
      %v1119 = vpop.permute.xlu0 %1118
      %1120 = vrot.lane.b32.xlu0 %v1106, 4
      %v1121 = vpop.permute.xlu0 %1120
      %1122 = vrot.lane.b32.xlu0 %v1108, 4
      %v1123 = vpop.permute.xlu0 %1122
      %1124 = vrot.lane.b32.xlu0 %v1110, 4
      %v1125 = vpop.permute.xlu0 %1124
      %1126 = vrot.lane.b32.xlu0 %v1105, 4
      %v1127 = vpop.permute.xlu0 %1126
      %1128 = vrot.lane.b32.xlu0 %v1107, 4
      %v1129 = vpop.permute.xlu0 %1128
      %1130 = vrot.lane.b32.xlu0 %v1109, 4
      %v1131 = vpop.permute.xlu0 %1130
      %1132 = vrot.lane.b32.xlu0 %v1111, 4
      %v1133 = vpop.permute.xlu0 %1132
      %vm1134 = vcmp.lt.s32.totalorder %v415, 4
      %v1135 = vsel %vm1134, %v1119, %v1127
      %v1136 = vsel %vm1134, %v1121, %v1129
      %v1137 = vsel %vm1134, %v1123, %v1131
      %v1138 = vsel %vm1134, %v1125, %v1133
      %v1139 = vsel %vm1134, %v1127, %v1119
      %v1140 = vsel %vm1134, %v1129, %v1121
      %v1141 = vsel %vm1134, %v1131, %v1123
      %v1142 = vsel %vm1134, %v1133, %v1125
      %v1143 = vsel %vm1116, 1, 0
      %v1144 = vsel %vm1117, 1, 0
      %vm1145 = vcmp.eq.s32.totalorder %v1143, 1
      %vm1146 = vcmp.eq.s32.totalorder %v1144, 1
      %v1147 = vsel %vm1145, %v1139, 0.0
      %v1148 = vsel %vm1146, %v1135, 0.0
      %v1149 = vsel %vm1145, %v1140, 0.0
      %v1150 = vsel %vm1146, %v1136, 0.0
      %v1151 = vsel %vm1145, %v1141, 0.0
      %v1152 = vsel %vm1146, %v1137, 0.0
      %v1153 = vsel %vm1145, %v1142, 0.0
      %v1154 = vsel %vm1146, %v1138, 0.0
      %v1155 = vpack.c.bf16 %v1148, %v1147
      %v1156 = vpack.c.bf16 %v1150, %v1149
      %v1157 = vpack.c.bf16 %v1152, %v1151
      %v1158 = vpack.c.bf16 %v1154, %v1153
      %vm1159 = vcmp.lt.s32.totalorder %v415, 252
      %vm1160 = vcmp.lt.s32.totalorder %v416, 252
      %1161 = vrot.lane.b32.xlu0 %v1104, 124
      %v1162 = vpop.permute.xlu0 %1161
      %1163 = vrot.lane.b32.xlu0 %v1106, 124
      %v1164 = vpop.permute.xlu0 %1163
      %1165 = vrot.lane.b32.xlu0 %v1108, 124
      %v1166 = vpop.permute.xlu0 %1165
      %1167 = vrot.lane.b32.xlu0 %v1110, 124
      %v1168 = vpop.permute.xlu0 %1167
      %1169 = vrot.lane.b32.xlu0 %v1105, 124
      %v1170 = vpop.permute.xlu0 %1169
      %1171 = vrot.lane.b32.xlu0 %v1107, 124
      %v1172 = vpop.permute.xlu0 %1171
      %1173 = vrot.lane.b32.xlu0 %v1109, 124
      %v1174 = vpop.permute.xlu0 %1173
      %1175 = vrot.lane.b32.xlu0 %v1111, 124
      %v1176 = vpop.permute.xlu0 %1175
      %vm1177 = vcmp.lt.s32.totalorder %v415, 124
      %v1178 = vsel %vm1177, %v1162, %v1170
      %v1179 = vsel %vm1177, %v1164, %v1172
      %v1180 = vsel %vm1177, %v1166, %v1174
      %v1181 = vsel %vm1177, %v1168, %v1176
      %v1182 = vsel %vm1177, %v1170, %v1162
      %v1183 = vsel %vm1177, %v1172, %v1164
      %v1184 = vsel %vm1177, %v1174, %v1166
      %v1185 = vsel %vm1177, %v1176, %v1168
      %v1186 = vsel %vm1159, 1, 0
      %v1187 = vsel %vm1160, 1, 0
      %vm1188 = vcmp.eq.s32.totalorder %v1186, 1
      %vm1189 = vcmp.eq.s32.totalorder %v1187, 1
      %v1190 = vsel %vm1188, %v1178, 0.0
      %v1191 = vsel %vm1189, %v1182, 0.0
      %v1192 = vsel %vm1188, %v1179, 0.0
      %v1193 = vsel %vm1189, %v1183, 0.0
      %v1194 = vsel %vm1188, %v1180, 0.0
      %v1195 = vsel %vm1189, %v1184, 0.0
      %v1196 = vsel %vm1188, %v1181, 0.0
      %v1197 = vsel %vm1189, %v1185, 0.0
      %v1198 = vpack.c.bf16 %v1191, %v1190
      %v1199 = vpack.c.bf16 %v1193, %v1192
      %v1200 = vpack.c.bf16 %v1195, %v1194
      %v1201 = vpack.c.bf16 %v1197, %v1196
      %v1206 = vunpack.c.l.b16 %v1155
      %v1207 = vunpack.c.h.b16 %v1155
      %v1208 = vunpack.c.l.b16 %v1156
      %v1209 = vunpack.c.h.b16 %v1156
      %v1210 = vunpack.c.l.b16 %v1157
      %v1211 = vunpack.c.h.b16 %v1157
      %v1212 = vunpack.c.l.b16 %v1158
      %v1213 = vunpack.c.h.b16 %v1158
      %v1214 = vpack.c.b16 %v1208, %v1206
      %v1215 = vpack.c.b16 %v1209, %v1207
      %v1216 = vpack.c.b16 %v1212, %v1210
      %v1217 = vpack.c.b16 %v1213, %v1211
      %v1226 = vunpack.c.l.b16 %v1112
      %v1227 = vunpack.c.h.b16 %v1112
      %v1228 = vunpack.c.l.b16 %v1113
      %v1229 = vunpack.c.h.b16 %v1113
      %v1230 = vunpack.c.l.b16 %v1114
      %v1231 = vunpack.c.h.b16 %v1114
      %v1232 = vunpack.c.l.b16 %v1115
      %v1233 = vunpack.c.h.b16 %v1115
      %v1234 = vpack.c.b16 %v1228, %v1226
      %v1235 = vpack.c.b16 %v1229, %v1227
      %v1236 = vpack.c.b16 %v1232, %v1230
      %v1237 = vpack.c.b16 %v1233, %v1231
      %v1246 = vunpack.c.l.b16 %v1198
      %v1247 = vunpack.c.h.b16 %v1198
      %v1248 = vunpack.c.l.b16 %v1199
      %v1249 = vunpack.c.h.b16 %v1199
      %v1250 = vunpack.c.l.b16 %v1200
      %v1251 = vunpack.c.h.b16 %v1200
      %v1252 = vunpack.c.l.b16 %v1201
      %v1253 = vunpack.c.h.b16 %v1201
      %v1254 = vpack.c.b16 %v1248, %v1246
      %v1255 = vpack.c.b16 %v1249, %v1247
      %v1256 = vpack.c.b16 %v1252, %v1250
      %v1257 = vpack.c.b16 %v1253, %v1251
      %s1262 = scalar_lea.vmem %s4, 32
      %v1263 = vld [vmem:[%s1262] sm:$0xf]
      %v1264 = vld [vmem:[%s1262 + $0x4] sm:$0xf]
      %v1265 = vld [vmem:[%s1262 + $0x8] sm:$0xf]
      %v1266 = vld [vmem:[%s1262 + $0xc] sm:$0xf]
      %s1267 = scalar_lea.vmem %s5, 64
      %v1268 = vld [vmem:[%s1267] sm:$0xff]
      %v1269 = vld [vmem:[%s1267 + $0x8] sm:$0xff]
      %v1270 = vld [vmem:[%s1267 + $0x10] sm:$0xff]
      %v1271 = vld [vmem:[%s1267 + $0x18] sm:$0xff]
      %1273 = vset.pattern.permute.xlu0 0
      %1274 = vperm.xlu0 %1273, %v1268
      %v1275 = vpop.permute.xlu0 %1274
      %1278 = vset.pattern.permute.xlu0 0
      %1279 = vperm.xlu0 %1278, %v1269
      %v1280 = vpop.permute.xlu0 %1279
      %1283 = vset.pattern.permute.xlu0 0
      %1284 = vperm.xlu0 %1283, %v1270
      %v1285 = vpop.permute.xlu0 %1284
      %1288 = vset.pattern.permute.xlu0 0
      %1289 = vperm.xlu0 %1288, %v1271
      %v1290 = vpop.permute.xlu0 %1289
      %v1296 = vunpack.c.l.b16 %v1263
      %v1297 = vunpack.c.l.b16 %v1264
      %v1298 = vunpack.c.l.b16 %v1265
      %v1299 = vunpack.c.l.b16 %v1266
      %v1300 = vpack.c.b16 %v1297, %v1296
      %v1301 = vpack.c.b16 %v1299, %v1298
      %v1303 = vsel %vm605, %v1300, 0
      %v1306 = vsel %vm605, %v1301, 0
      %1308 = vmatpush.bf16.msra.mxu0 0
      %1309 = vmatpush.bf16.msra.mxu0 0
      %1310 = vmatpush.bf16.msra.mxu0 %v1256
      %1311 = vmatpush.bf16.msra.mxu0 %v1254
      %1312 = vmatpush.bf16.msra.mxu0 %v1236
      %1313 = vmatpush.bf16.msra.mxu0 %v1234
      %1314 = vmatpush.bf16.msra.mxu0 %v1216
      %1315 = vmatpush.bf16.msra.mxu0 %v1214
      %1316 = vmatmul.bf16.gmra.mxu0 %v1303
      %v1317 = vpop.f32.mrf.mxu0
      %v1318 = vadd.f32 %v1275, %v1317
      %v1319 = vpop.f32.mrf.mxu0
      %v1320 = vadd.f32 %v1280, %v1319
      %1321 = vmatmul.bf16.gmra.mxu0 %v1306
      %v1322 = vpop.f32.mrf.mxu0
      %v1323 = vadd.f32 %v1285, %v1322
      %v1324 = vpop.f32.mrf.mxu0
      %v1325 = vadd.f32 %v1290, %v1324
      %1326 = vdwg.mxu0
      %1327 = vmatpush.bf16.msra.mxu0 0
      %1328 = vmatpush.bf16.msra.mxu0 0
      %1329 = vmatpush.bf16.msra.mxu0 %v1257
      %1330 = vmatpush.bf16.msra.mxu0 %v1255
      %1331 = vmatpush.bf16.msra.mxu0 %v1237
      %1332 = vmatpush.bf16.msra.mxu0 %v1235
      %1333 = vmatpush.bf16.msra.mxu0 %v1217
      %1334 = vmatpush.bf16.msra.mxu0 %v1215
      %1335 = vmatmul.bf16.gmra.mxu0 %v1303
      %v1336 = vpop.f32.mrf.mxu0
      %v1337 = vadd.f32 %v1275, %v1336
      %v1338 = vpop.f32.mrf.mxu0
      %v1339 = vadd.f32 %v1280, %v1338
      %1340 = vmatmul.bf16.gmra.mxu0 %v1306
      %v1341 = vpop.f32.mrf.mxu0
      %v1342 = vadd.f32 %v1285, %v1341
      %v1343 = vpop.f32.mrf.mxu0
      %v1344 = vadd.f32 %v1290, %v1343
      %1345 = vdwg.mxu0
      %v1346 = vmax.f32 %v1318, 0.0
      %v1347 = vmax.f32 %v1337, 0.0
      %v1348 = vmax.f32 %v1320, 0.0
      %v1349 = vmax.f32 %v1339, 0.0
      %v1350 = vmax.f32 %v1323, 0.0
      %v1351 = vmax.f32 %v1342, 0.0
      %v1352 = vmax.f32 %v1325, 0.0
      %v1353 = vmax.f32 %v1344, 0.0
      %v1354 = vpack.c.bf16 %v1348, %v1346
      %v1355 = vpack.c.bf16 %v1349, %v1347
      %v1356 = vpack.c.bf16 %v1352, %v1350
      %v1357 = vpack.c.bf16 %v1353, %v1351
      %s1358 = scalar_lea.vmem %s6, 32
      %v1359 = vld [vmem:[%s1358] sm:$0xf]
      %v1360 = vld [vmem:[%s1358 + $0x4] sm:$0xf]
      %v1361 = vld [vmem:[%s1358 + $0x8] sm:$0xf]
      %v1362 = vld [vmem:[%s1358 + $0xc] sm:$0xf]
      %s1363 = scalar_lea.vmem %s7, 64
      %v1364 = vld [vmem:[%s1363] sm:$0xff]
      %v1365 = vld [vmem:[%s1363 + $0x8] sm:$0xff]
      %v1366 = vld [vmem:[%s1363 + $0x10] sm:$0xff]
      %v1367 = vld [vmem:[%s1363 + $0x18] sm:$0xff]
      %1369 = vset.pattern.permute.xlu0 0
      %1370 = vperm.xlu0 %1369, %v1364
      %v1371 = vpop.permute.xlu0 %1370
      %1374 = vset.pattern.permute.xlu0 0
      %1375 = vperm.xlu0 %1374, %v1365
      %v1376 = vpop.permute.xlu0 %1375
      %1379 = vset.pattern.permute.xlu0 0
      %1380 = vperm.xlu0 %1379, %v1366
      %v1381 = vpop.permute.xlu0 %1380
      %1384 = vset.pattern.permute.xlu0 0
      %1385 = vperm.xlu0 %1384, %v1367
      %v1386 = vpop.permute.xlu0 %1385
      %v1392 = vunpack.c.l.b16 %v1359
      %v1393 = vunpack.c.l.b16 %v1360
      %v1394 = vunpack.c.l.b16 %v1361
      %v1395 = vunpack.c.l.b16 %v1362
      %v1396 = vpack.c.b16 %v1393, %v1392
      %v1397 = vpack.c.b16 %v1395, %v1394
      %v1399 = vsel %vm700, %v1396, 0
      %v1402 = vsel %vm700, %v1397, 0
      %1404 = vmatpush.bf16.msra.mxu0 0
      %1405 = vmatpush.bf16.msra.mxu0 0
      %1406 = vmatpush.bf16.msra.mxu0 0
      %1407 = vmatpush.bf16.msra.mxu0 0
      %1408 = vmatpush.bf16.msra.mxu0 0
      %1409 = vmatpush.bf16.msra.mxu0 0
      %1410 = vmatpush.bf16.msra.mxu0 %v1356
      %1411 = vmatpush.bf16.msra.mxu0 %v1354
      %1412 = vmatmul.bf16.gmra.mxu0 %v1399
      %v1413 = vpop.f32.mrf.mxu0
      %v1414 = vadd.f32 %v1371, %v1413
      %v1415 = vpop.f32.mrf.mxu0
      %v1416 = vadd.f32 %v1376, %v1415
      %1417 = vmatmul.bf16.gmra.mxu0 %v1402
      %v1418 = vpop.f32.mrf.mxu0
      %v1419 = vadd.f32 %v1381, %v1418
      %v1420 = vpop.f32.mrf.mxu0
      %v1421 = vadd.f32 %v1386, %v1420
      %1422 = vdwg.mxu0
      %1423 = vmatpush.bf16.msra.mxu0 0
      %1424 = vmatpush.bf16.msra.mxu0 0
      %1425 = vmatpush.bf16.msra.mxu0 0
      %1426 = vmatpush.bf16.msra.mxu0 0
      %1427 = vmatpush.bf16.msra.mxu0 0
      %1428 = vmatpush.bf16.msra.mxu0 0
      %1429 = vmatpush.bf16.msra.mxu0 %v1357
      %1430 = vmatpush.bf16.msra.mxu0 %v1355
      %1431 = vmatmul.bf16.gmra.mxu0 %v1399
      %v1432 = vpop.f32.mrf.mxu0
      %v1433 = vadd.f32 %v1371, %v1432
      %v1434 = vpop.f32.mrf.mxu0
      %v1435 = vadd.f32 %v1376, %v1434
      %1436 = vmatmul.bf16.gmra.mxu0 %v1402
      %v1437 = vpop.f32.mrf.mxu0
      %v1438 = vadd.f32 %v1381, %v1437
      %v1439 = vpop.f32.mrf.mxu0
      %v1440 = vadd.f32 %v1386, %v1439
      %1441 = vdwg.mxu0
      %v1442 = vadd.f32 %v1104, %v1414
      %v1443 = vadd.f32 %v1105, %v1433
      %v1444 = vadd.f32 %v1106, %v1416
      %v1445 = vadd.f32 %v1107, %v1435
      %v1446 = vadd.f32 %v1108, %v1419
      %v1447 = vadd.f32 %v1109, %v1438
      %v1448 = vadd.f32 %v1110, %v1421
      %v1449 = vadd.f32 %v1111, %v1440
      %v1450 = vmul.f32 %v1442, %v754
      %v1451 = vmul.f32 %v1443, %v755
      %v1452 = vmul.f32 %v1444, %v754
      %v1453 = vmul.f32 %v1445, %v755
      %v1454 = vmul.f32 %v1446, %v754
      %v1455 = vmul.f32 %v1447, %v755
      %v1456 = vmul.f32 %v1448, %v754
      %v1457 = vmul.f32 %v1449, %v755
      %1458 = vst [vmem:[%s322] sm:$0xff] %v1450
      %1459 = vst [vmem:[%s322 + $0x8] sm:$0xff] %v1451
      %1460 = vst [vmem:[%s322 + $0x10] sm:$0xff] %v1452
      %1461 = vst [vmem:[%s322 + $0x18] sm:$0xff] %v1453
      %1462 = vst [vmem:[%s322 + $0x20] sm:$0xff] %v1454
      %1463 = vst [vmem:[%s322 + $0x28] sm:$0xff] %v1455
      %1464 = vst [vmem:[%s322 + $0x30] sm:$0xff] %v1456
      %1465 = vst [vmem:[%s322 + $0x38] sm:$0xff] %v1457
      %p1466 = scmp.lt.s32.totalorder %s19, 1
      %s1467 = scalar_select %p1466, %s19, 1
      %s1468 = smul.addr %s1467, 8
      %s1469 = smul.addr %s1468, 8
      %s1470 = scalar_lea.vmem %s8, %s1469
      // Predicated region
      $region53: #{single_vq_forward.6} parent=51 // pred_check
        %p1471 = pneg %p215
      $region54: #{single_vq_forward.6} parent=51 // pred_check_branch
        %1473 = sbr.rel (%p1471) target = $region56
      $region55: #{single_vq_forward.6} parent=51 // pred_region
        _
      $region56: #{single_vq_forward.6} parent=51 // pred_fallthru
        _
    $region52: #{single_vq_forward.6} parent=5 // pred_fallthru
      _
    %p1474 = scmp.le.s32.totalorder 2, %s14
    // Predicated region
    $region57: #{single_vq_forward.6} parent=5 // pred_check
      %p1475 = pneg %p1474
    $region58: #{single_vq_forward.6} parent=5 // pred_check_branch
      %1477 = sbr.rel (%p1475) target = $region60
    $region59: #{single_vq_forward.6} parent=5 // pred_region
      %s1478 = ssub.s32 %s14, 2
      // Predicated region
      $region61: #{single_vq_forward.6} parent=59 // pred_check
        %p1479 = pneg %p221
      $region62: #{single_vq_forward.6} parent=59 // pred_check_branch
        %1481 = sbr.rel (%p1479) target = $region64
      $region63: #{single_vq_forward.6} parent=59 // pred_region
        %p1482 = scmp.lt.s32.totalorder %s20, 1
        %s1483 = scalar_select %p1482, %s20, 1
        %s1484 = smul.addr %s1483, 8
        %s1485 = smul.addr %s1484, 8
        %s1486 = scalar_lea.vmem %s8, %s1485
      $region64: #{single_vq_forward.6} parent=59 // pred_fallthru
        _
    $region60: #{single_vq_forward.6} parent=5 // pred_fallthru
      _
  $region6: #{single_vq_forward.6} parent=0 // loop_footer
    %s18 = sadd.s32 1, %s14
  $region7: #{single_vq_forward.6} parent=0 // loop_footer_branch
    %13 = sbr.rel target = $region3
  $region8: #{single_vq_forward.6} parent=0 // loop_exit
    _

// kernel: single_vq_forward.7
$region0: #{single_vq_forward.7}
  #allocation0 [shape = 'u32[]', space=smem, size = 0x4, offset = 0x4, fixed_abs, tag = 'smem constant byte address 0x4 - core index']
  #allocation1 [shape = 'u32[72,128]{1,0:T(1,128)}', space=vmem, size = 0x9000, scoped, tag = 'internal scratch']
  %s0 = inlined_call_operand.vmem [shape: f32[2,32,256], index: 0, kind: input, shape index: {}]
  %s1 = inlined_call_operand.vmem [shape: f32[2,1,256], index: 1, kind: input, shape index: {}]
  %s2 = inlined_call_operand.vmem [shape: bf16[32,32], index: 2, kind: input, shape index: {}]
  %s3 = inlined_call_operand.vmem [shape: f32[32,1], index: 3, kind: input, shape index: {}]
  %s4 = inlined_call_operand.vmem [shape: bf16[3,32,96], index: 4, kind: input, shape index: {}]
  %s5 = inlined_call_operand.vmem [shape: f32[3,32,1], index: 5, kind: input, shape index: {}]
  %s6 = inlined_call_operand.vmem [shape: bf16[3,32,32], index: 6, kind: input, shape index: {}]
  %s7 = inlined_call_operand.vmem [shape: f32[3,32,1], index: 7, kind: input, shape index: {}]
  %s8 = inlined_call_operand.vmem [shape: f32[2,32,256], index: 8, kind: output, shape index: {}]
  %s9 = sld [smem:[#allocation0]]
  $region65: #{single_vq_forward.7} parent=0
    _
  %s11 = ssub.s32 1, %s9
  %s12 = scalar_select 0, %s11, %s9
  loop: start=0, step=1, limit=4
  $region2: #{single_vq_forward.7} parent=0 // loop_pre_header
    _
  $region3: #{single_vq_forward.7} parent=0 // loop_header
    %s14 = sphi 0, %s18
    %p15 = scmp.ge.s32.totalorder %s14, 4
    %s24 = sphi 0, %s26
    %s27 = sphi 0, %s24
    %s28 = sphi 0, %s27
    %s44 = sphi 0, %s28
    %s50 = sphi 0, %s52
    %s53 = sphi 0, %s50
    %s54 = sphi 0, %s53
    %s70 = sphi 0, %s54
    %s74 = sphi 0, %s74
    %s76 = sphi 0, %s74
    %s77 = sphi 0, %s76
    %s91 = sphi 0, %s77
    %s95 = sphi 0, %s95
    %s97 = sphi 0, %s95
    %s98 = sphi 0, %s97
    %s112 = sphi 0, %s98
    %s116 = sphi 0, %s116
    %s118 = sphi 0, %s116
    %s119 = sphi 0, %s118
    %s133 = sphi 0, %s119
    %s137 = sphi 0, %s137
    %s139 = sphi 0, %s137
    %s140 = sphi 0, %s139
    %s154 = sphi 0, %s140
    %s158 = sphi 0, %s158
    %s160 = sphi 0, %s158
    %s161 = sphi 0, %s160
    %s175 = sphi 0, %s161
    %s179 = sphi 0, %s179
    %s181 = sphi 0, %s179
    %s182 = sphi 0, %s181
    %s196 = sphi 0, %s182
    %s202 = sphi 0, %s204
    %s205 = sphi 0, %s202
    %s206 = sphi 0, %s205
    %s222 = sphi 0, %s206
  $region4: #{single_vq_forward.7} parent=0 // loop_header_branch
    %17 = sbr.rel (%p15) target = $region8
  $region5: #{single_vq_forward.7} parent=0 // loop_body
    %s19 = ssub.s32 %s14, 1
    %s20 = ssub.s32 %s14, 2
    %s21 = sadd.s32 %s14, 1
    %s22 = ssub.s32 %s14, %s21
    %p23 = scmp.eq.s32.totalorder %s22, 0
    %s25 = sadd.s32 %s24, 1
    %s26 = scalar_select %p23, %s24, %s25
    %p29 = pneg %p23
    %p30 = scmp.eq.s32.totalorder %s14, 1
    %p31 = por %p29, %p30
    %p32 = scmp.ne.s32.totalorder %s24, %s27
    %p33 = scmp.eq.s32.totalorder %s14, 0
    %p34 = por %p32, %p33
    %p35 = scmp.ne.s32.totalorder %s24, %s27
    %p36 = scmp.eq.s32.totalorder %s19, 1
    %p37 = por %p35, %p36
    %p38 = scmp.ne.s32.totalorder %s27, %s28
    %p39 = scmp.eq.s32.totalorder %s19, 0
    %p40 = por %p38, %p39
    %p41 = scmp.ne.s32.totalorder %s27, %s28
    %p42 = scmp.eq.s32.totalorder %s20, 1
    %p43 = por %p41, %p42
    %p45 = scmp.ne.s32.totalorder %s28, %s44
    %p46 = scmp.eq.s32.totalorder %s20, 0
    %p47 = por %p45, %p46
    %s48 = ssub.s32 %s14, %s21
    %p49 = scmp.eq.s32.totalorder %s48, 0
    %s51 = sadd.s32 %s50, 1
    %s52 = scalar_select %p49, %s50, %s51
    %p55 = pneg %p49
    %p56 = scmp.eq.s32.totalorder %s14, 1
    %p57 = por %p55, %p56
    %p58 = scmp.ne.s32.totalorder %s50, %s53
    %p59 = scmp.eq.s32.totalorder %s14, 0
    %p60 = por %p58, %p59
    %p61 = scmp.ne.s32.totalorder %s50, %s53
    %p62 = scmp.eq.s32.totalorder %s19, 1
    %p63 = por %p61, %p62
    %p64 = scmp.ne.s32.totalorder %s53, %s54
    %p65 = scmp.eq.s32.totalorder %s19, 0
    %p66 = por %p64, %p65
    %p67 = scmp.ne.s32.totalorder %s53, %s54
    %p68 = scmp.eq.s32.totalorder %s20, 1
    %p69 = por %p67, %p68
    %p71 = scmp.ne.s32.totalorder %s54, %s70
    %p72 = scmp.eq.s32.totalorder %s20, 0
    %p73 = por %p71, %p72
    %s75 = sadd.s32 %s74, 1
    %p78 = scmp.eq.s32.totalorder %s14, 1
    %p79 = scmp.ne.s32.totalorder %s74, %s76
    %p80 = scmp.eq.s32.totalorder %s14, 0
    %p81 = por %p79, %p80
    %p82 = scmp.ne.s32.totalorder %s74, %s76
    %p83 = scmp.eq.s32.totalorder %s19, 1
    %p84 = por %p82, %p83
    %p85 = scmp.ne.s32.totalorder %s76, %s77
    %p86 = scmp.eq.s32.totalorder %s19, 0
    %p87 = por %p85, %p86
    %p88 = scmp.ne.s32.totalorder %s76, %s77
    %p89 = scmp.eq.s32.totalorder %s20, 1
    %p90 = por %p88, %p89
    %p92 = scmp.ne.s32.totalorder %s77, %s91
    %p93 = scmp.eq.s32.totalorder %s20, 0
    %p94 = por %p92, %p93
    %s96 = sadd.s32 %s95, 1
    %p99 = scmp.eq.s32.totalorder %s14, 1
    %p100 = scmp.ne.s32.totalorder %s95, %s97
    %p101 = scmp.eq.s32.totalorder %s14, 0
    %p102 = por %p100, %p101
    %p103 = scmp.ne.s32.totalorder %s95, %s97
    %p104 = scmp.eq.s32.totalorder %s19, 1
    %p105 = por %p103, %p104
    %p106 = scmp.ne.s32.totalorder %s97, %s98
    %p107 = scmp.eq.s32.totalorder %s19, 0
    %p108 = por %p106, %p107
    %p109 = scmp.ne.s32.totalorder %s97, %s98
    %p110 = scmp.eq.s32.totalorder %s20, 1
    %p111 = por %p109, %p110
    %p113 = scmp.ne.s32.totalorder %s98, %s112
    %p114 = scmp.eq.s32.totalorder %s20, 0
    %p115 = por %p113, %p114
    %s117 = sadd.s32 %s116, 1
    %p120 = scmp.eq.s32.totalorder %s14, 1
    %p121 = scmp.ne.s32.totalorder %s116, %s118
    %p122 = scmp.eq.s32.totalorder %s14, 0
    %p123 = por %p121, %p122
    %p124 = scmp.ne.s32.totalorder %s116, %s118
    %p125 = scmp.eq.s32.totalorder %s19, 1
    %p126 = por %p124, %p125
    %p127 = scmp.ne.s32.totalorder %s118, %s119
    %p128 = scmp.eq.s32.totalorder %s19, 0
    %p129 = por %p127, %p128
    %p130 = scmp.ne.s32.totalorder %s118, %s119
    %p131 = scmp.eq.s32.totalorder %s20, 1
    %p132 = por %p130, %p131
    %p134 = scmp.ne.s32.totalorder %s119, %s133
    %p135 = scmp.eq.s32.totalorder %s20, 0
    %p136 = por %p134, %p135
    %s138 = sadd.s32 %s137, 1
    %p141 = scmp.eq.s32.totalorder %s14, 1
    %p142 = scmp.ne.s32.totalorder %s137, %s139
    %p143 = scmp.eq.s32.totalorder %s14, 0
    %p144 = por %p142, %p143
    %p145 = scmp.ne.s32.totalorder %s137, %s139
    %p146 = scmp.eq.s32.totalorder %s19, 1
    %p147 = por %p145, %p146
    %p148 = scmp.ne.s32.totalorder %s139, %s140
    %p149 = scmp.eq.s32.totalorder %s19, 0
    %p150 = por %p148, %p149
    %p151 = scmp.ne.s32.totalorder %s139, %s140
    %p152 = scmp.eq.s32.totalorder %s20, 1
    %p153 = por %p151, %p152
    %p155 = scmp.ne.s32.totalorder %s140, %s154
    %p156 = scmp.eq.s32.totalorder %s20, 0
    %p157 = por %p155, %p156
    %s159 = sadd.s32 %s158, 1
    %p162 = scmp.eq.s32.totalorder %s14, 1
    %p163 = scmp.ne.s32.totalorder %s158, %s160
    %p164 = scmp.eq.s32.totalorder %s14, 0
    %p165 = por %p163, %p164
    %p166 = scmp.ne.s32.totalorder %s158, %s160
    %p167 = scmp.eq.s32.totalorder %s19, 1
    %p168 = por %p166, %p167
    %p169 = scmp.ne.s32.totalorder %s160, %s161
    %p170 = scmp.eq.s32.totalorder %s19, 0
    %p171 = por %p169, %p170
    %p172 = scmp.ne.s32.totalorder %s160, %s161
    %p173 = scmp.eq.s32.totalorder %s20, 1
    %p174 = por %p172, %p173
    %p176 = scmp.ne.s32.totalorder %s161, %s175
    %p177 = scmp.eq.s32.totalorder %s20, 0
    %p178 = por %p176, %p177
    %s180 = sadd.s32 %s179, 1
    %p183 = scmp.eq.s32.totalorder %s14, 1
    %p184 = scmp.ne.s32.totalorder %s179, %s181
    %p185 = scmp.eq.s32.totalorder %s14, 0
    %p186 = por %p184, %p185
    %p187 = scmp.ne.s32.totalorder %s179, %s181
    %p188 = scmp.eq.s32.totalorder %s19, 1
    %p189 = por %p187, %p188
    %p190 = scmp.ne.s32.totalorder %s181, %s182
    %p191 = scmp.eq.s32.totalorder %s19, 0
    %p192 = por %p190, %p191
    %p193 = scmp.ne.s32.totalorder %s181, %s182
    %p194 = scmp.eq.s32.totalorder %s20, 1
    %p195 = por %p193, %p194
    %p197 = scmp.ne.s32.totalorder %s182, %s196
    %p198 = scmp.eq.s32.totalorder %s20, 0
    %p199 = por %p197, %p198
    %s200 = ssub.s32 %s14, %s21
    %p201 = scmp.eq.s32.totalorder %s200, 0
    %s203 = sadd.s32 %s202, 1
    %s204 = scalar_select %p201, %s202, %s203
    %p207 = pneg %p201
    %p208 = scmp.eq.s32.totalorder %s14, 1
    %p209 = por %p207, %p208
    %p210 = scmp.ne.s32.totalorder %s202, %s205
    %p211 = scmp.eq.s32.totalorder %s14, 0
    %p212 = por %p210, %p211
    %p213 = scmp.ne.s32.totalorder %s202, %s205
    %p214 = scmp.eq.s32.totalorder %s19, 1
    %p215 = por %p213, %p214
    %p216 = scmp.ne.s32.totalorder %s205, %s206
    %p217 = scmp.eq.s32.totalorder %s19, 0
    %p218 = por %p216, %p217
    %p219 = scmp.ne.s32.totalorder %s205, %s206
    %p220 = scmp.eq.s32.totalorder %s20, 1
    %p221 = por %p219, %p220
    %p223 = scmp.ne.s32.totalorder %s206, %s222
    %p224 = scmp.eq.s32.totalorder %s20, 0
    %p225 = por %p223, %p224
    %p226 = scmp.le.s32.totalorder 1, %s14
    %p227 = scmp.lt.s32.totalorder %s14, 3
    %p228 = pnand %p226, %p227
    %p229 = pneg %p228
    // Predicated region
    $region9: #{single_vq_forward.7} parent=5 // pred_check
      _
    $region10: #{single_vq_forward.7} parent=5 // pred_check_branch
      %231 = sbr.rel (%p228) target = $region12
    $region11: #{single_vq_forward.7} parent=5 // pred_region
      %s232 = ssub.s32 %s14, 1
      // Predicated region
      $region13: #{single_vq_forward.7} parent=11 // pred_check
        %p233 = pneg %p87
      $region14: #{single_vq_forward.7} parent=11 // pred_check_branch
        %235 = sbr.rel (%p233) target = $region16
      $region15: #{single_vq_forward.7} parent=11 // pred_region
        _
      $region16: #{single_vq_forward.7} parent=11 // pred_fallthru
        _
      // Predicated region
      $region17: #{single_vq_forward.7} parent=11 // pred_check
        %p236 = pneg %p108
      $region18: #{single_vq_forward.7} parent=11 // pred_check_branch
        %238 = sbr.rel (%p236) target = $region20
      $region19: #{single_vq_forward.7} parent=11 // pred_region
        _
      $region20: #{single_vq_forward.7} parent=11 // pred_fallthru
        _
      // Predicated region
      $region21: #{single_vq_forward.7} parent=11 // pred_check
        %p239 = pneg %p129
      $region22: #{single_vq_forward.7} parent=11 // pred_check_branch
        %241 = sbr.rel (%p239) target = $region24
      $region23: #{single_vq_forward.7} parent=11 // pred_region
        _
      $region24: #{single_vq_forward.7} parent=11 // pred_fallthru
        _
      // Predicated region
      $region25: #{single_vq_forward.7} parent=11 // pred_check
        %p242 = pneg %p150
      $region26: #{single_vq_forward.7} parent=11 // pred_check_branch
        %244 = sbr.rel (%p242) target = $region28
      $region27: #{single_vq_forward.7} parent=11 // pred_region
        _
      $region28: #{single_vq_forward.7} parent=11 // pred_fallthru
        _
      // Predicated region
      $region29: #{single_vq_forward.7} parent=11 // pred_check
        %p245 = pneg %p171
      $region30: #{single_vq_forward.7} parent=11 // pred_check_branch
        %247 = sbr.rel (%p245) target = $region32
      $region31: #{single_vq_forward.7} parent=11 // pred_region
        _
      $region32: #{single_vq_forward.7} parent=11 // pred_fallthru
        _
      // Predicated region
      $region33: #{single_vq_forward.7} parent=11 // pred_check
        %p248 = pneg %p192
      $region34: #{single_vq_forward.7} parent=11 // pred_check_branch
        %250 = sbr.rel (%p248) target = $region36
      $region35: #{single_vq_forward.7} parent=11 // pred_region
        _
      $region36: #{single_vq_forward.7} parent=11 // pred_fallthru
        _
    $region12: #{single_vq_forward.7} parent=5 // pred_fallthru
      _
    %p251 = scmp.lt.s32.totalorder %s14, 2
    // Predicated region
    $region37: #{single_vq_forward.7} parent=5 // pred_check
      %p252 = pneg %p251
    $region38: #{single_vq_forward.7} parent=5 // pred_check_branch
      %254 = sbr.rel (%p252) target = $region40
    $region39: #{single_vq_forward.7} parent=5 // pred_region
      // Predicated region
      $region41: #{single_vq_forward.7} parent=39 // pred_check
        %p255 = pneg %p34
      $region42: #{single_vq_forward.7} parent=39 // pred_check_branch
        %257 = sbr.rel (%p255) target = $region44
      $region43: #{single_vq_forward.7} parent=39 // pred_region
        %p258 = scmp.lt.s32.totalorder %s14, 1
        %s259 = scalar_select %p258, %s14, 1
        %s260 = smul.addr %s259, 8
        %s261 = smul.addr %s260, 8
        %s262 = scalar_lea.vmem %s0, %s261
      $region44: #{single_vq_forward.7} parent=39 // pred_fallthru
        _
      // Predicated region
      $region45: #{single_vq_forward.7} parent=39 // pred_check
        %p263 = pneg %p60
      $region46: #{single_vq_forward.7} parent=39 // pred_check_branch
        %265 = sbr.rel (%p263) target = $region48
      $region47: #{single_vq_forward.7} parent=39 // pred_region
        %p266 = scmp.lt.s32.totalorder %s14, 1
        %s267 = scalar_select %p266, %s14, 1
        %s268 = smul.addr %s267, 2
        %s269 = scalar_lea.vmem %s1, %s268
      $region48: #{single_vq_forward.7} parent=39 // pred_fallthru
        _
    $region40: #{single_vq_forward.7} parent=5 // pred_fallthru
      _
    %p270 = scmp.le.s32.totalorder 1, %s14
    %p271 = scmp.lt.s32.totalorder %s14, 3
    %p272 = pnand %p270, %p271
    %p273 = pneg %p272
    // Predicated region
    $region49: #{single_vq_forward.7} parent=5 // pred_check
      _
    $region50: #{single_vq_forward.7} parent=5 // pred_check_branch
      %275 = sbr.rel (%p272) target = $region52
    $region51: #{single_vq_forward.7} parent=5 // pred_region
      %s276 = ssub.s32 %s14, 1
      %p277 = scmp.lt.s32.totalorder %s19, 1
      %s278 = scalar_select %p277, %s19, 1
      %s279 = smul.addr %s278, 8
      %s280 = smul.addr %s279, 8
      %s281 = scalar_lea.vmem %s0, %s280
      %p282 = pneg %p40
      %p283 = pneg %p37
      %p284 = scmp.lt.s32.totalorder %s19, 1
      %s285 = scalar_select %p284, %s19, 1
      %s286 = smul.addr %s285, 2
      %s287 = scalar_lea.vmem %s1, %s286
      %p288 = pneg %p66
      %p289 = pneg %p63
      %p290 = pneg %p87
      %p291 = pneg %p84
      %p292 = pneg %p108
      %p293 = pneg %p105
      %p294 = pneg %p129
      %p295 = pneg %p126
      %p296 = pneg %p150
      %p297 = pneg %p147
      %p298 = pneg %p171
      %p299 = pneg %p168
      %p300 = pneg %p192
      %p301 = pneg %p189
      %p302 = pneg %p218
      %p303 = pneg %p215
      %p304 = scmp.lt.s32.totalorder %s19, 1
      %s305 = scalar_select %p304, %s19, 1
      %s306 = smul.addr %s305, 8
      %s307 = smul.addr %s306, 8
      %s308 = scalar_lea.vmem %s8, %s307
      %p309 = scmp.lt.s32.totalorder %s19, 1
      %s310 = scalar_select %p309, %s19, 1
      %s311 = smul.addr %s310, 8
      %s312 = smul.addr %s311, 8
      %s313 = scalar_lea.vmem %s0, %s312
      %p314 = scmp.lt.s32.totalorder %s19, 1
      %s315 = scalar_select %p314, %s19, 1
      %s316 = smul.addr %s315, 2
      %s317 = scalar_lea.vmem %s1, %s316
      %p318 = scmp.lt.s32.totalorder %s19, 1
      %s319 = scalar_select %p318, %s19, 1
      %s320 = smul.addr %s319, 8
      %s321 = smul.addr %s320, 8
      %s322 = scalar_lea.vmem %s8, %s321
      %v324 = vld [vmem:[%s313] sm:$0xff]
      %v325 = vld [vmem:[%s313 + $0x8] sm:$0xff]
      %v326 = vld [vmem:[%s313 + $0x10] sm:$0xff]
      %v327 = vld [vmem:[%s313 + $0x18] sm:$0xff]
      %v328 = vld [vmem:[%s313 + $0x20] sm:$0xff]
      %v329 = vld [vmem:[%s313 + $0x28] sm:$0xff]
      %v330 = vld [vmem:[%s313 + $0x30] sm:$0xff]
      %v331 = vld [vmem:[%s313 + $0x38] sm:$0xff]
      %v332 = vld [vmem:[%s317] sm:$0x3]
      %v334 = vperm.slane %v332, 0
      %v335 = vperm.slane %v332, 1
      %v338 = vmul.f32 %v324, %v334
      %v339 = vmul.f32 %v325, %v335
      %v340 = vmul.f32 %v326, %v334
      %v341 = vmul.f32 %v327, %v335
      %v342 = vmul.f32 %v328, %v334
      %v343 = vmul.f32 %v329, %v335
      %v344 = vmul.f32 %v330, %v334
      %v345 = vmul.f32 %v331, %v335
      %v346 = vld [vmem:[%s2] sm:$0xf]
      %v347 = vld [vmem:[%s2 + $0x4] sm:$0xf]
      %v348 = vld [vmem:[%s2 + $0x8] sm:$0xf]
      %v349 = vld [vmem:[%s2 + $0xc] sm:$0xf]
      %v350 = vpack.c.bf16 %v340, %v338
      %v351 = vpack.c.bf16 %v341, %v339
      %v352 = vpack.c.bf16 %v344, %v342
      %v353 = vpack.c.bf16 %v345, %v343
      %v354 = vld [vmem:[%s3] sm:$0xff]
      %v355 = vld [vmem:[%s3 + $0x8] sm:$0xff]
      %v356 = vld [vmem:[%s3 + $0x10] sm:$0xff]
      %v357 = vld [vmem:[%s3 + $0x18] sm:$0xff]
      %359 = vset.pattern.permute.xlu0 0
      %360 = vperm.xlu0 %359, %v354
      %v361 = vpop.permute.xlu0 %360
      %364 = vset.pattern.permute.xlu0 0
      %365 = vperm.xlu0 %364, %v355
      %v366 = vpop.permute.xlu0 %365
      %369 = vset.pattern.permute.xlu0 0
      %370 = vperm.xlu0 %369, %v356
      %v371 = vpop.permute.xlu0 %370
      %374 = vset.pattern.permute.xlu0 0
      %375 = vperm.xlu0 %374, %v357
      %v376 = vpop.permute.xlu0 %375
      %v382 = vunpack.c.l.b16 %v346
      %v383 = vunpack.c.l.b16 %v347
      %v384 = vunpack.c.l.b16 %v348
      %v385 = vunpack.c.l.b16 %v349
      %v386 = vpack.c.b16 %v383, %v382
      %v387 = vpack.c.b16 %v385, %v384
      %vm388 = vcmask 261120
      %v390 = vsel %vm388, %v386, 0
      %v393 = vsel %vm388, %v387, 0
      %395 = vmatpush.bf16.msra.mxu0 0
      %396 = vmatpush.bf16.msra.mxu0 0
      %397 = vmatpush.bf16.msra.mxu0 0
      %398 = vmatpush.bf16.msra.mxu0 0
      %399 = vmatpush.bf16.msra.mxu0 0
      %400 = vmatpush.bf16.msra.mxu0 0
      %401 = vmatpush.bf16.msra.mxu0 %v352
      %402 = vmatpush.bf16.msra.mxu0 %v350
      %403 = vmatmul.bf16.gmra.mxu0 %v390
      %v404 = vpop.f32.mrf.mxu0
      %v405 = vadd.f32 %v361, %v404
      %v406 = vpop.f32.mrf.mxu0
      %v407 = vadd.f32 %v366, %v406
      %408 = vmatmul.bf16.gmra.mxu0 %v393
      %v409 = vpop.f32.mrf.mxu0
      %v410 = vadd.f32 %v371, %v409
      %v411 = vpop.f32.mrf.mxu0
      %v412 = vadd.f32 %v376, %v411
      %413 = vdwg.mxu0
      %414 = vmatpush.bf16.msra.mxu0 0
      %415 = vmatpush.bf16.msra.mxu0 0
      %416 = vmatpush.bf16.msra.mxu0 0
      %417 = vmatpush.bf16.msra.mxu0 0
      %418 = vmatpush.bf16.msra.mxu0 0
      %419 = vmatpush.bf16.msra.mxu0 0
      %420 = vmatpush.bf16.msra.mxu0 %v353
      %421 = vmatpush.bf16.msra.mxu0 %v351
      %422 = vmatmul.bf16.gmra.mxu0 %v390
      %v423 = vpop.f32.mrf.mxu0
      %v424 = vadd.f32 %v361, %v423
      %v425 = vpop.f32.mrf.mxu0
      %v426 = vadd.f32 %v366, %v425
      %427 = vmatmul.bf16.gmra.mxu0 %v393
      %v428 = vpop.f32.mrf.mxu0
      %v429 = vadd.f32 %v371, %v428
      %v430 = vpop.f32.mrf.mxu0
      %v431 = vadd.f32 %v376, %v430
      %432 = vdwg.mxu0
      %v433 = vlaneseq
      %v434 = vand.u32 %v433, 127
      %v435 = vadd.s32 %v434, 128
      %v436 = vpack.c.bf16 %v424, %v405
      %v437 = vpack.c.bf16 %v426, %v407
      %v438 = vpack.c.bf16 %v429, %v410
      %v439 = vpack.c.bf16 %v431, %v412
      %vm440 = vcmp.ge.s32.totalorder %v434, 1
      %vm441 = vcmp.ge.s32.totalorder %v435, 1
      %442 = vrot.lane.b32.xlu0 %v405, 1
      %v443 = vpop.permute.xlu0 %442
      %444 = vrot.lane.b32.xlu0 %v407, 1
      %v445 = vpop.permute.xlu0 %444
      %446 = vrot.lane.b32.xlu0 %v410, 1
      %v447 = vpop.permute.xlu0 %446
      %448 = vrot.lane.b32.xlu0 %v412, 1
      %v449 = vpop.permute.xlu0 %448
      %450 = vrot.lane.b32.xlu0 %v424, 1
      %v451 = vpop.permute.xlu0 %450
      %452 = vrot.lane.b32.xlu0 %v426, 1
      %v453 = vpop.permute.xlu0 %452
      %454 = vrot.lane.b32.xlu0 %v429, 1
      %v455 = vpop.permute.xlu0 %454
      %456 = vrot.lane.b32.xlu0 %v431, 1
      %v457 = vpop.permute.xlu0 %456
      %vm458 = vcmp.lt.s32.totalorder %v434, 1
      %v459 = vsel %vm458, %v443, %v451
      %v460 = vsel %vm458, %v445, %v453
      %v461 = vsel %vm458, %v447, %v455
      %v462 = vsel %vm458, %v449, %v457
      %v463 = vsel %vm458, %v451, %v443
      %v464 = vsel %vm458, %v453, %v445
      %v465 = vsel %vm458, %v455, %v447
      %v466 = vsel %vm458, %v457, %v449
      %v467 = vsel %vm440, 1, 0
      %v468 = vsel %vm441, 1, 0
      %vm469 = vcmp.eq.s32.totalorder %v467, 1
      %vm470 = vcmp.eq.s32.totalorder %v468, 1
      %v471 = vsel %vm469, %v463, 0.0
      %v472 = vsel %vm470, %v459, 0.0
      %v473 = vsel %vm469, %v464, 0.0
      %v474 = vsel %vm470, %v460, 0.0
      %v475 = vsel %vm469, %v465, 0.0
      %v476 = vsel %vm470, %v461, 0.0
      %v477 = vsel %vm469, %v466, 0.0
      %v478 = vsel %vm470, %v462, 0.0
      %v479 = vpack.c.bf16 %v472, %v471
      %v480 = vpack.c.bf16 %v474, %v473
      %v481 = vpack.c.bf16 %v476, %v475
      %v482 = vpack.c.bf16 %v478, %v477
      %vm483 = vcmp.lt.s32.totalorder %v434, 255
      %vm484 = vcmp.lt.s32.totalorder %v435, 255
      %485 = vrot.lane.b32.xlu0 %v405, 127
      %v486 = vpop.permute.xlu0 %485
      %487 = vrot.lane.b32.xlu0 %v407, 127
      %v488 = vpop.permute.xlu0 %487
      %489 = vrot.lane.b32.xlu0 %v410, 127
      %v490 = vpop.permute.xlu0 %489
      %491 = vrot.lane.b32.xlu0 %v412, 127
      %v492 = vpop.permute.xlu0 %491
      %493 = vrot.lane.b32.xlu0 %v424, 127
      %v494 = vpop.permute.xlu0 %493
      %495 = vrot.lane.b32.xlu0 %v426, 127
      %v496 = vpop.permute.xlu0 %495
      %497 = vrot.lane.b32.xlu0 %v429, 127
      %v498 = vpop.permute.xlu0 %497
      %499 = vrot.lane.b32.xlu0 %v431, 127
      %v500 = vpop.permute.xlu0 %499
      %vm501 = vcmp.lt.s32.totalorder %v434, 127
      %v502 = vsel %vm501, %v486, %v494
      %v503 = vsel %vm501, %v488, %v496
      %v504 = vsel %vm501, %v490, %v498
      %v505 = vsel %vm501, %v492, %v500
      %v506 = vsel %vm501, %v494, %v486
      %v507 = vsel %vm501, %v496, %v488
      %v508 = vsel %vm501, %v498, %v490
      %v509 = vsel %vm501, %v500, %v492
      %v510 = vsel %vm483, 1, 0
      %v511 = vsel %vm484, 1, 0
      %vm512 = vcmp.eq.s32.totalorder %v510, 1
      %vm513 = vcmp.eq.s32.totalorder %v511, 1
      %v514 = vsel %vm512, %v502, 0.0
      %v515 = vsel %vm513, %v506, 0.0
      %v516 = vsel %vm512, %v503, 0.0
      %v517 = vsel %vm513, %v507, 0.0
      %v518 = vsel %vm512, %v504, 0.0
      %v519 = vsel %vm513, %v508, 0.0
      %v520 = vsel %vm512, %v505, 0.0
      %v521 = vsel %vm513, %v509, 0.0
      %v522 = vpack.c.bf16 %v515, %v514
      %v523 = vpack.c.bf16 %v517, %v516
      %v524 = vpack.c.bf16 %v519, %v518
      %v525 = vpack.c.bf16 %v521, %v520
      %v530 = vunpack.c.l.b16 %v479
      %v531 = vunpack.c.h.b16 %v479
      %v532 = vunpack.c.l.b16 %v480
      %v533 = vunpack.c.h.b16 %v480
      %v534 = vunpack.c.l.b16 %v481
      %v535 = vunpack.c.h.b16 %v481
      %v536 = vunpack.c.l.b16 %v482
      %v537 = vunpack.c.h.b16 %v482
      %v538 = vpack.c.b16 %v532, %v530
      %v539 = vpack.c.b16 %v533, %v531
      %v540 = vpack.c.b16 %v536, %v534
      %v541 = vpack.c.b16 %v537, %v535
      %v550 = vunpack.c.l.b16 %v436
      %v551 = vunpack.c.h.b16 %v436
      %v552 = vunpack.c.l.b16 %v437
      %v553 = vunpack.c.h.b16 %v437
      %v554 = vunpack.c.l.b16 %v438
      %v555 = vunpack.c.h.b16 %v438
      %v556 = vunpack.c.l.b16 %v439
      %v557 = vunpack.c.h.b16 %v439
      %v558 = vpack.c.b16 %v552, %v550
      %v559 = vpack.c.b16 %v553, %v551
      %v560 = vpack.c.b16 %v556, %v554
      %v561 = vpack.c.b16 %v557, %v555
      %v570 = vunpack.c.l.b16 %v522
      %v571 = vunpack.c.h.b16 %v522
      %v572 = vunpack.c.l.b16 %v523
      %v573 = vunpack.c.h.b16 %v523
      %v574 = vunpack.c.l.b16 %v524
      %v575 = vunpack.c.h.b16 %v524
      %v576 = vunpack.c.l.b16 %v525
      %v577 = vunpack.c.h.b16 %v525
      %v578 = vpack.c.b16 %v572, %v570
      %v579 = vpack.c.b16 %v573, %v571
      %v580 = vpack.c.b16 %v576, %v574
      %v581 = vpack.c.b16 %v577, %v575
      %v586 = vld [vmem:[%s4] sm:$0xf]
      %v587 = vld [vmem:[%s4 + $0x4] sm:$0xf]
      %v588 = vld [vmem:[%s4 + $0x8] sm:$0xf]
      %v589 = vld [vmem:[%s4 + $0xc] sm:$0xf]
      %v590 = vld [vmem:[%s5] sm:$0xff]
      %v591 = vld [vmem:[%s5 + $0x8] sm:$0xff]
      %v592 = vld [vmem:[%s5 + $0x10] sm:$0xff]
      %v593 = vld [vmem:[%s5 + $0x18] sm:$0xff]
      %595 = vset.pattern.permute.xlu0 0
      %596 = vperm.xlu0 %595, %v590
      %v597 = vpop.permute.xlu0 %596
      %600 = vset.pattern.permute.xlu0 0
      %601 = vperm.xlu0 %600, %v591
      %v602 = vpop.permute.xlu0 %601
      %605 = vset.pattern.permute.xlu0 0
      %606 = vperm.xlu0 %605, %v592
      %v607 = vpop.permute.xlu0 %606
      %610 = vset.pattern.permute.xlu0 0
      %611 = vperm.xlu0 %610, %v593
      %v612 = vpop.permute.xlu0 %611
      %v618 = vunpack.c.l.b16 %v586
      %v619 = vunpack.c.l.b16 %v587
      %v620 = vunpack.c.l.b16 %v588
      %v621 = vunpack.c.l.b16 %v589
      %v622 = vpack.c.b16 %v619, %v618
      %v623 = vpack.c.b16 %v621, %v620
      %vm624 = vcmask 785408
      %v626 = vsel %vm624, %v622, 0
      %v629 = vsel %vm624, %v623, 0
      %631 = vmatpush.bf16.msra.mxu0 0
      %632 = vmatpush.bf16.msra.mxu0 0
      %633 = vmatpush.bf16.msra.mxu0 %v580
      %634 = vmatpush.bf16.msra.mxu0 %v578
      %635 = vmatpush.bf16.msra.mxu0 %v560
      %636 = vmatpush.bf16.msra.mxu0 %v558
      %637 = vmatpush.bf16.msra.mxu0 %v540
      %638 = vmatpush.bf16.msra.mxu0 %v538
      %639 = vmatmul.bf16.gmra.mxu0 %v626
      %v640 = vpop.f32.mrf.mxu0
      %v641 = vadd.f32 %v597, %v640
      %v642 = vpop.f32.mrf.mxu0
      %v643 = vadd.f32 %v602, %v642
      %644 = vmatmul.bf16.gmra.mxu0 %v629
      %v645 = vpop.f32.mrf.mxu0
      %v646 = vadd.f32 %v607, %v645
      %v647 = vpop.f32.mrf.mxu0
      %v648 = vadd.f32 %v612, %v647
      %649 = vdwg.mxu0
      %650 = vmatpush.bf16.msra.mxu0 0
      %651 = vmatpush.bf16.msra.mxu0 0
      %652 = vmatpush.bf16.msra.mxu0 %v581
      %653 = vmatpush.bf16.msra.mxu0 %v579
      %654 = vmatpush.bf16.msra.mxu0 %v561
      %655 = vmatpush.bf16.msra.mxu0 %v559
      %656 = vmatpush.bf16.msra.mxu0 %v541
      %657 = vmatpush.bf16.msra.mxu0 %v539
      %658 = vmatmul.bf16.gmra.mxu0 %v626
      %v659 = vpop.f32.mrf.mxu0
      %v660 = vadd.f32 %v597, %v659
      %v661 = vpop.f32.mrf.mxu0
      %v662 = vadd.f32 %v602, %v661
      %663 = vmatmul.bf16.gmra.mxu0 %v629
      %v664 = vpop.f32.mrf.mxu0
      %v665 = vadd.f32 %v607, %v664
      %v666 = vpop.f32.mrf.mxu0
      %v667 = vadd.f32 %v612, %v666
      %668 = vdwg.mxu0
      %v669 = vmax.f32 %v641, 0.0
      %v670 = vmax.f32 %v660, 0.0
      %v671 = vmax.f32 %v643, 0.0
      %v672 = vmax.f32 %v662, 0.0
      %v673 = vmax.f32 %v646, 0.0
      %v674 = vmax.f32 %v665, 0.0
      %v675 = vmax.f32 %v648, 0.0
      %v676 = vmax.f32 %v667, 0.0
      %v677 = vpack.c.bf16 %v671, %v669
      %v678 = vpack.c.bf16 %v672, %v670
      %v679 = vpack.c.bf16 %v675, %v673
      %v680 = vpack.c.bf16 %v676, %v674
      %v681 = vld [vmem:[%s6] sm:$0xf]
      %v682 = vld [vmem:[%s6 + $0x4] sm:$0xf]
      %v683 = vld [vmem:[%s6 + $0x8] sm:$0xf]
      %v684 = vld [vmem:[%s6 + $0xc] sm:$0xf]
      %v685 = vld [vmem:[%s7] sm:$0xff]
      %v686 = vld [vmem:[%s7 + $0x8] sm:$0xff]
      %v687 = vld [vmem:[%s7 + $0x10] sm:$0xff]
      %v688 = vld [vmem:[%s7 + $0x18] sm:$0xff]
      %690 = vset.pattern.permute.xlu0 0
      %691 = vperm.xlu0 %690, %v685
      %v692 = vpop.permute.xlu0 %691
      %695 = vset.pattern.permute.xlu0 0
      %696 = vperm.xlu0 %695, %v686
      %v697 = vpop.permute.xlu0 %696
      %700 = vset.pattern.permute.xlu0 0
      %701 = vperm.xlu0 %700, %v687
      %v702 = vpop.permute.xlu0 %701
      %705 = vset.pattern.permute.xlu0 0
      %706 = vperm.xlu0 %705, %v688
      %v707 = vpop.permute.xlu0 %706
      %v713 = vunpack.c.l.b16 %v681
      %v714 = vunpack.c.l.b16 %v682
      %v715 = vunpack.c.l.b16 %v683
      %v716 = vunpack.c.l.b16 %v684
      %v717 = vpack.c.b16 %v714, %v713
      %v718 = vpack.c.b16 %v716, %v715
      %v720 = vsel %vm388, %v717, 0
      %v723 = vsel %vm388, %v718, 0
      %725 = vmatpush.bf16.msra.mxu0 0
      %726 = vmatpush.bf16.msra.mxu0 0
      %727 = vmatpush.bf16.msra.mxu0 0
      %728 = vmatpush.bf16.msra.mxu0 0
      %729 = vmatpush.bf16.msra.mxu0 0
      %730 = vmatpush.bf16.msra.mxu0 0
      %731 = vmatpush.bf16.msra.mxu0 %v679
      %732 = vmatpush.bf16.msra.mxu0 %v677
      %733 = vmatmul.bf16.gmra.mxu0 %v720
      %v734 = vpop.f32.mrf.mxu0
      %v735 = vadd.f32 %v692, %v734
      %v736 = vpop.f32.mrf.mxu0
      %v737 = vadd.f32 %v697, %v736
      %738 = vmatmul.bf16.gmra.mxu0 %v723
      %v739 = vpop.f32.mrf.mxu0
      %v740 = vadd.f32 %v702, %v739
      %v741 = vpop.f32.mrf.mxu0
      %v742 = vadd.f32 %v707, %v741
      %743 = vdwg.mxu0
      %744 = vmatpush.bf16.msra.mxu0 0
      %745 = vmatpush.bf16.msra.mxu0 0
      %746 = vmatpush.bf16.msra.mxu0 0
      %747 = vmatpush.bf16.msra.mxu0 0
      %748 = vmatpush.bf16.msra.mxu0 0
      %749 = vmatpush.bf16.msra.mxu0 0
      %750 = vmatpush.bf16.msra.mxu0 %v680
      %751 = vmatpush.bf16.msra.mxu0 %v678
      %752 = vmatmul.bf16.gmra.mxu0 %v720
      %v753 = vpop.f32.mrf.mxu0
      %v754 = vadd.f32 %v692, %v753
      %v755 = vpop.f32.mrf.mxu0
      %v756 = vadd.f32 %v697, %v755
      %757 = vmatmul.bf16.gmra.mxu0 %v723
      %v758 = vpop.f32.mrf.mxu0
      %v759 = vadd.f32 %v702, %v758
      %v760 = vpop.f32.mrf.mxu0
      %v761 = vadd.f32 %v707, %v760
      %762 = vdwg.mxu0
      %v763 = vadd.f32 %v405, %v735
      %v764 = vadd.f32 %v424, %v754
      %v765 = vadd.f32 %v407, %v737
      %v766 = vadd.f32 %v426, %v756
      %v767 = vadd.f32 %v410, %v740
      %v768 = vadd.f32 %v429, %v759
      %v769 = vadd.f32 %v412, %v742
      %v770 = vadd.f32 %v431, %v761
      %v771 = vmul.f32 %v763, %v334
      %v772 = vmul.f32 %v764, %v335
      %v773 = vmul.f32 %v765, %v334
      %v774 = vmul.f32 %v766, %v335
      %v775 = vmul.f32 %v767, %v334
      %v776 = vmul.f32 %v768, %v335
      %v777 = vmul.f32 %v769, %v334
      %v778 = vmul.f32 %v770, %v335
      %v779 = vpack.c.bf16 %v772, %v771
      %v780 = vpack.c.bf16 %v774, %v773
      %v781 = vpack.c.bf16 %v776, %v775
      %v782 = vpack.c.bf16 %v778, %v777
      %vm783 = vcmp.ge.s32.totalorder %v434, 2
      %vm784 = vcmp.ge.s32.totalorder %v435, 2
      %785 = vrot.lane.b32.xlu0 %v771, 2
      %v786 = vpop.permute.xlu0 %785
      %787 = vrot.lane.b32.xlu0 %v773, 2
      %v788 = vpop.permute.xlu0 %787
      %789 = vrot.lane.b32.xlu0 %v775, 2
      %v790 = vpop.permute.xlu0 %789
      %791 = vrot.lane.b32.xlu0 %v777, 2
      %v792 = vpop.permute.xlu0 %791
      %793 = vrot.lane.b32.xlu0 %v772, 2
      %v794 = vpop.permute.xlu0 %793
      %795 = vrot.lane.b32.xlu0 %v774, 2
      %v796 = vpop.permute.xlu0 %795
      %797 = vrot.lane.b32.xlu0 %v776, 2
      %v798 = vpop.permute.xlu0 %797
      %799 = vrot.lane.b32.xlu0 %v778, 2
      %v800 = vpop.permute.xlu0 %799
      %vm801 = vcmp.lt.s32.totalorder %v434, 2
      %v802 = vsel %vm801, %v786, %v794
      %v803 = vsel %vm801, %v788, %v796
      %v804 = vsel %vm801, %v790, %v798
      %v805 = vsel %vm801, %v792, %v800
      %v806 = vsel %vm801, %v794, %v786
      %v807 = vsel %vm801, %v796, %v788
      %v808 = vsel %vm801, %v798, %v790
      %v809 = vsel %vm801, %v800, %v792
      %v810 = vsel %vm783, 1, 0
      %v811 = vsel %vm784, 1, 0
      %vm812 = vcmp.eq.s32.totalorder %v810, 1
      %vm813 = vcmp.eq.s32.totalorder %v811, 1
      %v814 = vsel %vm812, %v806, 0.0
      %v815 = vsel %vm813, %v802, 0.0
      %v816 = vsel %vm812, %v807, 0.0
      %v817 = vsel %vm813, %v803, 0.0
      %v818 = vsel %vm812, %v808, 0.0
      %v819 = vsel %vm813, %v804, 0.0
      %v820 = vsel %vm812, %v809, 0.0
      %v821 = vsel %vm813, %v805, 0.0
      %v822 = vpack.c.bf16 %v815, %v814
      %v823 = vpack.c.bf16 %v817, %v816
      %v824 = vpack.c.bf16 %v819, %v818
      %v825 = vpack.c.bf16 %v821, %v820
      %vm826 = vcmp.lt.s32.totalorder %v434, 254
      %vm827 = vcmp.lt.s32.totalorder %v435, 254
      %828 = vrot.lane.b32.xlu0 %v771, 126
      %v829 = vpop.permute.xlu0 %828
      %830 = vrot.lane.b32.xlu0 %v773, 126
      %v831 = vpop.permute.xlu0 %830
      %832 = vrot.lane.b32.xlu0 %v775, 126
      %v833 = vpop.permute.xlu0 %832
      %834 = vrot.lane.b32.xlu0 %v777, 126
      %v835 = vpop.permute.xlu0 %834
      %836 = vrot.lane.b32.xlu0 %v772, 126
      %v837 = vpop.permute.xlu0 %836
      %838 = vrot.lane.b32.xlu0 %v774, 126
      %v839 = vpop.permute.xlu0 %838
      %840 = vrot.lane.b32.xlu0 %v776, 126
      %v841 = vpop.permute.xlu0 %840
      %842 = vrot.lane.b32.xlu0 %v778, 126
      %v843 = vpop.permute.xlu0 %842
      %vm844 = vcmp.lt.s32.totalorder %v434, 126
      %v845 = vsel %vm844, %v829, %v837
      %v846 = vsel %vm844, %v831, %v839
      %v847 = vsel %vm844, %v833, %v841
      %v848 = vsel %vm844, %v835, %v843
      %v849 = vsel %vm844, %v837, %v829
      %v850 = vsel %vm844, %v839, %v831
      %v851 = vsel %vm844, %v841, %v833
      %v852 = vsel %vm844, %v843, %v835
      %v853 = vsel %vm826, 1, 0
      %v854 = vsel %vm827, 1, 0
      %vm855 = vcmp.eq.s32.totalorder %v853, 1
      %vm856 = vcmp.eq.s32.totalorder %v854, 1
      %v857 = vsel %vm855, %v845, 0.0
      %v858 = vsel %vm856, %v849, 0.0
      %v859 = vsel %vm855, %v846, 0.0
      %v860 = vsel %vm856, %v850, 0.0
      %v861 = vsel %vm855, %v847, 0.0
      %v862 = vsel %vm856, %v851, 0.0
      %v863 = vsel %vm855, %v848, 0.0
      %v864 = vsel %vm856, %v852, 0.0
      %v865 = vpack.c.bf16 %v858, %v857
      %v866 = vpack.c.bf16 %v860, %v859
      %v867 = vpack.c.bf16 %v862, %v861
      %v868 = vpack.c.bf16 %v864, %v863
      %v873 = vunpack.c.l.b16 %v822
      %v874 = vunpack.c.h.b16 %v822
      %v875 = vunpack.c.l.b16 %v823
      %v876 = vunpack.c.h.b16 %v823
      %v877 = vunpack.c.l.b16 %v824
      %v878 = vunpack.c.h.b16 %v824
      %v879 = vunpack.c.l.b16 %v825
      %v880 = vunpack.c.h.b16 %v825
      %v881 = vpack.c.b16 %v875, %v873
      %v882 = vpack.c.b16 %v876, %v874
      %v883 = vpack.c.b16 %v879, %v877
      %v884 = vpack.c.b16 %v880, %v878
      %v893 = vunpack.c.l.b16 %v779
      %v894 = vunpack.c.h.b16 %v779
      %v895 = vunpack.c.l.b16 %v780
      %v896 = vunpack.c.h.b16 %v780
      %v897 = vunpack.c.l.b16 %v781
      %v898 = vunpack.c.h.b16 %v781
      %v899 = vunpack.c.l.b16 %v782
      %v900 = vunpack.c.h.b16 %v782
      %v901 = vpack.c.b16 %v895, %v893
      %v902 = vpack.c.b16 %v896, %v894
      %v903 = vpack.c.b16 %v899, %v897
      %v904 = vpack.c.b16 %v900, %v898
      %v913 = vunpack.c.l.b16 %v865
      %v914 = vunpack.c.h.b16 %v865
      %v915 = vunpack.c.l.b16 %v866
      %v916 = vunpack.c.h.b16 %v866
      %v917 = vunpack.c.l.b16 %v867
      %v918 = vunpack.c.h.b16 %v867
      %v919 = vunpack.c.l.b16 %v868
      %v920 = vunpack.c.h.b16 %v868
      %v921 = vpack.c.b16 %v915, %v913
      %v922 = vpack.c.b16 %v916, %v914
      %v923 = vpack.c.b16 %v919, %v917
      %v924 = vpack.c.b16 %v920, %v918
      %s929 = scalar_lea.vmem %s4, 16
      %v930 = vld [vmem:[%s929] sm:$0xf]
      %v931 = vld [vmem:[%s929 + $0x4] sm:$0xf]
      %v932 = vld [vmem:[%s929 + $0x8] sm:$0xf]
      %v933 = vld [vmem:[%s929 + $0xc] sm:$0xf]
      %s934 = scalar_lea.vmem %s5, 32
      %v935 = vld [vmem:[%s934] sm:$0xff]
      %v936 = vld [vmem:[%s934 + $0x8] sm:$0xff]
      %v937 = vld [vmem:[%s934 + $0x10] sm:$0xff]
      %v938 = vld [vmem:[%s934 + $0x18] sm:$0xff]
      %940 = vset.pattern.permute.xlu0 0
      %941 = vperm.xlu0 %940, %v935
      %v942 = vpop.permute.xlu0 %941
      %945 = vset.pattern.permute.xlu0 0
      %946 = vperm.xlu0 %945, %v936
      %v947 = vpop.permute.xlu0 %946
      %950 = vset.pattern.permute.xlu0 0
      %951 = vperm.xlu0 %950, %v937
      %v952 = vpop.permute.xlu0 %951
      %955 = vset.pattern.permute.xlu0 0
      %956 = vperm.xlu0 %955, %v938
      %v957 = vpop.permute.xlu0 %956
      %v963 = vunpack.c.l.b16 %v930
      %v964 = vunpack.c.l.b16 %v931
      %v965 = vunpack.c.l.b16 %v932
      %v966 = vunpack.c.l.b16 %v933
      %v967 = vpack.c.b16 %v964, %v963
      %v968 = vpack.c.b16 %v966, %v965
      %v970 = vsel %vm624, %v967, 0
      %v973 = vsel %vm624, %v968, 0
      %975 = vmatpush.bf16.msra.mxu0 0
      %976 = vmatpush.bf16.msra.mxu0 0
      %977 = vmatpush.bf16.msra.mxu0 %v923
      %978 = vmatpush.bf16.msra.mxu0 %v921
      %979 = vmatpush.bf16.msra.mxu0 %v903
      %980 = vmatpush.bf16.msra.mxu0 %v901
      %981 = vmatpush.bf16.msra.mxu0 %v883
      %982 = vmatpush.bf16.msra.mxu0 %v881
      %983 = vmatmul.bf16.gmra.mxu0 %v970
      %v984 = vpop.f32.mrf.mxu0
      %v985 = vadd.f32 %v942, %v984
      %v986 = vpop.f32.mrf.mxu0
      %v987 = vadd.f32 %v947, %v986
      %988 = vmatmul.bf16.gmra.mxu0 %v973
      %v989 = vpop.f32.mrf.mxu0
      %v990 = vadd.f32 %v952, %v989
      %v991 = vpop.f32.mrf.mxu0
      %v992 = vadd.f32 %v957, %v991
      %993 = vdwg.mxu0
      %994 = vmatpush.bf16.msra.mxu0 0
      %995 = vmatpush.bf16.msra.mxu0 0
      %996 = vmatpush.bf16.msra.mxu0 %v924
      %997 = vmatpush.bf16.msra.mxu0 %v922
      %998 = vmatpush.bf16.msra.mxu0 %v904
      %999 = vmatpush.bf16.msra.mxu0 %v902
      %1000 = vmatpush.bf16.msra.mxu0 %v884
      %1001 = vmatpush.bf16.msra.mxu0 %v882
      %1002 = vmatmul.bf16.gmra.mxu0 %v970
      %v1003 = vpop.f32.mrf.mxu0
      %v1004 = vadd.f32 %v942, %v1003
      %v1005 = vpop.f32.mrf.mxu0
      %v1006 = vadd.f32 %v947, %v1005
      %1007 = vmatmul.bf16.gmra.mxu0 %v973
      %v1008 = vpop.f32.mrf.mxu0
      %v1009 = vadd.f32 %v952, %v1008
      %v1010 = vpop.f32.mrf.mxu0
      %v1011 = vadd.f32 %v957, %v1010
      %1012 = vdwg.mxu0
      %v1013 = vmax.f32 %v985, 0.0
      %v1014 = vmax.f32 %v1004, 0.0
      %v1015 = vmax.f32 %v987, 0.0
      %v1016 = vmax.f32 %v1006, 0.0
      %v1017 = vmax.f32 %v990, 0.0
      %v1018 = vmax.f32 %v1009, 0.0
      %v1019 = vmax.f32 %v992, 0.0
      %v1020 = vmax.f32 %v1011, 0.0
      %v1021 = vpack.c.bf16 %v1015, %v1013
      %v1022 = vpack.c.bf16 %v1016, %v1014
      %v1023 = vpack.c.bf16 %v1019, %v1017
      %v1024 = vpack.c.bf16 %v1020, %v1018
      %s1025 = scalar_lea.vmem %s6, 16
      %v1026 = vld [vmem:[%s1025] sm:$0xf]
      %v1027 = vld [vmem:[%s1025 + $0x4] sm:$0xf]
      %v1028 = vld [vmem:[%s1025 + $0x8] sm:$0xf]
      %v1029 = vld [vmem:[%s1025 + $0xc] sm:$0xf]
      %s1030 = scalar_lea.vmem %s7, 32
      %v1031 = vld [vmem:[%s1030] sm:$0xff]
      %v1032 = vld [vmem:[%s1030 + $0x8] sm:$0xff]
      %v1033 = vld [vmem:[%s1030 + $0x10] sm:$0xff]
      %v1034 = vld [vmem:[%s1030 + $0x18] sm:$0xff]
      %1036 = vset.pattern.permute.xlu0 0
      %1037 = vperm.xlu0 %1036, %v1031
      %v1038 = vpop.permute.xlu0 %1037
      %1041 = vset.pattern.permute.xlu0 0
      %1042 = vperm.xlu0 %1041, %v1032
      %v1043 = vpop.permute.xlu0 %1042
      %1046 = vset.pattern.permute.xlu0 0
      %1047 = vperm.xlu0 %1046, %v1033
      %v1048 = vpop.permute.xlu0 %1047
      %1051 = vset.pattern.permute.xlu0 0
      %1052 = vperm.xlu0 %1051, %v1034
      %v1053 = vpop.permute.xlu0 %1052
      %v1059 = vunpack.c.l.b16 %v1026
      %v1060 = vunpack.c.l.b16 %v1027
      %v1061 = vunpack.c.l.b16 %v1028
      %v1062 = vunpack.c.l.b16 %v1029
      %v1063 = vpack.c.b16 %v1060, %v1059
      %v1064 = vpack.c.b16 %v1062, %v1061
      %v1066 = vsel %vm388, %v1063, 0
      %v1069 = vsel %vm388, %v1064, 0
      %1071 = vmatpush.bf16.msra.mxu0 0
      %1072 = vmatpush.bf16.msra.mxu0 0
      %1073 = vmatpush.bf16.msra.mxu0 0
      %1074 = vmatpush.bf16.msra.mxu0 0
      %1075 = vmatpush.bf16.msra.mxu0 0
      %1076 = vmatpush.bf16.msra.mxu0 0
      %1077 = vmatpush.bf16.msra.mxu0 %v1023
      %1078 = vmatpush.bf16.msra.mxu0 %v1021
      %1079 = vmatmul.bf16.gmra.mxu0 %v1066
      %v1080 = vpop.f32.mrf.mxu0
      %v1081 = vadd.f32 %v1038, %v1080
      %v1082 = vpop.f32.mrf.mxu0
      %v1083 = vadd.f32 %v1043, %v1082
      %1084 = vmatmul.bf16.gmra.mxu0 %v1069
      %v1085 = vpop.f32.mrf.mxu0
      %v1086 = vadd.f32 %v1048, %v1085
      %v1087 = vpop.f32.mrf.mxu0
      %v1088 = vadd.f32 %v1053, %v1087
      %1089 = vdwg.mxu0
      %1090 = vmatpush.bf16.msra.mxu0 0
      %1091 = vmatpush.bf16.msra.mxu0 0
      %1092 = vmatpush.bf16.msra.mxu0 0
      %1093 = vmatpush.bf16.msra.mxu0 0
      %1094 = vmatpush.bf16.msra.mxu0 0
      %1095 = vmatpush.bf16.msra.mxu0 0
      %1096 = vmatpush.bf16.msra.mxu0 %v1024
      %1097 = vmatpush.bf16.msra.mxu0 %v1022
      %1098 = vmatmul.bf16.gmra.mxu0 %v1066
      %v1099 = vpop.f32.mrf.mxu0
      %v1100 = vadd.f32 %v1038, %v1099
      %v1101 = vpop.f32.mrf.mxu0
      %v1102 = vadd.f32 %v1043, %v1101
      %1103 = vmatmul.bf16.gmra.mxu0 %v1069
      %v1104 = vpop.f32.mrf.mxu0
      %v1105 = vadd.f32 %v1048, %v1104
      %v1106 = vpop.f32.mrf.mxu0
      %v1107 = vadd.f32 %v1053, %v1106
      %1108 = vdwg.mxu0
      %v1109 = vadd.f32 %v771, %v1081
      %v1110 = vadd.f32 %v772, %v1100
      %v1111 = vadd.f32 %v773, %v1083
      %v1112 = vadd.f32 %v774, %v1102
      %v1113 = vadd.f32 %v775, %v1086
      %v1114 = vadd.f32 %v776, %v1105
      %v1115 = vadd.f32 %v777, %v1088
      %v1116 = vadd.f32 %v778, %v1107
      %v1117 = vmul.f32 %v1109, %v334
      %v1118 = vmul.f32 %v1110, %v335
      %v1119 = vmul.f32 %v1111, %v334
      %v1120 = vmul.f32 %v1112, %v335
      %v1121 = vmul.f32 %v1113, %v334
      %v1122 = vmul.f32 %v1114, %v335
      %v1123 = vmul.f32 %v1115, %v334
      %v1124 = vmul.f32 %v1116, %v335
      %v1125 = vpack.c.bf16 %v1118, %v1117
      %v1126 = vpack.c.bf16 %v1120, %v1119
      %v1127 = vpack.c.bf16 %v1122, %v1121
      %v1128 = vpack.c.bf16 %v1124, %v1123
      %vm1129 = vcmp.ge.s32.totalorder %v434, 4
      %vm1130 = vcmp.ge.s32.totalorder %v435, 4
      %1131 = vrot.lane.b32.xlu0 %v1117, 4
      %v1132 = vpop.permute.xlu0 %1131
      %1133 = vrot.lane.b32.xlu0 %v1119, 4
      %v1134 = vpop.permute.xlu0 %1133
      %1135 = vrot.lane.b32.xlu0 %v1121, 4
      %v1136 = vpop.permute.xlu0 %1135
      %1137 = vrot.lane.b32.xlu0 %v1123, 4
      %v1138 = vpop.permute.xlu0 %1137
      %1139 = vrot.lane.b32.xlu0 %v1118, 4
      %v1140 = vpop.permute.xlu0 %1139
      %1141 = vrot.lane.b32.xlu0 %v1120, 4
      %v1142 = vpop.permute.xlu0 %1141
      %1143 = vrot.lane.b32.xlu0 %v1122, 4
      %v1144 = vpop.permute.xlu0 %1143
      %1145 = vrot.lane.b32.xlu0 %v1124, 4
      %v1146 = vpop.permute.xlu0 %1145
      %vm1147 = vcmp.lt.s32.totalorder %v434, 4
      %v1148 = vsel %vm1147, %v1132, %v1140
      %v1149 = vsel %vm1147, %v1134, %v1142
      %v1150 = vsel %vm1147, %v1136, %v1144
      %v1151 = vsel %vm1147, %v1138, %v1146
      %v1152 = vsel %vm1147, %v1140, %v1132
      %v1153 = vsel %vm1147, %v1142, %v1134
      %v1154 = vsel %vm1147, %v1144, %v1136
      %v1155 = vsel %vm1147, %v1146, %v1138
      %v1156 = vsel %vm1129, 1, 0
      %v1157 = vsel %vm1130, 1, 0
      %vm1158 = vcmp.eq.s32.totalorder %v1156, 1
      %vm1159 = vcmp.eq.s32.totalorder %v1157, 1
      %v1160 = vsel %vm1158, %v1152, 0.0
      %v1161 = vsel %vm1159, %v1148, 0.0
      %v1162 = vsel %vm1158, %v1153, 0.0
      %v1163 = vsel %vm1159, %v1149, 0.0
      %v1164 = vsel %vm1158, %v1154, 0.0
      %v1165 = vsel %vm1159, %v1150, 0.0
      %v1166 = vsel %vm1158, %v1155, 0.0
      %v1167 = vsel %vm1159, %v1151, 0.0
      %v1168 = vpack.c.bf16 %v1161, %v1160
      %v1169 = vpack.c.bf16 %v1163, %v1162
      %v1170 = vpack.c.bf16 %v1165, %v1164
      %v1171 = vpack.c.bf16 %v1167, %v1166
      %vm1172 = vcmp.lt.s32.totalorder %v434, 252
      %vm1173 = vcmp.lt.s32.totalorder %v435, 252
      %1174 = vrot.lane.b32.xlu0 %v1117, 124
      %v1175 = vpop.permute.xlu0 %1174
      %1176 = vrot.lane.b32.xlu0 %v1119, 124
      %v1177 = vpop.permute.xlu0 %1176
      %1178 = vrot.lane.b32.xlu0 %v1121, 124
      %v1179 = vpop.permute.xlu0 %1178
      %1180 = vrot.lane.b32.xlu0 %v1123, 124
      %v1181 = vpop.permute.xlu0 %1180
      %1182 = vrot.lane.b32.xlu0 %v1118, 124
      %v1183 = vpop.permute.xlu0 %1182
      %1184 = vrot.lane.b32.xlu0 %v1120, 124
      %v1185 = vpop.permute.xlu0 %1184
      %1186 = vrot.lane.b32.xlu0 %v1122, 124
      %v1187 = vpop.permute.xlu0 %1186
      %1188 = vrot.lane.b32.xlu0 %v1124, 124
      %v1189 = vpop.permute.xlu0 %1188
      %vm1190 = vcmp.lt.s32.totalorder %v434, 124
      %v1191 = vsel %vm1190, %v1175, %v1183
      %v1192 = vsel %vm1190, %v1177, %v1185
      %v1193 = vsel %vm1190, %v1179, %v1187
      %v1194 = vsel %vm1190, %v1181, %v1189
      %v1195 = vsel %vm1190, %v1183, %v1175
      %v1196 = vsel %vm1190, %v1185, %v1177
      %v1197 = vsel %vm1190, %v1187, %v1179
      %v1198 = vsel %vm1190, %v1189, %v1181
      %v1199 = vsel %vm1172, 1, 0
      %v1200 = vsel %vm1173, 1, 0
      %vm1201 = vcmp.eq.s32.totalorder %v1199, 1
      %vm1202 = vcmp.eq.s32.totalorder %v1200, 1
      %v1203 = vsel %vm1201, %v1191, 0.0
      %v1204 = vsel %vm1202, %v1195, 0.0
      %v1205 = vsel %vm1201, %v1192, 0.0
      %v1206 = vsel %vm1202, %v1196, 0.0
      %v1207 = vsel %vm1201, %v1193, 0.0
      %v1208 = vsel %vm1202, %v1197, 0.0
      %v1209 = vsel %vm1201, %v1194, 0.0
      %v1210 = vsel %vm1202, %v1198, 0.0
      %v1211 = vpack.c.bf16 %v1204, %v1203
      %v1212 = vpack.c.bf16 %v1206, %v1205
      %v1213 = vpack.c.bf16 %v1208, %v1207
      %v1214 = vpack.c.bf16 %v1210, %v1209
      %v1219 = vunpack.c.l.b16 %v1168
      %v1220 = vunpack.c.h.b16 %v1168
      %v1221 = vunpack.c.l.b16 %v1169
      %v1222 = vunpack.c.h.b16 %v1169
      %v1223 = vunpack.c.l.b16 %v1170
      %v1224 = vunpack.c.h.b16 %v1170
      %v1225 = vunpack.c.l.b16 %v1171
      %v1226 = vunpack.c.h.b16 %v1171
      %v1227 = vpack.c.b16 %v1221, %v1219
      %v1228 = vpack.c.b16 %v1222, %v1220
      %v1229 = vpack.c.b16 %v1225, %v1223
      %v1230 = vpack.c.b16 %v1226, %v1224
      %v1239 = vunpack.c.l.b16 %v1125
      %v1240 = vunpack.c.h.b16 %v1125
      %v1241 = vunpack.c.l.b16 %v1126
      %v1242 = vunpack.c.h.b16 %v1126
      %v1243 = vunpack.c.l.b16 %v1127
      %v1244 = vunpack.c.h.b16 %v1127
      %v1245 = vunpack.c.l.b16 %v1128
      %v1246 = vunpack.c.h.b16 %v1128
      %v1247 = vpack.c.b16 %v1241, %v1239
      %v1248 = vpack.c.b16 %v1242, %v1240
      %v1249 = vpack.c.b16 %v1245, %v1243
      %v1250 = vpack.c.b16 %v1246, %v1244
      %v1259 = vunpack.c.l.b16 %v1211
      %v1260 = vunpack.c.h.b16 %v1211
      %v1261 = vunpack.c.l.b16 %v1212
      %v1262 = vunpack.c.h.b16 %v1212
      %v1263 = vunpack.c.l.b16 %v1213
      %v1264 = vunpack.c.h.b16 %v1213
      %v1265 = vunpack.c.l.b16 %v1214
      %v1266 = vunpack.c.h.b16 %v1214
      %v1267 = vpack.c.b16 %v1261, %v1259
      %v1268 = vpack.c.b16 %v1262, %v1260
      %v1269 = vpack.c.b16 %v1265, %v1263
      %v1270 = vpack.c.b16 %v1266, %v1264
      %s1275 = scalar_lea.vmem %s4, 32
      %v1276 = vld [vmem:[%s1275] sm:$0xf]
      %v1277 = vld [vmem:[%s1275 + $0x4] sm:$0xf]
      %v1278 = vld [vmem:[%s1275 + $0x8] sm:$0xf]
      %v1279 = vld [vmem:[%s1275 + $0xc] sm:$0xf]
      %s1280 = scalar_lea.vmem %s5, 64
      %v1281 = vld [vmem:[%s1280] sm:$0xff]
      %v1282 = vld [vmem:[%s1280 + $0x8] sm:$0xff]
      %v1283 = vld [vmem:[%s1280 + $0x10] sm:$0xff]
      %v1284 = vld [vmem:[%s1280 + $0x18] sm:$0xff]
      %1286 = vset.pattern.permute.xlu0 0
      %1287 = vperm.xlu0 %1286, %v1281
      %v1288 = vpop.permute.xlu0 %1287
      %1291 = vset.pattern.permute.xlu0 0
      %1292 = vperm.xlu0 %1291, %v1282
      %v1293 = vpop.permute.xlu0 %1292
      %1296 = vset.pattern.permute.xlu0 0
      %1297 = vperm.xlu0 %1296, %v1283
      %v1298 = vpop.permute.xlu0 %1297
      %1301 = vset.pattern.permute.xlu0 0
      %1302 = vperm.xlu0 %1301, %v1284
      %v1303 = vpop.permute.xlu0 %1302
      %v1309 = vunpack.c.l.b16 %v1276
      %v1310 = vunpack.c.l.b16 %v1277
      %v1311 = vunpack.c.l.b16 %v1278
      %v1312 = vunpack.c.l.b16 %v1279
      %v1313 = vpack.c.b16 %v1310, %v1309
      %v1314 = vpack.c.b16 %v1312, %v1311
      %v1316 = vsel %vm624, %v1313, 0
      %v1319 = vsel %vm624, %v1314, 0
      %1321 = vmatpush.bf16.msra.mxu0 0
      %1322 = vmatpush.bf16.msra.mxu0 0
      %1323 = vmatpush.bf16.msra.mxu0 %v1269
      %1324 = vmatpush.bf16.msra.mxu0 %v1267
      %1325 = vmatpush.bf16.msra.mxu0 %v1249
      %1326 = vmatpush.bf16.msra.mxu0 %v1247
      %1327 = vmatpush.bf16.msra.mxu0 %v1229
      %1328 = vmatpush.bf16.msra.mxu0 %v1227
      %1329 = vmatmul.bf16.gmra.mxu0 %v1316
      %v1330 = vpop.f32.mrf.mxu0
      %v1331 = vadd.f32 %v1288, %v1330
      %v1332 = vpop.f32.mrf.mxu0
      %v1333 = vadd.f32 %v1293, %v1332
      %1334 = vmatmul.bf16.gmra.mxu0 %v1319
      %v1335 = vpop.f32.mrf.mxu0
      %v1336 = vadd.f32 %v1298, %v1335
      %v1337 = vpop.f32.mrf.mxu0
      %v1338 = vadd.f32 %v1303, %v1337
      %1339 = vdwg.mxu0
      %1340 = vmatpush.bf16.msra.mxu0 0
      %1341 = vmatpush.bf16.msra.mxu0 0
      %1342 = vmatpush.bf16.msra.mxu0 %v1270
      %1343 = vmatpush.bf16.msra.mxu0 %v1268
      %1344 = vmatpush.bf16.msra.mxu0 %v1250
      %1345 = vmatpush.bf16.msra.mxu0 %v1248
      %1346 = vmatpush.bf16.msra.mxu0 %v1230
      %1347 = vmatpush.bf16.msra.mxu0 %v1228
      %1348 = vmatmul.bf16.gmra.mxu0 %v1316
      %v1349 = vpop.f32.mrf.mxu0
      %v1350 = vadd.f32 %v1288, %v1349
      %v1351 = vpop.f32.mrf.mxu0
      %v1352 = vadd.f32 %v1293, %v1351
      %1353 = vmatmul.bf16.gmra.mxu0 %v1319
      %v1354 = vpop.f32.mrf.mxu0
      %v1355 = vadd.f32 %v1298, %v1354
      %v1356 = vpop.f32.mrf.mxu0
      %v1357 = vadd.f32 %v1303, %v1356
      %1358 = vdwg.mxu0
      %v1359 = vmax.f32 %v1331, 0.0
      %v1360 = vmax.f32 %v1350, 0.0
      %v1361 = vmax.f32 %v1333, 0.0
      %v1362 = vmax.f32 %v1352, 0.0
      %v1363 = vmax.f32 %v1336, 0.0
      %v1364 = vmax.f32 %v1355, 0.0
      %v1365 = vmax.f32 %v1338, 0.0
      %v1366 = vmax.f32 %v1357, 0.0
      %v1367 = vpack.c.bf16 %v1361, %v1359
      %v1368 = vpack.c.bf16 %v1362, %v1360
      %v1369 = vpack.c.bf16 %v1365, %v1363
      %v1370 = vpack.c.bf16 %v1366, %v1364
      %s1371 = scalar_lea.vmem %s6, 32
      %v1372 = vld [vmem:[%s1371] sm:$0xf]
      %v1373 = vld [vmem:[%s1371 + $0x4] sm:$0xf]
      %v1374 = vld [vmem:[%s1371 + $0x8] sm:$0xf]
      %v1375 = vld [vmem:[%s1371 + $0xc] sm:$0xf]
      %s1376 = scalar_lea.vmem %s7, 64
      %v1377 = vld [vmem:[%s1376] sm:$0xff]
      %v1378 = vld [vmem:[%s1376 + $0x8] sm:$0xff]
      %v1379 = vld [vmem:[%s1376 + $0x10] sm:$0xff]
      %v1380 = vld [vmem:[%s1376 + $0x18] sm:$0xff]
      %1382 = vset.pattern.permute.xlu0 0
      %1383 = vperm.xlu0 %1382, %v1377
      %v1384 = vpop.permute.xlu0 %1383
      %1387 = vset.pattern.permute.xlu0 0
      %1388 = vperm.xlu0 %1387, %v1378
      %v1389 = vpop.permute.xlu0 %1388
      %1392 = vset.pattern.permute.xlu0 0
      %1393 = vperm.xlu0 %1392, %v1379
      %v1394 = vpop.permute.xlu0 %1393
      %1397 = vset.pattern.permute.xlu0 0
      %1398 = vperm.xlu0 %1397, %v1380
      %v1399 = vpop.permute.xlu0 %1398
      %v1405 = vunpack.c.l.b16 %v1372
      %v1406 = vunpack.c.l.b16 %v1373
      %v1407 = vunpack.c.l.b16 %v1374
      %v1408 = vunpack.c.l.b16 %v1375
      %v1409 = vpack.c.b16 %v1406, %v1405
      %v1410 = vpack.c.b16 %v1408, %v1407
      %v1412 = vsel %vm388, %v1409, 0
      %v1415 = vsel %vm388, %v1410, 0
      %1417 = vmatpush.bf16.msra.mxu0 0
      %1418 = vmatpush.bf16.msra.mxu0 0
      %1419 = vmatpush.bf16.msra.mxu0 0
      %1420 = vmatpush.bf16.msra.mxu0 0
      %1421 = vmatpush.bf16.msra.mxu0 0
      %1422 = vmatpush.bf16.msra.mxu0 0
      %1423 = vmatpush.bf16.msra.mxu0 %v1369
      %1424 = vmatpush.bf16.msra.mxu0 %v1367
      %1425 = vmatmul.bf16.gmra.mxu0 %v1412
      %v1426 = vpop.f32.mrf.mxu0
      %v1427 = vadd.f32 %v1384, %v1426
      %v1428 = vpop.f32.mrf.mxu0
      %v1429 = vadd.f32 %v1389, %v1428
      %1430 = vmatmul.bf16.gmra.mxu0 %v1415
      %v1431 = vpop.f32.mrf.mxu0
      %v1432 = vadd.f32 %v1394, %v1431
      %v1433 = vpop.f32.mrf.mxu0
      %v1434 = vadd.f32 %v1399, %v1433
      %1435 = vdwg.mxu0
      %1436 = vmatpush.bf16.msra.mxu0 0
      %1437 = vmatpush.bf16.msra.mxu0 0
      %1438 = vmatpush.bf16.msra.mxu0 0
      %1439 = vmatpush.bf16.msra.mxu0 0
      %1440 = vmatpush.bf16.msra.mxu0 0
      %1441 = vmatpush.bf16.msra.mxu0 0
      %1442 = vmatpush.bf16.msra.mxu0 %v1370
      %1443 = vmatpush.bf16.msra.mxu0 %v1368
      %1444 = vmatmul.bf16.gmra.mxu0 %v1412
      %v1445 = vpop.f32.mrf.mxu0
      %v1446 = vadd.f32 %v1384, %v1445
      %v1447 = vpop.f32.mrf.mxu0
      %v1448 = vadd.f32 %v1389, %v1447
      %1449 = vmatmul.bf16.gmra.mxu0 %v1415
      %v1450 = vpop.f32.mrf.mxu0
      %v1451 = vadd.f32 %v1394, %v1450
      %v1452 = vpop.f32.mrf.mxu0
      %v1453 = vadd.f32 %v1399, %v1452
      %1454 = vdwg.mxu0
      %v1455 = vadd.f32 %v1117, %v1427
      %v1456 = vadd.f32 %v1118, %v1446
      %v1457 = vadd.f32 %v1119, %v1429
      %v1458 = vadd.f32 %v1120, %v1448
      %v1459 = vadd.f32 %v1121, %v1432
      %v1460 = vadd.f32 %v1122, %v1451
      %v1461 = vadd.f32 %v1123, %v1434
      %v1462 = vadd.f32 %v1124, %v1453
      %v1463 = vmul.f32 %v1455, %v334
      %v1464 = vmul.f32 %v1456, %v335
      %v1465 = vmul.f32 %v1457, %v334
      %v1466 = vmul.f32 %v1458, %v335
      %v1467 = vmul.f32 %v1459, %v334
      %v1468 = vmul.f32 %v1460, %v335
      %v1469 = vmul.f32 %v1461, %v334
      %v1470 = vmul.f32 %v1462, %v335
      %1471 = vst [vmem:[%s322] sm:$0xff] %v1463
      %1472 = vst [vmem:[%s322 + $0x8] sm:$0xff] %v1464
      %1473 = vst [vmem:[%s322 + $0x10] sm:$0xff] %v1465
      %1474 = vst [vmem:[%s322 + $0x18] sm:$0xff] %v1466
      %1475 = vst [vmem:[%s322 + $0x20] sm:$0xff] %v1467
      %1476 = vst [vmem:[%s322 + $0x28] sm:$0xff] %v1468
      %1477 = vst [vmem:[%s322 + $0x30] sm:$0xff] %v1469
      %1478 = vst [vmem:[%s322 + $0x38] sm:$0xff] %v1470
      %p1479 = scmp.lt.s32.totalorder %s19, 1
      %s1480 = scalar_select %p1479, %s19, 1
      %s1481 = smul.addr %s1480, 8
      %s1482 = smul.addr %s1481, 8
      %s1483 = scalar_lea.vmem %s8, %s1482
      // Predicated region
      $region53: #{single_vq_forward.7} parent=51 // pred_check
        %p1484 = pneg %p215
      $region54: #{single_vq_forward.7} parent=51 // pred_check_branch
        %1486 = sbr.rel (%p1484) target = $region56
      $region55: #{single_vq_forward.7} parent=51 // pred_region
        _
      $region56: #{single_vq_forward.7} parent=51 // pred_fallthru
        _
    $region52: #{single_vq_forward.7} parent=5 // pred_fallthru
      _
    %p1487 = scmp.le.s32.totalorder 2, %s14
    // Predicated region
    $region57: #{single_vq_forward.7} parent=5 // pred_check
      %p1488 = pneg %p1487
    $region58: #{single_vq_forward.7} parent=5 // pred_check_branch
      %1490 = sbr.rel (%p1488) target = $region60
    $region59: #{single_vq_forward.7} parent=5 // pred_region
      %s1491 = ssub.s32 %s14, 2
      // Predicated region
      $region61: #{single_vq_forward.7} parent=59 // pred_check
        %p1492 = pneg %p221
      $region62: #{single_vq_forward.7} parent=59 // pred_check_branch
        %1494 = sbr.rel (%p1492) target = $region64
      $region63: #{single_vq_forward.7} parent=59 // pred_region
        %p1495 = scmp.lt.s32.totalorder %s20, 1
        %s1496 = scalar_select %p1495, %s20, 1
        %s1497 = smul.addr %s1496, 8
        %s1498 = smul.addr %s1497, 8
        %s1499 = scalar_lea.vmem %s8, %s1498
      $region64: #{single_vq_forward.7} parent=59 // pred_fallthru
        _
    $region60: #{single_vq_forward.7} parent=5 // pred_fallthru
      _
  $region6: #{single_vq_forward.7} parent=0 // loop_footer
    %s18 = sadd.s32 1, %s14
  $region7: #{single_vq_forward.7} parent=0 // loop_footer_branch
    %13 = sbr.rel target = $region3
  $region8: #{single_vq_forward.7} parent=0 // loop_exit
    _

// kernel: single_vq_forward.11
$region0: #{single_vq_forward.11}
  #allocation0 [shape = 'u32[]', space=smem, size = 0x4, offset = 0x4, fixed_abs, tag = 'smem constant byte address 0x4 - core index']
  #allocation1 [shape = 'u32[72,128]{1,0:T(1,128)}', space=vmem, size = 0x9000, scoped, tag = 'internal scratch']
  %s0 = inlined_call_operand.vmem [shape: f32[2,32,256], index: 0, kind: input, shape index: {}]
  %s1 = inlined_call_operand.vmem [shape: f32[2,1,256], index: 1, kind: input, shape index: {}]
  %s2 = inlined_call_operand.vmem [shape: bf16[16,32], index: 2, kind: input, shape index: {}]
  %s3 = inlined_call_operand.vmem [shape: f32[16,1], index: 3, kind: input, shape index: {}]
  %s4 = inlined_call_operand.hbm [shape: f32[2,16,256], index: 4, kind: output, shape index: {}]
  %s5 = sld [smem:[#allocation0]]
  $region49: #{single_vq_forward.11} parent=0
    _
  %s7 = ssub.s32 1, %s5
  %s8 = scalar_select 0, %s7, %s5
  $region1: #{single_vq_forward.11} parent=0
    #allocation2 [shape = 'u8[32768]{0}', space=vmem, size = 0x8000, scoped, tag = 'output window, operand 0']
    #allocation3 [shape = 's32[2]{0}', space=sflag, size = 0x8, scoped, tag = 'scoped memory for single_vq_forward.11']
    %9 = vsyncpa [#allocation3], 0
    %s10 = scalar_lea.sflag [#allocation3], 1
    %11 = vsyncpa %s10, 0
    loop: start=0, step=1, limit=4
    $region2: #{single_vq_forward.11} parent=1 // loop_pre_header
      _
    $region3: #{single_vq_forward.11} parent=1 // loop_header
      %s13 = sphi 0, %s17
      %p14 = scmp.ge.s32.totalorder %s13, 4
      %s23 = sphi 0, %s25
      %s26 = sphi 0, %s23
      %s27 = sphi 0, %s26
      %s43 = sphi 0, %s27
      %s49 = sphi 0, %s51
      %s52 = sphi 0, %s49
      %s53 = sphi 0, %s52
      %s69 = sphi 0, %s53
      %s73 = sphi 0, %s73
      %s75 = sphi 0, %s73
      %s76 = sphi 0, %s75
      %s90 = sphi 0, %s76
      %s94 = sphi 0, %s94
      %s96 = sphi 0, %s94
      %s97 = sphi 0, %s96
      %s111 = sphi 0, %s97
      %s117 = sphi 0, %s119
      %s120 = sphi 0, %s117
      %s121 = sphi 0, %s120
      %s137 = sphi 0, %s121
    $region4: #{single_vq_forward.11} parent=1 // loop_header_branch
      %16 = sbr.rel (%p14) target = $region8
    $region5: #{single_vq_forward.11} parent=1 // loop_body
      %s18 = ssub.s32 %s13, 1
      %s19 = ssub.s32 %s13, 2
      %s20 = sadd.s32 %s13, 1
      %s21 = ssub.s32 %s13, %s20
      %p22 = scmp.eq.s32.totalorder %s21, 0
      %s24 = sadd.s32 %s23, 1
      %s25 = scalar_select %p22, %s23, %s24
      %p28 = pneg %p22
      %p29 = scmp.eq.s32.totalorder %s13, 1
      %p30 = por %p28, %p29
      %p31 = scmp.ne.s32.totalorder %s23, %s26
      %p32 = scmp.eq.s32.totalorder %s13, 0
      %p33 = por %p31, %p32
      %p34 = scmp.ne.s32.totalorder %s23, %s26
      %p35 = scmp.eq.s32.totalorder %s18, 1
      %p36 = por %p34, %p35
      %p37 = scmp.ne.s32.totalorder %s26, %s27
      %p38 = scmp.eq.s32.totalorder %s18, 0
      %p39 = por %p37, %p38
      %p40 = scmp.ne.s32.totalorder %s26, %s27
      %p41 = scmp.eq.s32.totalorder %s19, 1
      %p42 = por %p40, %p41
      %p44 = scmp.ne.s32.totalorder %s27, %s43
      %p45 = scmp.eq.s32.totalorder %s19, 0
      %p46 = por %p44, %p45
      %s47 = ssub.s32 %s13, %s20
      %p48 = scmp.eq.s32.totalorder %s47, 0
      %s50 = sadd.s32 %s49, 1
      %s51 = scalar_select %p48, %s49, %s50
      %p54 = pneg %p48
      %p55 = scmp.eq.s32.totalorder %s13, 1
      %p56 = por %p54, %p55
      %p57 = scmp.ne.s32.totalorder %s49, %s52
      %p58 = scmp.eq.s32.totalorder %s13, 0
      %p59 = por %p57, %p58
      %p60 = scmp.ne.s32.totalorder %s49, %s52
      %p61 = scmp.eq.s32.totalorder %s18, 1
      %p62 = por %p60, %p61
      %p63 = scmp.ne.s32.totalorder %s52, %s53
      %p64 = scmp.eq.s32.totalorder %s18, 0
      %p65 = por %p63, %p64
      %p66 = scmp.ne.s32.totalorder %s52, %s53
      %p67 = scmp.eq.s32.totalorder %s19, 1
      %p68 = por %p66, %p67
      %p70 = scmp.ne.s32.totalorder %s53, %s69
      %p71 = scmp.eq.s32.totalorder %s19, 0
      %p72 = por %p70, %p71
      %s74 = sadd.s32 %s73, 1
      %p77 = scmp.eq.s32.totalorder %s13, 1
      %p78 = scmp.ne.s32.totalorder %s73, %s75
      %p79 = scmp.eq.s32.totalorder %s13, 0
      %p80 = por %p78, %p79
      %p81 = scmp.ne.s32.totalorder %s73, %s75
      %p82 = scmp.eq.s32.totalorder %s18, 1
      %p83 = por %p81, %p82
      %p84 = scmp.ne.s32.totalorder %s75, %s76
      %p85 = scmp.eq.s32.totalorder %s18, 0
      %p86 = por %p84, %p85
      %p87 = scmp.ne.s32.totalorder %s75, %s76
      %p88 = scmp.eq.s32.totalorder %s19, 1
      %p89 = por %p87, %p88
      %p91 = scmp.ne.s32.totalorder %s76, %s90
      %p92 = scmp.eq.s32.totalorder %s19, 0
      %p93 = por %p91, %p92
      %s95 = sadd.s32 %s94, 1
      %p98 = scmp.eq.s32.totalorder %s13, 1
      %p99 = scmp.ne.s32.totalorder %s94, %s96
      %p100 = scmp.eq.s32.totalorder %s13, 0
      %p101 = por %p99, %p100
      %p102 = scmp.ne.s32.totalorder %s94, %s96
      %p103 = scmp.eq.s32.totalorder %s18, 1
      %p104 = por %p102, %p103
      %p105 = scmp.ne.s32.totalorder %s96, %s97
      %p106 = scmp.eq.s32.totalorder %s18, 0
      %p107 = por %p105, %p106
      %p108 = scmp.ne.s32.totalorder %s96, %s97
      %p109 = scmp.eq.s32.totalorder %s19, 1
      %p110 = por %p108, %p109
      %p112 = scmp.ne.s32.totalorder %s97, %s111
      %p113 = scmp.eq.s32.totalorder %s19, 0
      %p114 = por %p112, %p113
      %s115 = ssub.s32 %s13, %s20
      %p116 = scmp.eq.s32.totalorder %s115, 0
      %s118 = sadd.s32 %s117, 1
      %s119 = scalar_select %p116, %s117, %s118
      %p122 = pneg %p116
      %p123 = scmp.eq.s32.totalorder %s13, 1
      %p124 = por %p122, %p123
      %p125 = scmp.ne.s32.totalorder %s117, %s120
      %p126 = scmp.eq.s32.totalorder %s13, 0
      %p127 = por %p125, %p126
      %p128 = scmp.ne.s32.totalorder %s117, %s120
      %p129 = scmp.eq.s32.totalorder %s18, 1
      %p130 = por %p128, %p129
      %p131 = scmp.ne.s32.totalorder %s120, %s121
      %p132 = scmp.eq.s32.totalorder %s18, 0
      %p133 = por %p131, %p132
      %p134 = scmp.ne.s32.totalorder %s120, %s121
      %p135 = scmp.eq.s32.totalorder %s19, 1
      %p136 = por %p134, %p135
      %p138 = scmp.ne.s32.totalorder %s121, %s137
      %p139 = scmp.eq.s32.totalorder %s19, 0
      %p140 = por %p138, %p139
      %p141 = scmp.le.s32.totalorder 1, %s13
      %p142 = scmp.lt.s32.totalorder %s13, 3
      %p143 = pnand %p141, %p142
      %p144 = pneg %p143
      // Predicated region
      $region9: #{single_vq_forward.11} parent=5 // pred_check
        _
      $region10: #{single_vq_forward.11} parent=5 // pred_check_branch
        %146 = sbr.rel (%p143) target = $region12
      $region11: #{single_vq_forward.11} parent=5 // pred_region
        %s147 = ssub.s32 %s13, 1
        // Predicated region
        $region13: #{single_vq_forward.11} parent=11 // pred_check
          %p148 = pneg %p86
        $region14: #{single_vq_forward.11} parent=11 // pred_check_branch
          %150 = sbr.rel (%p148) target = $region16
        $region15: #{single_vq_forward.11} parent=11 // pred_region
          _
        $region16: #{single_vq_forward.11} parent=11 // pred_fallthru
          _
        // Predicated region
        $region17: #{single_vq_forward.11} parent=11 // pred_check
          %p151 = pneg %p107
        $region18: #{single_vq_forward.11} parent=11 // pred_check_branch
          %153 = sbr.rel (%p151) target = $region20
        $region19: #{single_vq_forward.11} parent=11 // pred_region
          _
        $region20: #{single_vq_forward.11} parent=11 // pred_fallthru
          _
      $region12: #{single_vq_forward.11} parent=5 // pred_fallthru
        _
      %p154 = scmp.lt.s32.totalorder %s13, 2
      // Predicated region
      $region21: #{single_vq_forward.11} parent=5 // pred_check
        %p155 = pneg %p154
      $region22: #{single_vq_forward.11} parent=5 // pred_check_branch
        %157 = sbr.rel (%p155) target = $region24
      $region23: #{single_vq_forward.11} parent=5 // pred_region
        // Predicated region
        $region25: #{single_vq_forward.11} parent=23 // pred_check
          %p158 = pneg %p33
        $region26: #{single_vq_forward.11} parent=23 // pred_check_branch
          %160 = sbr.rel (%p158) target = $region28
        $region27: #{single_vq_forward.11} parent=23 // pred_region
          %p161 = scmp.lt.s32.totalorder %s13, 1
          %s162 = scalar_select %p161, %s13, 1
          %s163 = smul.addr %s162, 8
          %s164 = smul.addr %s163, 8
          %s165 = scalar_lea.vmem %s0, %s164
        $region28: #{single_vq_forward.11} parent=23 // pred_fallthru
          _
        // Predicated region
        $region29: #{single_vq_forward.11} parent=23 // pred_check
          %p166 = pneg %p59
        $region30: #{single_vq_forward.11} parent=23 // pred_check_branch
          %168 = sbr.rel (%p166) target = $region32
        $region31: #{single_vq_forward.11} parent=23 // pred_region
          %p169 = scmp.lt.s32.totalorder %s13, 1
          %s170 = scalar_select %p169, %s13, 1
          %s171 = smul.addr %s170, 2
          %s172 = scalar_lea.vmem %s1, %s171
        $region32: #{single_vq_forward.11} parent=23 // pred_fallthru
          _
      $region24: #{single_vq_forward.11} parent=5 // pred_fallthru
        _
      %p173 = scmp.le.s32.totalorder 1, %s13
      %p174 = scmp.lt.s32.totalorder %s13, 3
      %p175 = pnand %p173, %p174
      %p176 = pneg %p175
      // Predicated region
      $region33: #{single_vq_forward.11} parent=5 // pred_check
        _
      $region34: #{single_vq_forward.11} parent=5 // pred_check_branch
        %178 = sbr.rel (%p175) target = $region36
      $region35: #{single_vq_forward.11} parent=5 // pred_region
        %s179 = ssub.s32 %s13, 1
        %p180 = scmp.lt.s32.totalorder %s18, 1
        %s181 = scalar_select %p180, %s18, 1
        %s182 = smul.addr %s181, 8
        %s183 = smul.addr %s182, 8
        %s184 = scalar_lea.vmem %s0, %s183
        %p185 = pneg %p39
        %p186 = pneg %p36
        %p187 = scmp.lt.s32.totalorder %s18, 1
        %s188 = scalar_select %p187, %s18, 1
        %s189 = smul.addr %s188, 2
        %s190 = scalar_lea.vmem %s1, %s189
        %p191 = pneg %p65
        %p192 = pneg %p62
        %p193 = pneg %p86
        %p194 = pneg %p83
        %p195 = pneg %p107
        %p196 = pneg %p104
        %p197 = pneg %p133
        %p198 = pneg %p130
        %s199 = sand.u32 %s120, 1
        %s200 = scalar_lea.sflag [#allocation3], %s199
        %s201 = sand.u32 %s120, 1
        %s202 = smul.addr %s201, 32
        %s203 = scalar_lea.vmem [#allocation2], %s202
        %p204 = scmp.lt.s32.totalorder %s18, 1
        %s205 = scalar_select %p204, %s18, 1
        %s206 = smul.addr %s205, 8
        %s207 = smul.addr %s206, 8
        %s208 = scalar_lea.vmem %s0, %s207
        %p209 = scmp.lt.s32.totalorder %s18, 1
        %s210 = scalar_select %p209, %s18, 1
        %s211 = smul.addr %s210, 2
        %s212 = scalar_lea.vmem %s1, %s211
        %v214 = vld [vmem:[%s208] sm:$0xff]
        %v215 = vld [vmem:[%s208 + $0x8] sm:$0xff]
        %v216 = vld [vmem:[%s208 + $0x10] sm:$0xff]
        %v217 = vld [vmem:[%s208 + $0x18] sm:$0xff]
        %v218 = vld [vmem:[%s208 + $0x20] sm:$0xff]
        %v219 = vld [vmem:[%s208 + $0x28] sm:$0xff]
        %v220 = vld [vmem:[%s208 + $0x30] sm:$0xff]
        %v221 = vld [vmem:[%s208 + $0x38] sm:$0xff]
        %v222 = vld [vmem:[%s2] sm:$0xf]
        %v223 = vld [vmem:[%s2 + $0x4] sm:$0xf]
        %v224 = vpack.c.bf16 %v216, %v214
        %v225 = vpack.c.bf16 %v217, %v215
        %v226 = vpack.c.bf16 %v220, %v218
        %v227 = vpack.c.bf16 %v221, %v219
        %v228 = vld [vmem:[%s3] sm:$0xff]
        %v229 = vld [vmem:[%s3 + $0x8] sm:$0xff]
        %231 = vset.pattern.permute.xlu0 0
        %232 = vperm.xlu0 %231, %v228
        %v233 = vpop.permute.xlu0 %232
        %236 = vset.pattern.permute.xlu0 0
        %237 = vperm.xlu0 %236, %v229
        %v238 = vpop.permute.xlu0 %237
        %v242 = vunpack.c.l.b16 %v222
        %v243 = vunpack.c.l.b16 %v223
        %v244 = vpack.c.b16 %v243, %v242
        %vm245 = vcmask 261120
        %v247 = vsel %vm245, %v244, 0
        %249 = vmatpush.bf16.msra.mxu0 0
        %250 = vmatpush.bf16.msra.mxu0 0
        %251 = vmatpush.bf16.msra.mxu0 0
        %252 = vmatpush.bf16.msra.mxu0 0
        %253 = vmatpush.bf16.msra.mxu0 0
        %254 = vmatpush.bf16.msra.mxu0 0
        %255 = vmatpush.bf16.msra.mxu0 %v226
        %256 = vmatpush.bf16.msra.mxu0 %v224
        %257 = vmatmul.bf16.gmra.mxu0 %v247
        %v258 = vpop.f32.mrf.mxu0
        %v259 = vadd.f32 %v233, %v258
        %v260 = vpop.f32.mrf.mxu0
        %v261 = vadd.f32 %v238, %v260
        %262 = vdwg.mxu0
        %263 = vmatpush.bf16.msra.mxu0 0
        %264 = vmatpush.bf16.msra.mxu0 0
        %265 = vmatpush.bf16.msra.mxu0 0
        %266 = vmatpush.bf16.msra.mxu0 0
        %267 = vmatpush.bf16.msra.mxu0 0
        %268 = vmatpush.bf16.msra.mxu0 0
        %269 = vmatpush.bf16.msra.mxu0 %v227
        %270 = vmatpush.bf16.msra.mxu0 %v225
        %271 = vmatmul.bf16.gmra.mxu0 %v247
        %v272 = vpop.f32.mrf.mxu0
        %v273 = vadd.f32 %v233, %v272
        %v274 = vpop.f32.mrf.mxu0
        %v275 = vadd.f32 %v238, %v274
        %276 = vdwg.mxu0
        %v277 = vld [vmem:[%s212] sm:$0x3]
        %v279 = vperm.slane %v277, 0
        %v280 = vperm.slane %v277, 1
        %v283 = vmul.f32 %v259, %v279
        %v284 = vmul.f32 %v273, %v280
        %v285 = vmul.f32 %v261, %v279
        %v286 = vmul.f32 %v275, %v280
        %287 = vst [vmem:[%s203] sm:$0xff] %v283
        %288 = vst [vmem:[%s203 + $0x8] sm:$0xff] %v284
        %289 = vst [vmem:[%s203 + $0x10] sm:$0xff] %v285
        %290 = vst [vmem:[%s203 + $0x18] sm:$0xff] %v286
        %s291 = sand.u32 %s120, 1
        %s292 = scalar_lea.sflag [#allocation3], %s291
        %s293 = sand.u32 %s120, 1
        %s294 = smul.addr %s293, 32
        %s295 = scalar_lea.vmem [#allocation2], %s294
        // Predicated region
        $region37: #{single_vq_forward.11} parent=35 // pred_check
          %p296 = pneg %p130
        $region38: #{single_vq_forward.11} parent=35 // pred_check_branch
          %298 = sbr.rel (%p296) target = $region40
        $region39: #{single_vq_forward.11} parent=35 // pred_region
          %300 = vsyncadd %s292, 0
          %s301 = smul.addr %s18, 4
          %s302 = smul.addr %s301, 8
          %s303 = scalar_lea.hbm %s4, %s302
          %s304 = sshll.u32 %s295, 4
          %s305 = int_to_ptr.vmem [resolvable:$true] %s304
          %s306 = sshll.u32 %s303, 4
          %s307 = int_to_ptr.hbm [resolvable:$true] %s306
          %312 = dma.vmem_to_hbm [thread:$0]  %s305, 512, %s307, %s292, 256, 256, 16
        $region40: #{single_vq_forward.11} parent=35 // pred_fallthru
          _
      $region36: #{single_vq_forward.11} parent=5 // pred_fallthru
        _
      %p313 = scmp.le.s32.totalorder 2, %s13
      // Predicated region
      $region41: #{single_vq_forward.11} parent=5 // pred_check
        %p314 = pneg %p313
      $region42: #{single_vq_forward.11} parent=5 // pred_check_branch
        %316 = sbr.rel (%p314) target = $region44
      $region43: #{single_vq_forward.11} parent=5 // pred_region
        %s317 = ssub.s32 %s13, 2
        // Predicated region
        $region45: #{single_vq_forward.11} parent=43 // pred_check
          %p318 = pneg %p136
        $region46: #{single_vq_forward.11} parent=43 // pred_check_branch
          %320 = sbr.rel (%p318) target = $region48
        $region47: #{single_vq_forward.11} parent=43 // pred_region
          %s321 = sand.u32 %s121, 1
          %s322 = scalar_lea.sflag [#allocation3], %s321
          %s323 = sand.u32 %s121, 1
          %s324 = smul.addr %s323, 32
          %s325 = scalar_lea.vmem [#allocation2], %s324
          %327 = dma.done %s322, 512
        $region48: #{single_vq_forward.11} parent=43 // pred_fallthru
          _
      $region44: #{single_vq_forward.11} parent=5 // pred_fallthru
        _
    $region6: #{single_vq_forward.11} parent=1 // loop_footer
      %s17 = sadd.s32 1, %s13
    $region7: #{single_vq_forward.11} parent=1 // loop_footer_branch
      %12 = sbr.rel target = $region3
    $region8: #{single_vq_forward.11} parent=1 // loop_exit
      _
    %328 = vsyncpa [#allocation3], 1
    %s329 = scalar_lea.sflag [#allocation3], 1
    %330 = vsyncpa %s329, 1

</llo_original>
